<compile_context>
chip_gen: v7x
topology: tpu7x:2x2x1
jax: 0.10.0
libtpu: 0.0.40
codegen_flags: <defaults>
</compile_context>

<pallas_src>
import math
import functools

import jax
import jax.numpy as jnp
from jax.experimental import pallas as pl
from jax.experimental.pallas import tpu as pltpu


# ---------------------------------------------------------------------------
# In-kernel helpers
# ---------------------------------------------------------------------------
def _layer_norm(x, a, b, eps=1e-6):
    # Matches the torch LayerNorm in the module:
    #   mean over last dim, *unbiased* std (n-1), eps added to std (not var).
    d = x.shape[-1]
    mean = jnp.mean(x, axis=-1, keepdims=True)
    var = jnp.sum((x - mean) ** 2, axis=-1, keepdims=True) / (d - 1)
    std = jnp.sqrt(var)
    return a * (x - mean) / (std + eps) + b


def _mha(q, k, v, add_mask, num_heads):
    """Multi-head attention for one batch row.

    q: (T, D) bf16, k/v: (S, D) bf16, add_mask broadcastable to (H, T, S) f32
    (0 where attended, -1e9 where masked). Returns (T, D) f32.
    """
    T, D = q.shape
    d_k = D // num_heads
    scale = 1.0 / math.sqrt(d_k)

    # Head split on bf16 operands (cast happened before the split -> half the
    # relayout traffic of an f32 split).  Lane-slice + stack is kept for safe
    # lowering; a single layout-aware pltpu.einshape would be the next step.
    qh = jnp.stack([q[:, h * d_k:(h + 1) * d_k] for h in range(num_heads)], 0)
    kh = jnp.stack([k[:, h * d_k:(h + 1) * d_k] for h in range(num_heads)], 0)
    vh = jnp.stack([v[:, h * d_k:(h + 1) * d_k] for h in range(num_heads)], 0)

    # Head-batched dot_general (leading batch dim = H).
    s = jnp.einsum("htd,hsd->hts", qh, kh,
                   preferred_element_type=jnp.float32) * scale      # (H, T, S)
    s = s + add_mask
    s = s - jnp.max(s, axis=-1, keepdims=True)
    p = jnp.exp(s)
    p = p * pl.reciprocal(jnp.sum(p, axis=-1, keepdims=True), approx=True)

    ctx = jnp.einsum("hts,hsd->htd", p.astype(jnp.bfloat16), vh,
                     preferred_element_type=jnp.float32)             # (H, T, d_k)
    return jnp.concatenate([ctx[h] for h in range(num_heads)], axis=-1)  # (T, D)


# ---------------------------------------------------------------------------
# Pallas kernel: one DecoderLayer over a block of B_blk batch rows
# ---------------------------------------------------------------------------
def decoder_layer_kernel(x_ref, mem_ref, smask_ref, tmask_ref,
                         ln1a_ref, ln1b_ref,
                         wqkv_ref, bqkv_ref, wo1_ref, bo1_ref,
                         ln2a_ref, ln2b_ref,
                         wq2_ref, bq2_ref, wkv2_ref, bkv2_ref,
                         wo2_ref, bo2_ref,
                         ln3a_ref, ln3b_ref,
                         w1_ref, b1_ref, w2_ref, b2_ref,
                         out_ref, *, num_heads):
    bf16 = jnp.bfloat16
    f32 = jnp.float32

    # Static block sizes derived from the mask blocks.
    b_blk, T, _ = tmask_ref.shape            # (B_blk, T, T)
    S = smask_ref.shape[-1]                  # (B_blk, 1, S)

    x = x_ref[...]                           # (B_blk*T, D) f32
    D = x.shape[-1]

    # ---- sublayer 0: x + SelfAttn(LN(x), tgt_mask) ----
    xn = _layer_norm(x, ln1a_ref[...], ln1b_ref[...])
    qkv = (jnp.dot(xn.astype(bf16), wqkv_ref[...],
                   preferred_element_type=f32) + bqkv_ref[...]).astype(bf16)
    q, k, v = qkv[:, :D], qkv[:, D:2 * D], qkv[:, 2 * D:]
    rows = []
    for b in range(b_blk):
        rows.append(_mha(q[b * T:(b + 1) * T], k[b * T:(b + 1) * T],
                         v[b * T:(b + 1) * T], tmask_ref[b], num_heads))
    attn = jnp.concatenate(rows, axis=0)                          # (B_blk*T, D)
    x = x + (jnp.dot(attn.astype(bf16), wo1_ref[...],
                     preferred_element_type=f32) + bo1_ref[...])

    # ---- sublayer 1: x + SrcAttn(LN(x), memory, src_mask) ----
    xn = _layer_norm(x, ln2a_ref[...], ln2b_ref[...])
    q = (jnp.dot(xn.astype(bf16), wq2_ref[...],
                 preferred_element_type=f32) + bq2_ref[...]).astype(bf16)
    kv = (jnp.dot(mem_ref[...].astype(bf16), wkv2_ref[...],
                  preferred_element_type=f32) + bkv2_ref[...]).astype(bf16)
    k, v = kv[:, :D], kv[:, D:]
    rows = []
    for b in range(b_blk):
        rows.append(_mha(q[b * T:(b + 1) * T], k[b * S:(b + 1) * S],
                         v[b * S:(b + 1) * S], smask_ref[b], num_heads))
    attn = jnp.concatenate(rows, axis=0)
    x = x + (jnp.dot(attn.astype(bf16), wo2_ref[...],
                     preferred_element_type=f32) + bo2_ref[...])

    # ---- sublayer 2: x + FFN(LN(x)) ----  (dropout == identity, eval mode)
    xn = _layer_norm(x, ln3a_ref[...], ln3b_ref[...])
    h = jnp.maximum(jnp.dot(xn.astype(bf16), w1_ref[...],
                            preferred_element_type=f32) + b1_ref[...], 0.0)
    x = x + (jnp.dot(h.astype(bf16), w2_ref[...],
                     preferred_element_type=f32) + b2_ref[...])

    out_ref[...] = x


# ---------------------------------------------------------------------------
# pallas_call wrapper
# ---------------------------------------------------------------------------
def make_decoder_layer_call(B, T, S, D, Dff, H, B_blk=2):
    assert B % B_blk == 0, "batch must be divisible by the batch block"
    kern = functools.partial(decoder_layer_kernel, num_heads=H)

    def rep(shape):
        n = len(shape)
        return pl.BlockSpec(shape, lambda b, _n=n: (0,) * _n)

    in_specs = [
        pl.BlockSpec((B_blk * T, D), lambda b: (b, 0)),     # x       (B*T, D)
        pl.BlockSpec((B_blk * S, D), lambda b: (b, 0)),     # memory  (B*S, D)
        pl.BlockSpec((B_blk, 1, S), lambda b: (b, 0, 0)),   # src additive mask
        pl.BlockSpec((B_blk, T, T), lambda b: (b, 0, 0)),   # tgt additive mask
        rep((1, D)), rep((1, D)),                           # ln1 a, b
        rep((D, 3 * D)), rep((1, 3 * D)),                   # fused Wqkv (self), bias
        rep((D, D)), rep((1, D)),                           # Wo self, bias
        rep((1, D)), rep((1, D)),                           # ln2 a, b
        rep((D, D)), rep((1, D)),                           # Wq src, bias
        rep((D, 2 * D)), rep((1, 2 * D)),                   # fused Wkv (src), bias
        rep((D, D)), rep((1, D)),                           # Wo src, bias
        rep((1, D)), rep((1, D)),                           # ln3 a, b
        rep((D, Dff)), rep((1, Dff)),                       # W1, b1
        rep((Dff, D)), rep((1, D)),                         # W2, b2
    ]
    return pl.pallas_call(
        kern,
        out_shape=jax.ShapeDtypeStruct((B * T, D), jnp.float32),
        grid_spec=pltpu.PrefetchScalarGridSpec(
            num_scalar_prefetch=0,
            grid=(B // B_blk,),              # even # of steps -> both v7x TCs busy
            in_specs=in_specs,
            out_specs=pl.BlockSpec((B_blk * T, D), lambda b: (b, 0)),
        ),
        compiler_params=pltpu.CompilerParams(
            dimension_semantics=("parallel",),      # batch-block axis
            vmem_limit_bytes=16 * 1024 * 1024,      # tight budget, v7x-safe
        ),
    )


# ---------------------------------------------------------------------------
# Parameter init (deterministic, synthetic)
# ---------------------------------------------------------------------------
def init_params(key, D, Dff):
    ks = jax.random.split(key, 10)

    def lin(k, din, dout):
        kw, kb = jax.random.split(k)
        w = jax.random.normal(kw, (din, dout), jnp.float32) / math.sqrt(din)
        b = jax.random.normal(kb, (1, dout), jnp.float32) * 0.02
        return w, b

    p = {}
    p["wq_s"], p["bq_s"] = lin(ks[0], D, D)
    p["wk_s"], p["bk_s"] = lin(ks[1], D, D)
    p["wv_s"], p["bv_s"] = lin(ks[2], D, D)
    p["wo_s"], p["bo_s"] = lin(ks[3], D, D)
    p["wq_x"], p["bq_x"] = lin(ks[4], D, D)
    p["wk_x"], p["bk_x"] = lin(ks[5], D, D)
    p["wv_x"], p["bv_x"] = lin(ks[6], D, D)
    p["wo_x"], p["bo_x"] = lin(ks[7], D, D)
    p["w1"], p["b1"] = lin(ks[8], D, Dff)
    p["w2"], p["b2"] = lin(ks[9], Dff, D)
    ones = jnp.ones((1, D), jnp.float32)
    zeros = jnp.zeros((1, D), jnp.float32)
    p["ln1a"], p["ln1b"] = ones, zeros
    p["ln2a"], p["ln2b"] = ones, zeros
    p["ln3a"], p["ln3b"] = ones, zeros
    return p


# ---------------------------------------------------------------------------
# Pure-JAX reference (mirrors the PyTorch DecoderLayer forward, f32)
# ---------------------------------------------------------------------------
def ref_layer_norm(x, a, b, eps=1e-6):
    d = x.shape[-1]
    mean = jnp.mean(x, axis=-1, keepdims=True)
    std = jnp.sqrt(jnp.sum((x - mean) ** 2, axis=-1, keepdims=True) / (d - 1))
    return a * (x - mean) / (std + eps) + b


def ref_attention(q, k, v, mask, H):
    B, T, D = q.shape
    S = k.shape[1]
    d_k = D // H
    qh = q.reshape(B, T, H, d_k).transpose(0, 2, 1, 3)
    kh = k.reshape(B, S, H, d_k).transpose(0, 2, 1, 3)
    vh = v.reshape(B, S, H, d_k).transpose(0, 2, 1, 3)
    s = jnp.einsum("bhtd,bhsd->bhts", qh, kh) / math.sqrt(d_k)
    s = jnp.where(mask[:, None, :, :] == 0.0, -1e9, s)
    pa = jax.nn.softmax(s, axis=-1)
    o = jnp.einsum("bhts,bhsd->bhtd", pa, vh)
    return o.transpose(0, 2, 1, 3).reshape(B, T, D)


def ref_decoder_layer(x, memory, src_mask, tgt_mask, p, H):
    xn = ref_layer_norm(x, p["ln1a"], p["ln1b"])
    q = xn @ p["wq_s"] + p["bq_s"]
    k = xn @ p["wk_s"] + p["bk_s"]
    v = xn @ p["wv_s"] + p["bv_s"]
    x = x + (ref_attention(q, k, v, tgt_mask, H) @ p["wo_s"] + p["bo_s"])

    xn = ref_layer_norm(x, p["ln2a"], p["ln2b"])
    q = xn @ p["wq_x"] + p["bq_x"]
    k = memory @ p["wk_x"] + p["bk_x"]
    v = memory @ p["wv_x"] + p["bv_x"]
    x = x + (ref_attention(q, k, v, src_mask, H) @ p["wo_x"] + p["bo_x"])

    xn = ref_layer_norm(x, p["ln3a"], p["ln3b"])
    x = x + (jnp.maximum(xn @ p["w1"] + p["b1"], 0.0) @ p["w2"] + p["b2"])
    return x


# ---------------------------------------------------------------------------
if __name__ == "__main__":
    # Small, lane-dense shapes: D = 128 fills the 128-lane vreg; B=4 with
    # B_blk=2 gives M = 16 rows per matmul and an even 2-step grid.
    B, T, S, D, Dff, H = 4, 8, 16, 128, 256, 4
    B_blk = 2

    key = jax.random.PRNGKey(0)
    kx, km, kp = jax.random.split(key, 3)
    x = jax.random.normal(kx, (B, T, D), jnp.float32)
    memory = jax.random.normal(km, (B, S, D), jnp.float32)

    # tgt mask: causal (subsequent-position) mask; src mask: last 3 padded out.
    tgt_mask = jnp.broadcast_to(jnp.tril(jnp.ones((T, T), jnp.float32)), (B, T, T))
    src_mask = jnp.ones((B, 1, S), jnp.float32).at[:, :, -3:].set(0.0)

    # Host-side additive masks (0 = attend, -1e9 = masked).
    tgt_add = (tgt_mask - 1.0) * 1e9
    src_add = (src_mask - 1.0) * 1e9

    p = init_params(kp, D, Dff)

    # Host-side fusion + bf16 cast of the matmul weights (biases stay f32).
    bf = jnp.bfloat16
    wqkv_s = jnp.concatenate([p["wq_s"], p["wk_s"], p["wv_s"]], axis=1).astype(bf)
    bqkv_s = jnp.concatenate([p["bq_s"], p["bk_s"], p["bv_s"]], axis=1)
    wkv_x = jnp.concatenate([p["wk_x"], p["wv_x"]], axis=1).astype(bf)
    bkv_x = jnp.concatenate([p["bk_x"], p["bv_x"]], axis=1)

    layer_call = make_decoder_layer_call(B, T, S, D, Dff, H, B_blk)
    y2d = layer_call(
        x.reshape(B * T, D), memory.reshape(B * S, D), src_add, tgt_add,
        p["ln1a"], p["ln1b"],
        wqkv_s, bqkv_s, p["wo_s"].astype(bf), p["bo_s"],
        p["ln2a"], p["ln2b"],
        p["wq_x"].astype(bf), p["bq_x"], wkv_x, bkv_x,
        p["wo_x"].astype(bf), p["bo_x"],
        p["ln3a"], p["ln3b"],
        p["w1"].astype(bf), p["b1"], p["w2"].astype(bf), p["b2"],
    )
    y = jax.block_until_ready(y2d).reshape(B, T, D)

    y_ref = ref_decoder_layer(x, memory, src_mask, tgt_mask, p, H)
    assert y.shape == (B, T, D)
    assert bool(jnp.all(jnp.isfinite(y)))
    max_err = float(jnp.max(jnp.abs(y - y_ref)))
    assert bool(jnp.allclose(y, y_ref, atol=5e-2, rtol=5e-2)), f"max abs err {max_err}"
    print("KERNEL_OK")
</pallas_src>

<mosaic_0001>
module attributes {stable_mosaic.version = 11 : i64} {
  func.func @decoder_layer_kernel(%arg0: i32, %arg1: memref<16x128xf32, #tpu.memory_space<vmem>>, %arg2: memref<32x128xf32, #tpu.memory_space<vmem>>, %arg3: memref<2x1x16xf32, #tpu.memory_space<vmem>>, %arg4: memref<2x8x8xf32, #tpu.memory_space<vmem>>, %arg5: memref<1x128xf32, #tpu.memory_space<vmem>>, %arg6: memref<1x128xf32, #tpu.memory_space<vmem>>, %arg7: memref<128x384xbf16, #tpu.memory_space<vmem>>, %arg8: memref<1x384xf32, #tpu.memory_space<vmem>>, %arg9: memref<128x128xbf16, #tpu.memory_space<vmem>>, %arg10: memref<1x128xf32, #tpu.memory_space<vmem>>, %arg11: memref<1x128xf32, #tpu.memory_space<vmem>>, %arg12: memref<1x128xf32, #tpu.memory_space<vmem>>, %arg13: memref<128x128xbf16, #tpu.memory_space<vmem>>, %arg14: memref<1x128xf32, #tpu.memory_space<vmem>>, %arg15: memref<128x256xbf16, #tpu.memory_space<vmem>>, %arg16: memref<1x256xf32, #tpu.memory_space<vmem>>, %arg17: memref<128x128xbf16, #tpu.memory_space<vmem>>, %arg18: memref<1x128xf32, #tpu.memory_space<vmem>>, %arg19: memref<1x128xf32, #tpu.memory_space<vmem>>, %arg20: memref<1x128xf32, #tpu.memory_space<vmem>>, %arg21: memref<128x256xbf16, #tpu.memory_space<vmem>>, %arg22: memref<1x256xf32, #tpu.memory_space<vmem>>, %arg23: memref<256x128xbf16, #tpu.memory_space<vmem>>, %arg24: memref<1x128xf32, #tpu.memory_space<vmem>>, %arg25: memref<16x128xf32, #tpu.memory_space<vmem>>) attributes {dimension_semantics = [#tpu.dimension_semantics<parallel>], iteration_bounds = array<i64: 2>, scalar_prefetch = 0 : i64, scratch_operands = 0 : i64, tpu.core_type = #tpu.core_type<tc>, window_params = [{transform_indices = @transform_0, window_bounds = array<i64: 16, 128>}, {transform_indices = @transform_1, window_bounds = array<i64: 32, 128>}, {transform_indices = @transform_2, window_bounds = array<i64: 2, 1, 16>}, {transform_indices = @transform_3, window_bounds = array<i64: 2, 8, 8>}, {pipeline_mode = #tpu.pipeline_mode<synchronous>, transform_indices = @transform_4, window_bounds = array<i64: 1, 128>}, {pipeline_mode = #tpu.pipeline_mode<synchronous>, transform_indices = @transform_5, window_bounds = array<i64: 1, 128>}, {pipeline_mode = #tpu.pipeline_mode<synchronous>, transform_indices = @transform_6, window_bounds = array<i64: 128, 384>}, {pipeline_mode = #tpu.pipeline_mode<synchronous>, transform_indices = @transform_7, window_bounds = array<i64: 1, 384>}, {pipeline_mode = #tpu.pipeline_mode<synchronous>, transform_indices = @transform_8, window_bounds = array<i64: 128, 128>}, {pipeline_mode = #tpu.pipeline_mode<synchronous>, transform_indices = @transform_9, window_bounds = array<i64: 1, 128>}, {pipeline_mode = #tpu.pipeline_mode<synchronous>, transform_indices = @transform_10, window_bounds = array<i64: 1, 128>}, {pipeline_mode = #tpu.pipeline_mode<synchronous>, transform_indices = @transform_11, window_bounds = array<i64: 1, 128>}, {pipeline_mode = #tpu.pipeline_mode<synchronous>, transform_indices = @transform_12, window_bounds = array<i64: 128, 128>}, {pipeline_mode = #tpu.pipeline_mode<synchronous>, transform_indices = @transform_13, window_bounds = array<i64: 1, 128>}, {pipeline_mode = #tpu.pipeline_mode<synchronous>, transform_indices = @transform_14, window_bounds = array<i64: 128, 256>}, {pipeline_mode = #tpu.pipeline_mode<synchronous>, transform_indices = @transform_15, window_bounds = array<i64: 1, 256>}, {pipeline_mode = #tpu.pipeline_mode<synchronous>, transform_indices = @transform_16, window_bounds = array<i64: 128, 128>}, {pipeline_mode = #tpu.pipeline_mode<synchronous>, transform_indices = @transform_17, window_bounds = array<i64: 1, 128>}, {pipeline_mode = #tpu.pipeline_mode<synchronous>, transform_indices = @transform_18, window_bounds = array<i64: 1, 128>}, {pipeline_mode = #tpu.pipeline_mode<synchronous>, transform_indices = @transform_19, window_bounds = array<i64: 1, 128>}, {pipeline_mode = #tpu.pipeline_mode<synchronous>, transform_indices = @transform_20, window_bounds = array<i64: 128, 256>}, {pipeline_mode = #tpu.pipeline_mode<synchronous>, transform_indices = @transform_21, window_bounds = array<i64: 1, 256>}, {pipeline_mode = #tpu.pipeline_mode<synchronous>, transform_indices = @transform_22, window_bounds = array<i64: 256, 128>}, {pipeline_mode = #tpu.pipeline_mode<synchronous>, transform_indices = @transform_23, window_bounds = array<i64: 1, 128>}, {transform_indices = @transform_24, window_bounds = array<i64: 16, 128>}]} {
    %c0 = arith.constant 0 : index
    %c0_0 = arith.constant 0 : index
    %0 = vector.load %arg1[%c0, %c0_0] : memref<16x128xf32, #tpu.memory_space<vmem>>, vector<16x128xf32>
    %c0_1 = arith.constant 0 : index
    %c0_2 = arith.constant 0 : index
    %1 = vector.load %arg5[%c0_1, %c0_2] : memref<1x128xf32, #tpu.memory_space<vmem>>, vector<1x128xf32>
    %c0_3 = arith.constant 0 : index
    %c0_4 = arith.constant 0 : index
    %2 = vector.load %arg6[%c0_3, %c0_4] : memref<1x128xf32, #tpu.memory_space<vmem>>, vector<1x128xf32>
    %cst = arith.constant dense<0.000000e+00> : vector<16xf32>
    %3 = vector.multi_reduction <add>, %0, %cst [1] : vector<16x128xf32> to vector<16xf32>
    %4 = vector.shape_cast %3 : vector<16xf32> to vector<16x1xf32>
    %cst_5 = arith.constant 1.280000e+02 : f32
    %5 = vector.broadcast %cst_5 : f32 to vector<16x1xf32>
    %6 = arith.divf %4, %5 : vector<16x1xf32>
    %7 = vector.broadcast %6 : vector<16x1xf32> to vector<16x128xf32>
    %8 = arith.subf %0, %7 : vector<16x128xf32>
    %9 = arith.mulf %8, %8 : vector<16x128xf32>
    %cst_6 = arith.constant dense<0.000000e+00> : vector<16xf32>
    %10 = vector.multi_reduction <add>, %9, %cst_6 [1] : vector<16x128xf32> to vector<16xf32>
    %11 = vector.shape_cast %10 : vector<16xf32> to vector<16x1xf32>
    %cst_7 = arith.constant 1.270000e+02 : f32
    %12 = vector.broadcast %cst_7 : f32 to vector<16x1xf32>
    %13 = arith.divf %11, %12 : vector<16x1xf32>
    %14 = math.sqrt %13 : vector<16x1xf32>
    %15 = vector.broadcast %6 : vector<16x1xf32> to vector<16x128xf32>
    %16 = arith.subf %0, %15 : vector<16x128xf32>
    %17 = vector.broadcast %1 : vector<1x128xf32> to vector<16x128xf32>
    %18 = arith.mulf %17, %16 : vector<16x128xf32>
    %cst_8 = arith.constant 9.99999997E-7 : f32
    %19 = vector.broadcast %cst_8 : f32 to vector<16x1xf32>
    %20 = arith.addf %14, %19 : vector<16x1xf32>
    %21 = vector.broadcast %20 : vector<16x1xf32> to vector<16x128xf32>
    %22 = arith.divf %18, %21 : vector<16x128xf32>
    %23 = vector.broadcast %2 : vector<1x128xf32> to vector<16x128xf32>
    %24 = arith.addf %22, %23 : vector<16x128xf32>
    %25 = arith.truncf %24 : vector<16x128xf32> to vector<16x128xbf16>
    %c0_9 = arith.constant 0 : index
    %c0_10 = arith.constant 0 : index
    %26 = vector.load %arg7[%c0_9, %c0_10] : memref<128x384xbf16, #tpu.memory_space<vmem>>, vector<128x384xbf16>
    %cst_11 = arith.constant dense<0.000000e+00> : vector<16x384xf32>
    %27 = tpu.matmul %25, %26, %cst_11 {dimension_numbers = #tpu.dot_dimension_numbers<[1], [0], [0], [1], [0, 0, 1, 1], [], []>} : vector<16x128xbf16>, vector<128x384xbf16>, vector<16x384xf32> -> vector<16x384xf32>
    %c0_12 = arith.constant 0 : index
    %c0_13 = arith.constant 0 : index
    %28 = vector.load %arg8[%c0_12, %c0_13] : memref<1x384xf32, #tpu.memory_space<vmem>>, vector<1x384xf32>
    %29 = vector.broadcast %28 : vector<1x384xf32> to vector<16x384xf32>
    %30 = arith.addf %27, %29 : vector<16x384xf32>
    %31 = arith.truncf %30 : vector<16x384xf32> to vector<16x384xbf16>
    %32 = vector.extract_strided_slice %31 {offsets = [0, 0], sizes = [16, 128], strides = [1, 1]} : vector<16x384xbf16> to vector<16x128xbf16>
    %33 = vector.extract_strided_slice %31 {offsets = [0, 128], sizes = [16, 128], strides = [1, 1]} : vector<16x384xbf16> to vector<16x128xbf16>
    %34 = vector.extract_strided_slice %31 {offsets = [0, 256], sizes = [16, 128], strides = [1, 1]} : vector<16x384xbf16> to vector<16x128xbf16>
    %35 = vector.extract_strided_slice %32 {offsets = [0, 0], sizes = [8, 128], strides = [1, 1]} : vector<16x128xbf16> to vector<8x128xbf16>
    %36 = vector.extract_strided_slice %33 {offsets = [0, 0], sizes = [8, 128], strides = [1, 1]} : vector<16x128xbf16> to vector<8x128xbf16>
    %37 = vector.extract_strided_slice %34 {offsets = [0, 0], sizes = [8, 128], strides = [1, 1]} : vector<16x128xbf16> to vector<8x128xbf16>
    %c0_14 = arith.constant 0 : index
    %c0_15 = arith.constant 0 : index
    %c0_16 = arith.constant 0 : index
    %38 = vector.load %arg4[%c0_14, %c0_15, %c0_16] : memref<2x8x8xf32, #tpu.memory_space<vmem>>, vector<1x8x8xf32>
    %39 = vector.shape_cast %38 : vector<1x8x8xf32> to vector<8x8xf32>
    %40 = vector.extract_strided_slice %35 {offsets = [0, 0], sizes = [8, 32], strides = [1, 1]} : vector<8x128xbf16> to vector<8x32xbf16>
    %41 = vector.extract_strided_slice %35 {offsets = [0, 32], sizes = [8, 32], strides = [1, 1]} : vector<8x128xbf16> to vector<8x32xbf16>
    %42 = vector.extract_strided_slice %35 {offsets = [0, 64], sizes = [8, 32], strides = [1, 1]} : vector<8x128xbf16> to vector<8x32xbf16>
    %43 = vector.extract_strided_slice %35 {offsets = [0, 96], sizes = [8, 32], strides = [1, 1]} : vector<8x128xbf16> to vector<8x32xbf16>
    %44 = vector.shape_cast %40 : vector<8x32xbf16> to vector<1x8x32xbf16>
    %45 = vector.shape_cast %41 : vector<8x32xbf16> to vector<1x8x32xbf16>
    %46 = vector.shape_cast %42 : vector<8x32xbf16> to vector<1x8x32xbf16>
    %47 = vector.shape_cast %43 : vector<8x32xbf16> to vector<1x8x32xbf16>
    %48 = tpu.concatenate %44, %45, %46, %47 in 0 : vector<1x8x32xbf16>, vector<1x8x32xbf16>, vector<1x8x32xbf16>, vector<1x8x32xbf16> -> vector<4x8x32xbf16>
    %49 = vector.extract_strided_slice %36 {offsets = [0, 0], sizes = [8, 32], strides = [1, 1]} : vector<8x128xbf16> to vector<8x32xbf16>
    %50 = vector.extract_strided_slice %36 {offsets = [0, 32], sizes = [8, 32], strides = [1, 1]} : vector<8x128xbf16> to vector<8x32xbf16>
    %51 = vector.extract_strided_slice %36 {offsets = [0, 64], sizes = [8, 32], strides = [1, 1]} : vector<8x128xbf16> to vector<8x32xbf16>
    %52 = vector.extract_strided_slice %36 {offsets = [0, 96], sizes = [8, 32], strides = [1, 1]} : vector<8x128xbf16> to vector<8x32xbf16>
    %53 = vector.shape_cast %49 : vector<8x32xbf16> to vector<1x8x32xbf16>
    %54 = vector.shape_cast %50 : vector<8x32xbf16> to vector<1x8x32xbf16>
    %55 = vector.shape_cast %51 : vector<8x32xbf16> to vector<1x8x32xbf16>
    %56 = vector.shape_cast %52 : vector<8x32xbf16> to vector<1x8x32xbf16>
    %57 = tpu.concatenate %53, %54, %55, %56 in 0 : vector<1x8x32xbf16>, vector<1x8x32xbf16>, vector<1x8x32xbf16>, vector<1x8x32xbf16> -> vector<4x8x32xbf16>
    %58 = vector.extract_strided_slice %37 {offsets = [0, 0], sizes = [8, 32], strides = [1, 1]} : vector<8x128xbf16> to vector<8x32xbf16>
    %59 = vector.extract_strided_slice %37 {offsets = [0, 32], sizes = [8, 32], strides = [1, 1]} : vector<8x128xbf16> to vector<8x32xbf16>
    %60 = vector.extract_strided_slice %37 {offsets = [0, 64], sizes = [8, 32], strides = [1, 1]} : vector<8x128xbf16> to vector<8x32xbf16>
    %61 = vector.extract_strided_slice %37 {offsets = [0, 96], sizes = [8, 32], strides = [1, 1]} : vector<8x128xbf16> to vector<8x32xbf16>
    %62 = vector.shape_cast %58 : vector<8x32xbf16> to vector<1x8x32xbf16>
    %63 = vector.shape_cast %59 : vector<8x32xbf16> to vector<1x8x32xbf16>
    %64 = vector.shape_cast %60 : vector<8x32xbf16> to vector<1x8x32xbf16>
    %65 = vector.shape_cast %61 : vector<8x32xbf16> to vector<1x8x32xbf16>
    %66 = tpu.concatenate %62, %63, %64, %65 in 0 : vector<1x8x32xbf16>, vector<1x8x32xbf16>, vector<1x8x32xbf16>, vector<1x8x32xbf16> -> vector<4x8x32xbf16>
    "tpu.trace_start"() <{level = 10 : i32, message = "htd,hsd->hts"}> : () -> ()
    %cst_17 = arith.constant dense<0.000000e+00> : vector<4x8x8xf32>
    %67 = tpu.matmul %48, %57, %cst_17 {dimension_numbers = #tpu.dot_dimension_numbers<[2], [2], [1], [1], [0, 0, 0, 1, 1, 1], [0], [0]>} : vector<4x8x32xbf16>, vector<4x8x32xbf16>, vector<4x8x8xf32> -> vector<4x8x8xf32>
    "tpu.trace_stop"() : () -> ()
    %cst_18 = arith.constant 0.176776692 : f32
    %68 = vector.broadcast %cst_18 : f32 to vector<4x8x8xf32>
    %69 = arith.mulf %67, %68 : vector<4x8x8xf32>
    %70 = vector.shape_cast %39 : vector<8x8xf32> to vector<1x8x8xf32>
    %71 = vector.broadcast %70 : vector<1x8x8xf32> to vector<4x8x8xf32>
    %72 = arith.addf %69, %71 : vector<4x8x8xf32>
    %cst_19 = arith.constant dense<0xFF800000> : vector<4x8xf32>
    %73 = vector.multi_reduction <maximumf>, %72, %cst_19 [2] : vector<4x8x8xf32> to vector<4x8xf32>
    %74 = vector.shape_cast %73 : vector<4x8xf32> to vector<4x8x1xf32>
    %75 = vector.broadcast %74 : vector<4x8x1xf32> to vector<4x8x8xf32>
    %76 = arith.subf %72, %75 : vector<4x8x8xf32>
    %77 = math.exp %76 : vector<4x8x8xf32>
    %cst_20 = arith.constant dense<0.000000e+00> : vector<4x8xf32>
    %78 = vector.multi_reduction <add>, %77, %cst_20 [2] : vector<4x8x8xf32> to vector<4x8xf32>
    %79 = vector.shape_cast %78 : vector<4x8xf32> to vector<4x8x1xf32>
    %80 = tpu.reciprocal %79 {approx = true} : vector<4x8x1xf32> -> vector<4x8x1xf32>
    %81 = vector.broadcast %80 : vector<4x8x1xf32> to vector<4x8x8xf32>
    %82 = arith.mulf %77, %81 : vector<4x8x8xf32>
    %83 = arith.truncf %82 : vector<4x8x8xf32> to vector<4x8x8xbf16>
    "tpu.trace_start"() <{level = 10 : i32, message = "hts,hsd->htd"}> : () -> ()
    %cst_21 = arith.constant dense<0.000000e+00> : vector<4x8x32xf32>
    %84 = tpu.matmul %83, %66, %cst_21 {dimension_numbers = #tpu.dot_dimension_numbers<[2], [1], [1], [2], [0, 0, 0, 1, 1, 2], [0], [0]>} : vector<4x8x8xbf16>, vector<4x8x32xbf16>, vector<4x8x32xf32> -> vector<4x8x32xf32>
    "tpu.trace_stop"() : () -> ()
    %85 = vector.extract_strided_slice %84 {offsets = [0, 0, 0], sizes = [1, 8, 32], strides = [1, 1, 1]} : vector<4x8x32xf32> to vector<1x8x32xf32>
    %86 = vector.shape_cast %85 : vector<1x8x32xf32> to vector<8x32xf32>
    %87 = vector.extract_strided_slice %84 {offsets = [1, 0, 0], sizes = [1, 8, 32], strides = [1, 1, 1]} : vector<4x8x32xf32> to vector<1x8x32xf32>
    %88 = vector.shape_cast %87 : vector<1x8x32xf32> to vector<8x32xf32>
    %89 = vector.extract_strided_slice %84 {offsets = [2, 0, 0], sizes = [1, 8, 32], strides = [1, 1, 1]} : vector<4x8x32xf32> to vector<1x8x32xf32>
    %90 = vector.shape_cast %89 : vector<1x8x32xf32> to vector<8x32xf32>
    %91 = vector.extract_strided_slice %84 {offsets = [3, 0, 0], sizes = [1, 8, 32], strides = [1, 1, 1]} : vector<4x8x32xf32> to vector<1x8x32xf32>
    %92 = vector.shape_cast %91 : vector<1x8x32xf32> to vector<8x32xf32>
    %93 = tpu.concatenate %86, %88, %90, %92 in 1 : vector<8x32xf32>, vector<8x32xf32>, vector<8x32xf32>, vector<8x32xf32> -> vector<8x128xf32>
    %94 = vector.extract_strided_slice %32 {offsets = [8, 0], sizes = [8, 128], strides = [1, 1]} : vector<16x128xbf16> to vector<8x128xbf16>
    %95 = vector.extract_strided_slice %33 {offsets = [8, 0], sizes = [8, 128], strides = [1, 1]} : vector<16x128xbf16> to vector<8x128xbf16>
    %96 = vector.extract_strided_slice %34 {offsets = [8, 0], sizes = [8, 128], strides = [1, 1]} : vector<16x128xbf16> to vector<8x128xbf16>
    %c1 = arith.constant 1 : index
    %c0_22 = arith.constant 0 : index
    %c0_23 = arith.constant 0 : index
    %97 = vector.load %arg4[%c1, %c0_22, %c0_23] : memref<2x8x8xf32, #tpu.memory_space<vmem>>, vector<1x8x8xf32>
    %98 = vector.shape_cast %97 : vector<1x8x8xf32> to vector<8x8xf32>
    %99 = vector.extract_strided_slice %94 {offsets = [0, 0], sizes = [8, 32], strides = [1, 1]} : vector<8x128xbf16> to vector<8x32xbf16>
    %100 = vector.extract_strided_slice %94 {offsets = [0, 32], sizes = [8, 32], strides = [1, 1]} : vector<8x128xbf16> to vector<8x32xbf16>
    %101 = vector.extract_strided_slice %94 {offsets = [0, 64], sizes = [8, 32], strides = [1, 1]} : vector<8x128xbf16> to vector<8x32xbf16>
    %102 = vector.extract_strided_slice %94 {offsets = [0, 96], sizes = [8, 32], strides = [1, 1]} : vector<8x128xbf16> to vector<8x32xbf16>
    %103 = vector.shape_cast %99 : vector<8x32xbf16> to vector<1x8x32xbf16>
    %104 = vector.shape_cast %100 : vector<8x32xbf16> to vector<1x8x32xbf16>
    %105 = vector.shape_cast %101 : vector<8x32xbf16> to vector<1x8x32xbf16>
    %106 = vector.shape_cast %102 : vector<8x32xbf16> to vector<1x8x32xbf16>
    %107 = tpu.concatenate %103, %104, %105, %106 in 0 : vector<1x8x32xbf16>, vector<1x8x32xbf16>, vector<1x8x32xbf16>, vector<1x8x32xbf16> -> vector<4x8x32xbf16>
    %108 = vector.extract_strided_slice %95 {offsets = [0, 0], sizes = [8, 32], strides = [1, 1]} : vector<8x128xbf16> to vector<8x32xbf16>
    %109 = vector.extract_strided_slice %95 {offsets = [0, 32], sizes = [8, 32], strides = [1, 1]} : vector<8x128xbf16> to vector<8x32xbf16>
    %110 = vector.extract_strided_slice %95 {offsets = [0, 64], sizes = [8, 32], strides = [1, 1]} : vector<8x128xbf16> to vector<8x32xbf16>
    %111 = vector.extract_strided_slice %95 {offsets = [0, 96], sizes = [8, 32], strides = [1, 1]} : vector<8x128xbf16> to vector<8x32xbf16>
    %112 = vector.shape_cast %108 : vector<8x32xbf16> to vector<1x8x32xbf16>
    %113 = vector.shape_cast %109 : vector<8x32xbf16> to vector<1x8x32xbf16>
    %114 = vector.shape_cast %110 : vector<8x32xbf16> to vector<1x8x32xbf16>
    %115 = vector.shape_cast %111 : vector<8x32xbf16> to vector<1x8x32xbf16>
    %116 = tpu.concatenate %112, %113, %114, %115 in 0 : vector<1x8x32xbf16>, vector<1x8x32xbf16>, vector<1x8x32xbf16>, vector<1x8x32xbf16> -> vector<4x8x32xbf16>
    %117 = vector.extract_strided_slice %96 {offsets = [0, 0], sizes = [8, 32], strides = [1, 1]} : vector<8x128xbf16> to vector<8x32xbf16>
    %118 = vector.extract_strided_slice %96 {offsets = [0, 32], sizes = [8, 32], strides = [1, 1]} : vector<8x128xbf16> to vector<8x32xbf16>
    %119 = vector.extract_strided_slice %96 {offsets = [0, 64], sizes = [8, 32], strides = [1, 1]} : vector<8x128xbf16> to vector<8x32xbf16>
    %120 = vector.extract_strided_slice %96 {offsets = [0, 96], sizes = [8, 32], strides = [1, 1]} : vector<8x128xbf16> to vector<8x32xbf16>
    %121 = vector.shape_cast %117 : vector<8x32xbf16> to vector<1x8x32xbf16>
    %122 = vector.shape_cast %118 : vector<8x32xbf16> to vector<1x8x32xbf16>
    %123 = vector.shape_cast %119 : vector<8x32xbf16> to vector<1x8x32xbf16>
    %124 = vector.shape_cast %120 : vector<8x32xbf16> to vector<1x8x32xbf16>
    %125 = tpu.concatenate %121, %122, %123, %124 in 0 : vector<1x8x32xbf16>, vector<1x8x32xbf16>, vector<1x8x32xbf16>, vector<1x8x32xbf16> -> vector<4x8x32xbf16>
    "tpu.trace_start"() <{level = 10 : i32, message = "htd,hsd->hts"}> : () -> ()
    %cst_24 = arith.constant dense<0.000000e+00> : vector<4x8x8xf32>
    %126 = tpu.matmul %107, %116, %cst_24 {dimension_numbers = #tpu.dot_dimension_numbers<[2], [2], [1], [1], [0, 0, 0, 1, 1, 1], [0], [0]>} : vector<4x8x32xbf16>, vector<4x8x32xbf16>, vector<4x8x8xf32> -> vector<4x8x8xf32>
    "tpu.trace_stop"() : () -> ()
    %cst_25 = arith.constant 0.176776692 : f32
    %127 = vector.broadcast %cst_25 : f32 to vector<4x8x8xf32>
    %128 = arith.mulf %126, %127 : vector<4x8x8xf32>
    %129 = vector.shape_cast %98 : vector<8x8xf32> to vector<1x8x8xf32>
    %130 = vector.broadcast %129 : vector<1x8x8xf32> to vector<4x8x8xf32>
    %131 = arith.addf %128, %130 : vector<4x8x8xf32>
    %cst_26 = arith.constant dense<0xFF800000> : vector<4x8xf32>
    %132 = vector.multi_reduction <maximumf>, %131, %cst_26 [2] : vector<4x8x8xf32> to vector<4x8xf32>
    %133 = vector.shape_cast %132 : vector<4x8xf32> to vector<4x8x1xf32>
    %134 = vector.broadcast %133 : vector<4x8x1xf32> to vector<4x8x8xf32>
    %135 = arith.subf %131, %134 : vector<4x8x8xf32>
    %136 = math.exp %135 : vector<4x8x8xf32>
    %cst_27 = arith.constant dense<0.000000e+00> : vector<4x8xf32>
    %137 = vector.multi_reduction <add>, %136, %cst_27 [2] : vector<4x8x8xf32> to vector<4x8xf32>
    %138 = vector.shape_cast %137 : vector<4x8xf32> to vector<4x8x1xf32>
    %139 = tpu.reciprocal %138 {approx = true} : vector<4x8x1xf32> -> vector<4x8x1xf32>
    %140 = vector.broadcast %139 : vector<4x8x1xf32> to vector<4x8x8xf32>
    %141 = arith.mulf %136, %140 : vector<4x8x8xf32>
    %142 = arith.truncf %141 : vector<4x8x8xf32> to vector<4x8x8xbf16>
    "tpu.trace_start"() <{level = 10 : i32, message = "hts,hsd->htd"}> : () -> ()
    %cst_28 = arith.constant dense<0.000000e+00> : vector<4x8x32xf32>
    %143 = tpu.matmul %142, %125, %cst_28 {dimension_numbers = #tpu.dot_dimension_numbers<[2], [1], [1], [2], [0, 0, 0, 1, 1, 2], [0], [0]>} : vector<4x8x8xbf16>, vector<4x8x32xbf16>, vector<4x8x32xf32> -> vector<4x8x32xf32>
    "tpu.trace_stop"() : () -> ()
    %144 = vector.extract_strided_slice %143 {offsets = [0, 0, 0], sizes = [1, 8, 32], strides = [1, 1, 1]} : vector<4x8x32xf32> to vector<1x8x32xf32>
    %145 = vector.shape_cast %144 : vector<1x8x32xf32> to vector<8x32xf32>
    %146 = vector.extract_strided_slice %143 {offsets = [1, 0, 0], sizes = [1, 8, 32], strides = [1, 1, 1]} : vector<4x8x32xf32> to vector<1x8x32xf32>
    %147 = vector.shape_cast %146 : vector<1x8x32xf32> to vector<8x32xf32>
    %148 = vector.extract_strided_slice %143 {offsets = [2, 0, 0], sizes = [1, 8, 32], strides = [1, 1, 1]} : vector<4x8x32xf32> to vector<1x8x32xf32>
    %149 = vector.shape_cast %148 : vector<1x8x32xf32> to vector<8x32xf32>
    %150 = vector.extract_strided_slice %143 {offsets = [3, 0, 0], sizes = [1, 8, 32], strides = [1, 1, 1]} : vector<4x8x32xf32> to vector<1x8x32xf32>
    %151 = vector.shape_cast %150 : vector<1x8x32xf32> to vector<8x32xf32>
    %152 = tpu.concatenate %145, %147, %149, %151 in 1 : vector<8x32xf32>, vector<8x32xf32>, vector<8x32xf32>, vector<8x32xf32> -> vector<8x128xf32>
    %153 = tpu.concatenate %93, %152 in 0 : vector<8x128xf32>, vector<8x128xf32> -> vector<16x128xf32>
    %154 = arith.truncf %153 : vector<16x128xf32> to vector<16x128xbf16>
    %c0_29 = arith.constant 0 : index
    %c0_30 = arith.constant 0 : index
    %155 = vector.load %arg9[%c0_29, %c0_30] : memref<128x128xbf16, #tpu.memory_space<vmem>>, vector<128x128xbf16>
    %cst_31 = arith.constant dense<0.000000e+00> : vector<16x128xf32>
    %156 = tpu.matmul %154, %155, %cst_31 {dimension_numbers = #tpu.dot_dimension_numbers<[1], [0], [0], [1], [0, 0, 1, 1], [], []>} : vector<16x128xbf16>, vector<128x128xbf16>, vector<16x128xf32> -> vector<16x128xf32>
    %c0_32 = arith.constant 0 : index
    %c0_33 = arith.constant 0 : index
    %157 = vector.load %arg10[%c0_32, %c0_33] : memref<1x128xf32, #tpu.memory_space<vmem>>, vector<1x128xf32>
    %158 = vector.broadcast %157 : vector<1x128xf32> to vector<16x128xf32>
    %159 = arith.addf %156, %158 : vector<16x128xf32>
    %160 = arith.addf %0, %159 : vector<16x128xf32>
    %c0_34 = arith.constant 0 : index
    %c0_35 = arith.constant 0 : index
    %161 = vector.load %arg11[%c0_34, %c0_35] : memref<1x128xf32, #tpu.memory_space<vmem>>, vector<1x128xf32>
    %c0_36 = arith.constant 0 : index
    %c0_37 = arith.constant 0 : index
    %162 = vector.load %arg12[%c0_36, %c0_37] : memref<1x128xf32, #tpu.memory_space<vmem>>, vector<1x128xf32>
    %cst_38 = arith.constant dense<0.000000e+00> : vector<16xf32>
    %163 = vector.multi_reduction <add>, %160, %cst_38 [1] : vector<16x128xf32> to vector<16xf32>
    %164 = vector.shape_cast %163 : vector<16xf32> to vector<16x1xf32>
    %cst_39 = arith.constant 1.280000e+02 : f32
    %165 = vector.broadcast %cst_39 : f32 to vector<16x1xf32>
    %166 = arith.divf %164, %165 : vector<16x1xf32>
    %167 = vector.broadcast %166 : vector<16x1xf32> to vector<16x128xf32>
    %168 = arith.subf %160, %167 : vector<16x128xf32>
    %169 = arith.mulf %168, %168 : vector<16x128xf32>
    %cst_40 = arith.constant dense<0.000000e+00> : vector<16xf32>
    %170 = vector.multi_reduction <add>, %169, %cst_40 [1] : vector<16x128xf32> to vector<16xf32>
    %171 = vector.shape_cast %170 : vector<16xf32> to vector<16x1xf32>
    %cst_41 = arith.constant 1.270000e+02 : f32
    %172 = vector.broadcast %cst_41 : f32 to vector<16x1xf32>
    %173 = arith.divf %171, %172 : vector<16x1xf32>
    %174 = math.sqrt %173 : vector<16x1xf32>
    %175 = vector.broadcast %166 : vector<16x1xf32> to vector<16x128xf32>
    %176 = arith.subf %160, %175 : vector<16x128xf32>
    %177 = vector.broadcast %161 : vector<1x128xf32> to vector<16x128xf32>
    %178 = arith.mulf %177, %176 : vector<16x128xf32>
    %cst_42 = arith.constant 9.99999997E-7 : f32
    %179 = vector.broadcast %cst_42 : f32 to vector<16x1xf32>
    %180 = arith.addf %174, %179 : vector<16x1xf32>
    %181 = vector.broadcast %180 : vector<16x1xf32> to vector<16x128xf32>
    %182 = arith.divf %178, %181 : vector<16x128xf32>
    %183 = vector.broadcast %162 : vector<1x128xf32> to vector<16x128xf32>
    %184 = arith.addf %182, %183 : vector<16x128xf32>
    %185 = arith.truncf %184 : vector<16x128xf32> to vector<16x128xbf16>
    %c0_43 = arith.constant 0 : index
    %c0_44 = arith.constant 0 : index
    %186 = vector.load %arg13[%c0_43, %c0_44] : memref<128x128xbf16, #tpu.memory_space<vmem>>, vector<128x128xbf16>
    %cst_45 = arith.constant dense<0.000000e+00> : vector<16x128xf32>
    %187 = tpu.matmul %185, %186, %cst_45 {dimension_numbers = #tpu.dot_dimension_numbers<[1], [0], [0], [1], [0, 0, 1, 1], [], []>} : vector<16x128xbf16>, vector<128x128xbf16>, vector<16x128xf32> -> vector<16x128xf32>
    %c0_46 = arith.constant 0 : index
    %c0_47 = arith.constant 0 : index
    %188 = vector.load %arg14[%c0_46, %c0_47] : memref<1x128xf32, #tpu.memory_space<vmem>>, vector<1x128xf32>
    %189 = vector.broadcast %188 : vector<1x128xf32> to vector<16x128xf32>
    %190 = arith.addf %187, %189 : vector<16x128xf32>
    %191 = arith.truncf %190 : vector<16x128xf32> to vector<16x128xbf16>
    %c0_48 = arith.constant 0 : index
    %c0_49 = arith.constant 0 : index
    %192 = vector.load %arg2[%c0_48, %c0_49] : memref<32x128xf32, #tpu.memory_space<vmem>>, vector<32x128xf32>
    %193 = arith.truncf %192 : vector<32x128xf32> to vector<32x128xbf16>
    %c0_50 = arith.constant 0 : index
    %c0_51 = arith.constant 0 : index
    %194 = vector.load %arg15[%c0_50, %c0_51] : memref<128x256xbf16, #tpu.memory_space<vmem>>, vector<128x256xbf16>
    %cst_52 = arith.constant dense<0.000000e+00> : vector<32x256xf32>
    %195 = tpu.matmul %193, %194, %cst_52 {dimension_numbers = #tpu.dot_dimension_numbers<[1], [0], [0], [1], [0, 0, 1, 1], [], []>} : vector<32x128xbf16>, vector<128x256xbf16>, vector<32x256xf32> -> vector<32x256xf32>
    %c0_53 = arith.constant 0 : index
    %c0_54 = arith.constant 0 : index
    %196 = vector.load %arg16[%c0_53, %c0_54] : memref<1x256xf32, #tpu.memory_space<vmem>>, vector<1x256xf32>
    %197 = vector.broadcast %196 : vector<1x256xf32> to vector<32x256xf32>
    %198 = arith.addf %195, %197 : vector<32x256xf32>
    %199 = arith.truncf %198 : vector<32x256xf32> to vector<32x256xbf16>
    %200 = vector.extract_strided_slice %199 {offsets = [0, 0], sizes = [32, 128], strides = [1, 1]} : vector<32x256xbf16> to vector<32x128xbf16>
    %201 = vector.extract_strided_slice %199 {offsets = [0, 128], sizes = [32, 128], strides = [1, 1]} : vector<32x256xbf16> to vector<32x128xbf16>
    %202 = vector.extract_strided_slice %191 {offsets = [0, 0], sizes = [8, 128], strides = [1, 1]} : vector<16x128xbf16> to vector<8x128xbf16>
    %203 = vector.extract_strided_slice %200 {offsets = [0, 0], sizes = [16, 128], strides = [1, 1]} : vector<32x128xbf16> to vector<16x128xbf16>
    %204 = vector.extract_strided_slice %201 {offsets = [0, 0], sizes = [16, 128], strides = [1, 1]} : vector<32x128xbf16> to vector<16x128xbf16>
    %c0_55 = arith.constant 0 : index
    %c0_56 = arith.constant 0 : index
    %c0_57 = arith.constant 0 : index
    %205 = vector.load %arg3[%c0_55, %c0_56, %c0_57] : memref<2x1x16xf32, #tpu.memory_space<vmem>>, vector<1x1x16xf32>
    %206 = vector.shape_cast %205 : vector<1x1x16xf32> to vector<1x16xf32>
    %207 = vector.extract_strided_slice %202 {offsets = [0, 0], sizes = [8, 32], strides = [1, 1]} : vector<8x128xbf16> to vector<8x32xbf16>
    %208 = vector.extract_strided_slice %202 {offsets = [0, 32], sizes = [8, 32], strides = [1, 1]} : vector<8x128xbf16> to vector<8x32xbf16>
    %209 = vector.extract_strided_slice %202 {offsets = [0, 64], sizes = [8, 32], strides = [1, 1]} : vector<8x128xbf16> to vector<8x32xbf16>
    %210 = vector.extract_strided_slice %202 {offsets = [0, 96], sizes = [8, 32], strides = [1, 1]} : vector<8x128xbf16> to vector<8x32xbf16>
    %211 = vector.shape_cast %207 : vector<8x32xbf16> to vector<1x8x32xbf16>
    %212 = vector.shape_cast %208 : vector<8x32xbf16> to vector<1x8x32xbf16>
    %213 = vector.shape_cast %209 : vector<8x32xbf16> to vector<1x8x32xbf16>
    %214 = vector.shape_cast %210 : vector<8x32xbf16> to vector<1x8x32xbf16>
    %215 = tpu.concatenate %211, %212, %213, %214 in 0 : vector<1x8x32xbf16>, vector<1x8x32xbf16>, vector<1x8x32xbf16>, vector<1x8x32xbf16> -> vector<4x8x32xbf16>
    %216 = vector.extract_strided_slice %203 {offsets = [0, 0], sizes = [16, 32], strides = [1, 1]} : vector<16x128xbf16> to vector<16x32xbf16>
    %217 = vector.extract_strided_slice %203 {offsets = [0, 32], sizes = [16, 32], strides = [1, 1]} : vector<16x128xbf16> to vector<16x32xbf16>
    %218 = vector.extract_strided_slice %203 {offsets = [0, 64], sizes = [16, 32], strides = [1, 1]} : vector<16x128xbf16> to vector<16x32xbf16>
    %219 = vector.extract_strided_slice %203 {offsets = [0, 96], sizes = [16, 32], strides = [1, 1]} : vector<16x128xbf16> to vector<16x32xbf16>
    %220 = vector.shape_cast %216 : vector<16x32xbf16> to vector<1x16x32xbf16>
    %221 = vector.shape_cast %217 : vector<16x32xbf16> to vector<1x16x32xbf16>
    %222 = vector.shape_cast %218 : vector<16x32xbf16> to vector<1x16x32xbf16>
    %223 = vector.shape_cast %219 : vector<16x32xbf16> to vector<1x16x32xbf16>
    %224 = tpu.concatenate %220, %221, %222, %223 in 0 : vector<1x16x32xbf16>, vector<1x16x32xbf16>, vector<1x16x32xbf16>, vector<1x16x32xbf16> -> vector<4x16x32xbf16>
    %225 = vector.extract_strided_slice %204 {offsets = [0, 0], sizes = [16, 32], strides = [1, 1]} : vector<16x128xbf16> to vector<16x32xbf16>
    %226 = vector.extract_strided_slice %204 {offsets = [0, 32], sizes = [16, 32], strides = [1, 1]} : vector<16x128xbf16> to vector<16x32xbf16>
    %227 = vector.extract_strided_slice %204 {offsets = [0, 64], sizes = [16, 32], strides = [1, 1]} : vector<16x128xbf16> to vector<16x32xbf16>
    %228 = vector.extract_strided_slice %204 {offsets = [0, 96], sizes = [16, 32], strides = [1, 1]} : vector<16x128xbf16> to vector<16x32xbf16>
    %229 = vector.shape_cast %225 : vector<16x32xbf16> to vector<1x16x32xbf16>
    %230 = vector.shape_cast %226 : vector<16x32xbf16> to vector<1x16x32xbf16>
    %231 = vector.shape_cast %227 : vector<16x32xbf16> to vector<1x16x32xbf16>
    %232 = vector.shape_cast %228 : vector<16x32xbf16> to vector<1x16x32xbf16>
    %233 = tpu.concatenate %229, %230, %231, %232 in 0 : vector<1x16x32xbf16>, vector<1x16x32xbf16>, vector<1x16x32xbf16>, vector<1x16x32xbf16> -> vector<4x16x32xbf16>
    "tpu.trace_start"() <{level = 10 : i32, message = "htd,hsd->hts"}> : () -> ()
    %cst_58 = arith.constant dense<0.000000e+00> : vector<4x8x16xf32>
    %234 = tpu.matmul %215, %224, %cst_58 {dimension_numbers = #tpu.dot_dimension_numbers<[2], [2], [1], [1], [0, 0, 0, 1, 1, 1], [0], [0]>} : vector<4x8x32xbf16>, vector<4x16x32xbf16>, vector<4x8x16xf32> -> vector<4x8x16xf32>
    "tpu.trace_stop"() : () -> ()
    %cst_59 = arith.constant 0.176776692 : f32
    %235 = vector.broadcast %cst_59 : f32 to vector<4x8x16xf32>
    %236 = arith.mulf %234, %235 : vector<4x8x16xf32>
    %237 = vector.shape_cast %206 : vector<1x16xf32> to vector<1x1x16xf32>
    %238 = vector.broadcast %237 : vector<1x1x16xf32> to vector<4x8x16xf32>
    %239 = arith.addf %236, %238 : vector<4x8x16xf32>
    %cst_60 = arith.constant dense<0xFF800000> : vector<4x8xf32>
    %240 = vector.multi_reduction <maximumf>, %239, %cst_60 [2] : vector<4x8x16xf32> to vector<4x8xf32>
    %241 = vector.shape_cast %240 : vector<4x8xf32> to vector<4x8x1xf32>
    %242 = vector.broadcast %241 : vector<4x8x1xf32> to vector<4x8x16xf32>
    %243 = arith.subf %239, %242 : vector<4x8x16xf32>
    %244 = math.exp %243 : vector<4x8x16xf32>
    %cst_61 = arith.constant dense<0.000000e+00> : vector<4x8xf32>
    %245 = vector.multi_reduction <add>, %244, %cst_61 [2] : vector<4x8x16xf32> to vector<4x8xf32>
    %246 = vector.shape_cast %245 : vector<4x8xf32> to vector<4x8x1xf32>
    %247 = tpu.reciprocal %246 {approx = true} : vector<4x8x1xf32> -> vector<4x8x1xf32>
    %248 = vector.broadcast %247 : vector<4x8x1xf32> to vector<4x8x16xf32>
    %249 = arith.mulf %244, %248 : vector<4x8x16xf32>
    %250 = arith.truncf %249 : vector<4x8x16xf32> to vector<4x8x16xbf16>
    "tpu.trace_start"() <{level = 10 : i32, message = "hts,hsd->htd"}> : () -> ()
    %cst_62 = arith.constant dense<0.000000e+00> : vector<4x8x32xf32>
    %251 = tpu.matmul %250, %233, %cst_62 {dimension_numbers = #tpu.dot_dimension_numbers<[2], [1], [1], [2], [0, 0, 0, 1, 1, 2], [0], [0]>} : vector<4x8x16xbf16>, vector<4x16x32xbf16>, vector<4x8x32xf32> -> vector<4x8x32xf32>
    "tpu.trace_stop"() : () -> ()
    %252 = vector.extract_strided_slice %251 {offsets = [0, 0, 0], sizes = [1, 8, 32], strides = [1, 1, 1]} : vector<4x8x32xf32> to vector<1x8x32xf32>
    %253 = vector.shape_cast %252 : vector<1x8x32xf32> to vector<8x32xf32>
    %254 = vector.extract_strided_slice %251 {offsets = [1, 0, 0], sizes = [1, 8, 32], strides = [1, 1, 1]} : vector<4x8x32xf32> to vector<1x8x32xf32>
    %255 = vector.shape_cast %254 : vector<1x8x32xf32> to vector<8x32xf32>
    %256 = vector.extract_strided_slice %251 {offsets = [2, 0, 0], sizes = [1, 8, 32], strides = [1, 1, 1]} : vector<4x8x32xf32> to vector<1x8x32xf32>
    %257 = vector.shape_cast %256 : vector<1x8x32xf32> to vector<8x32xf32>
    %258 = vector.extract_strided_slice %251 {offsets = [3, 0, 0], sizes = [1, 8, 32], strides = [1, 1, 1]} : vector<4x8x32xf32> to vector<1x8x32xf32>
    %259 = vector.shape_cast %258 : vector<1x8x32xf32> to vector<8x32xf32>
    %260 = tpu.concatenate %253, %255, %257, %259 in 1 : vector<8x32xf32>, vector<8x32xf32>, vector<8x32xf32>, vector<8x32xf32> -> vector<8x128xf32>
    %261 = vector.extract_strided_slice %191 {offsets = [8, 0], sizes = [8, 128], strides = [1, 1]} : vector<16x128xbf16> to vector<8x128xbf16>
    %262 = vector.extract_strided_slice %200 {offsets = [16, 0], sizes = [16, 128], strides = [1, 1]} : vector<32x128xbf16> to vector<16x128xbf16>
    %263 = vector.extract_strided_slice %201 {offsets = [16, 0], sizes = [16, 128], strides = [1, 1]} : vector<32x128xbf16> to vector<16x128xbf16>
    %c1_63 = arith.constant 1 : index
    %c0_64 = arith.constant 0 : index
    %c0_65 = arith.constant 0 : index
    %264 = vector.load %arg3[%c1_63, %c0_64, %c0_65] : memref<2x1x16xf32, #tpu.memory_space<vmem>>, vector<1x1x16xf32>
    %265 = vector.shape_cast %264 : vector<1x1x16xf32> to vector<1x16xf32>
    %266 = vector.extract_strided_slice %261 {offsets = [0, 0], sizes = [8, 32], strides = [1, 1]} : vector<8x128xbf16> to vector<8x32xbf16>
    %267 = vector.extract_strided_slice %261 {offsets = [0, 32], sizes = [8, 32], strides = [1, 1]} : vector<8x128xbf16> to vector<8x32xbf16>
    %268 = vector.extract_strided_slice %261 {offsets = [0, 64], sizes = [8, 32], strides = [1, 1]} : vector<8x128xbf16> to vector<8x32xbf16>
    %269 = vector.extract_strided_slice %261 {offsets = [0, 96], sizes = [8, 32], strides = [1, 1]} : vector<8x128xbf16> to vector<8x32xbf16>
    %270 = vector.shape_cast %266 : vector<8x32xbf16> to vector<1x8x32xbf16>
    %271 = vector.shape_cast %267 : vector<8x32xbf16> to vector<1x8x32xbf16>
    %272 = vector.shape_cast %268 : vector<8x32xbf16> to vector<1x8x32xbf16>
    %273 = vector.shape_cast %269 : vector<8x32xbf16> to vector<1x8x32xbf16>
    %274 = tpu.concatenate %270, %271, %272, %273 in 0 : vector<1x8x32xbf16>, vector<1x8x32xbf16>, vector<1x8x32xbf16>, vector<1x8x32xbf16> -> vector<4x8x32xbf16>
    %275 = vector.extract_strided_slice %262 {offsets = [0, 0], sizes = [16, 32], strides = [1, 1]} : vector<16x128xbf16> to vector<16x32xbf16>
    %276 = vector.extract_strided_slice %262 {offsets = [0, 32], sizes = [16, 32], strides = [1, 1]} : vector<16x128xbf16> to vector<16x32xbf16>
    %277 = vector.extract_strided_slice %262 {offsets = [0, 64], sizes = [16, 32], strides = [1, 1]} : vector<16x128xbf16> to vector<16x32xbf16>
    %278 = vector.extract_strided_slice %262 {offsets = [0, 96], sizes = [16, 32], strides = [1, 1]} : vector<16x128xbf16> to vector<16x32xbf16>
    %279 = vector.shape_cast %275 : vector<16x32xbf16> to vector<1x16x32xbf16>
    %280 = vector.shape_cast %276 : vector<16x32xbf16> to vector<1x16x32xbf16>
    %281 = vector.shape_cast %277 : vector<16x32xbf16> to vector<1x16x32xbf16>
    %282 = vector.shape_cast %278 : vector<16x32xbf16> to vector<1x16x32xbf16>
    %283 = tpu.concatenate %279, %280, %281, %282 in 0 : vector<1x16x32xbf16>, vector<1x16x32xbf16>, vector<1x16x32xbf16>, vector<1x16x32xbf16> -> vector<4x16x32xbf16>
    %284 = vector.extract_strided_slice %263 {offsets = [0, 0], sizes = [16, 32], strides = [1, 1]} : vector<16x128xbf16> to vector<16x32xbf16>
    %285 = vector.extract_strided_slice %263 {offsets = [0, 32], sizes = [16, 32], strides = [1, 1]} : vector<16x128xbf16> to vector<16x32xbf16>
    %286 = vector.extract_strided_slice %263 {offsets = [0, 64], sizes = [16, 32], strides = [1, 1]} : vector<16x128xbf16> to vector<16x32xbf16>
    %287 = vector.extract_strided_slice %263 {offsets = [0, 96], sizes = [16, 32], strides = [1, 1]} : vector<16x128xbf16> to vector<16x32xbf16>
    %288 = vector.shape_cast %284 : vector<16x32xbf16> to vector<1x16x32xbf16>
    %289 = vector.shape_cast %285 : vector<16x32xbf16> to vector<1x16x32xbf16>
    %290 = vector.shape_cast %286 : vector<16x32xbf16> to vector<1x16x32xbf16>
    %291 = vector.shape_cast %287 : vector<16x32xbf16> to vector<1x16x32xbf16>
    %292 = tpu.concatenate %288, %289, %290, %291 in 0 : vector<1x16x32xbf16>, vector<1x16x32xbf16>, vector<1x16x32xbf16>, vector<1x16x32xbf16> -> vector<4x16x32xbf16>
    "tpu.trace_start"() <{level = 10 : i32, message = "htd,hsd->hts"}> : () -> ()
    %cst_66 = arith.constant dense<0.000000e+00> : vector<4x8x16xf32>
    %293 = tpu.matmul %274, %283, %cst_66 {dimension_numbers = #tpu.dot_dimension_numbers<[2], [2], [1], [1], [0, 0, 0, 1, 1, 1], [0], [0]>} : vector<4x8x32xbf16>, vector<4x16x32xbf16>, vector<4x8x16xf32> -> vector<4x8x16xf32>
    "tpu.trace_stop"() : () -> ()
    %cst_67 = arith.constant 0.176776692 : f32
    %294 = vector.broadcast %cst_67 : f32 to vector<4x8x16xf32>
    %295 = arith.mulf %293, %294 : vector<4x8x16xf32>
    %296 = vector.shape_cast %265 : vector<1x16xf32> to vector<1x1x16xf32>
    %297 = vector.broadcast %296 : vector<1x1x16xf32> to vector<4x8x16xf32>
    %298 = arith.addf %295, %297 : vector<4x8x16xf32>
    %cst_68 = arith.constant dense<0xFF800000> : vector<4x8xf32>
    %299 = vector.multi_reduction <maximumf>, %298, %cst_68 [2] : vector<4x8x16xf32> to vector<4x8xf32>
    %300 = vector.shape_cast %299 : vector<4x8xf32> to vector<4x8x1xf32>
    %301 = vector.broadcast %300 : vector<4x8x1xf32> to vector<4x8x16xf32>
    %302 = arith.subf %298, %301 : vector<4x8x16xf32>
    %303 = math.exp %302 : vector<4x8x16xf32>
    %cst_69 = arith.constant dense<0.000000e+00> : vector<4x8xf32>
    %304 = vector.multi_reduction <add>, %303, %cst_69 [2] : vector<4x8x16xf32> to vector<4x8xf32>
    %305 = vector.shape_cast %304 : vector<4x8xf32> to vector<4x8x1xf32>
    %306 = tpu.reciprocal %305 {approx = true} : vector<4x8x1xf32> -> vector<4x8x1xf32>
    %307 = vector.broadcast %306 : vector<4x8x1xf32> to vector<4x8x16xf32>
    %308 = arith.mulf %303, %307 : vector<4x8x16xf32>
    %309 = arith.truncf %308 : vector<4x8x16xf32> to vector<4x8x16xbf16>
    "tpu.trace_start"() <{level = 10 : i32, message = "hts,hsd->htd"}> : () -> ()
    %cst_70 = arith.constant dense<0.000000e+00> : vector<4x8x32xf32>
    %310 = tpu.matmul %309, %292, %cst_70 {dimension_numbers = #tpu.dot_dimension_numbers<[2], [1], [1], [2], [0, 0, 0, 1, 1, 2], [0], [0]>} : vector<4x8x16xbf16>, vector<4x16x32xbf16>, vector<4x8x32xf32> -> vector<4x8x32xf32>
    "tpu.trace_stop"() : () -> ()
    %311 = vector.extract_strided_slice %310 {offsets = [0, 0, 0], sizes = [1, 8, 32], strides = [1, 1, 1]} : vector<4x8x32xf32> to vector<1x8x32xf32>
    %312 = vector.shape_cast %311 : vector<1x8x32xf32> to vector<8x32xf32>
    %313 = vector.extract_strided_slice %310 {offsets = [1, 0, 0], sizes = [1, 8, 32], strides = [1, 1, 1]} : vector<4x8x32xf32> to vector<1x8x32xf32>
    %314 = vector.shape_cast %313 : vector<1x8x32xf32> to vector<8x32xf32>
    %315 = vector.extract_strided_slice %310 {offsets = [2, 0, 0], sizes = [1, 8, 32], strides = [1, 1, 1]} : vector<4x8x32xf32> to vector<1x8x32xf32>
    %316 = vector.shape_cast %315 : vector<1x8x32xf32> to vector<8x32xf32>
    %317 = vector.extract_strided_slice %310 {offsets = [3, 0, 0], sizes = [1, 8, 32], strides = [1, 1, 1]} : vector<4x8x32xf32> to vector<1x8x32xf32>
    %318 = vector.shape_cast %317 : vector<1x8x32xf32> to vector<8x32xf32>
    %319 = tpu.concatenate %312, %314, %316, %318 in 1 : vector<8x32xf32>, vector<8x32xf32>, vector<8x32xf32>, vector<8x32xf32> -> vector<8x128xf32>
    %320 = tpu.concatenate %260, %319 in 0 : vector<8x128xf32>, vector<8x128xf32> -> vector<16x128xf32>
    %321 = arith.truncf %320 : vector<16x128xf32> to vector<16x128xbf16>
    %c0_71 = arith.constant 0 : index
    %c0_72 = arith.constant 0 : index
    %322 = vector.load %arg17[%c0_71, %c0_72] : memref<128x128xbf16, #tpu.memory_space<vmem>>, vector<128x128xbf16>
    %cst_73 = arith.constant dense<0.000000e+00> : vector<16x128xf32>
    %323 = tpu.matmul %321, %322, %cst_73 {dimension_numbers = #tpu.dot_dimension_numbers<[1], [0], [0], [1], [0, 0, 1, 1], [], []>} : vector<16x128xbf16>, vector<128x128xbf16>, vector<16x128xf32> -> vector<16x128xf32>
    %c0_74 = arith.constant 0 : index
    %c0_75 = arith.constant 0 : index
    %324 = vector.load %arg18[%c0_74, %c0_75] : memref<1x128xf32, #tpu.memory_space<vmem>>, vector<1x128xf32>
    %325 = vector.broadcast %324 : vector<1x128xf32> to vector<16x128xf32>
    %326 = arith.addf %323, %325 : vector<16x128xf32>
    %327 = arith.addf %160, %326 : vector<16x128xf32>
    %c0_76 = arith.constant 0 : index
    %c0_77 = arith.constant 0 : index
    %328 = vector.load %arg19[%c0_76, %c0_77] : memref<1x128xf32, #tpu.memory_space<vmem>>, vector<1x128xf32>
    %c0_78 = arith.constant 0 : index
    %c0_79 = arith.constant 0 : index
    %329 = vector.load %arg20[%c0_78, %c0_79] : memref<1x128xf32, #tpu.memory_space<vmem>>, vector<1x128xf32>
    %cst_80 = arith.constant dense<0.000000e+00> : vector<16xf32>
    %330 = vector.multi_reduction <add>, %327, %cst_80 [1] : vector<16x128xf32> to vector<16xf32>
    %331 = vector.shape_cast %330 : vector<16xf32> to vector<16x1xf32>
    %cst_81 = arith.constant 1.280000e+02 : f32
    %332 = vector.broadcast %cst_81 : f32 to vector<16x1xf32>
    %333 = arith.divf %331, %332 : vector<16x1xf32>
    %334 = vector.broadcast %333 : vector<16x1xf32> to vector<16x128xf32>
    %335 = arith.subf %327, %334 : vector<16x128xf32>
    %336 = arith.mulf %335, %335 : vector<16x128xf32>
    %cst_82 = arith.constant dense<0.000000e+00> : vector<16xf32>
    %337 = vector.multi_reduction <add>, %336, %cst_82 [1] : vector<16x128xf32> to vector<16xf32>
    %338 = vector.shape_cast %337 : vector<16xf32> to vector<16x1xf32>
    %cst_83 = arith.constant 1.270000e+02 : f32
    %339 = vector.broadcast %cst_83 : f32 to vector<16x1xf32>
    %340 = arith.divf %338, %339 : vector<16x1xf32>
    %341 = math.sqrt %340 : vector<16x1xf32>
    %342 = vector.broadcast %333 : vector<16x1xf32> to vector<16x128xf32>
    %343 = arith.subf %327, %342 : vector<16x128xf32>
    %344 = vector.broadcast %328 : vector<1x128xf32> to vector<16x128xf32>
    %345 = arith.mulf %344, %343 : vector<16x128xf32>
    %cst_84 = arith.constant 9.99999997E-7 : f32
    %346 = vector.broadcast %cst_84 : f32 to vector<16x1xf32>
    %347 = arith.addf %341, %346 : vector<16x1xf32>
    %348 = vector.broadcast %347 : vector<16x1xf32> to vector<16x128xf32>
    %349 = arith.divf %345, %348 : vector<16x128xf32>
    %350 = vector.broadcast %329 : vector<1x128xf32> to vector<16x128xf32>
    %351 = arith.addf %349, %350 : vector<16x128xf32>
    %352 = arith.truncf %351 : vector<16x128xf32> to vector<16x128xbf16>
    %c0_85 = arith.constant 0 : index
    %c0_86 = arith.constant 0 : index
    %353 = vector.load %arg21[%c0_85, %c0_86] : memref<128x256xbf16, #tpu.memory_space<vmem>>, vector<128x256xbf16>
    %cst_87 = arith.constant dense<0.000000e+00> : vector<16x256xf32>
    %354 = tpu.matmul %352, %353, %cst_87 {dimension_numbers = #tpu.dot_dimension_numbers<[1], [0], [0], [1], [0, 0, 1, 1], [], []>} : vector<16x128xbf16>, vector<128x256xbf16>, vector<16x256xf32> -> vector<16x256xf32>
    %c0_88 = arith.constant 0 : index
    %c0_89 = arith.constant 0 : index
    %355 = vector.load %arg22[%c0_88, %c0_89] : memref<1x256xf32, #tpu.memory_space<vmem>>, vector<1x256xf32>
    %356 = vector.broadcast %355 : vector<1x256xf32> to vector<16x256xf32>
    %357 = arith.addf %354, %356 : vector<16x256xf32>
    %cst_90 = arith.constant 0.000000e+00 : f32
    %358 = vector.broadcast %cst_90 : f32 to vector<16x256xf32>
    %359 = arith.maximumf %357, %358 : vector<16x256xf32>
    %360 = arith.truncf %359 : vector<16x256xf32> to vector<16x256xbf16>
    %c0_91 = arith.constant 0 : index
    %c0_92 = arith.constant 0 : index
    %361 = vector.load %arg23[%c0_91, %c0_92] : memref<256x128xbf16, #tpu.memory_space<vmem>>, vector<256x128xbf16>
    %cst_93 = arith.constant dense<0.000000e+00> : vector<16x128xf32>
    %362 = tpu.matmul %360, %361, %cst_93 {dimension_numbers = #tpu.dot_dimension_numbers<[1], [0], [0], [1], [0, 0, 1, 1], [], []>} : vector<16x256xbf16>, vector<256x128xbf16>, vector<16x128xf32> -> vector<16x128xf32>
    %c0_94 = arith.constant 0 : index
    %c0_95 = arith.constant 0 : index
    %363 = vector.load %arg24[%c0_94, %c0_95] : memref<1x128xf32, #tpu.memory_space<vmem>>, vector<1x128xf32>
    %364 = vector.broadcast %363 : vector<1x128xf32> to vector<16x128xf32>
    %365 = arith.addf %362, %364 : vector<16x128xf32>
    %366 = arith.addf %327, %365 : vector<16x128xf32>
    %c0_96 = arith.constant 0 : index
    %c0_97 = arith.constant 0 : index
    %367 = vector.load %arg25[%c0_96, %c0_97] : memref<16x128xf32, #tpu.memory_space<vmem>>, vector<16x128xf32>
    tpu.vector_store %arg25[%c0_96, %c0_97], %366 {strides = array<i32>} : memref<16x128xf32, #tpu.memory_space<vmem>>, vector<16x128xf32>,
    return
  }
  func.func @transform_0(%arg0: i32) -> (i32, i32) {
    %c0_i32 = arith.constant 0 : i32
    %c0_i32_0 = arith.constant 0 : i32
    return %arg0, %c0_i32 : i32, i32
  }
  func.func @transform_1(%arg0: i32) -> (i32, i32) {
    %c0_i32 = arith.constant 0 : i32
    %c0_i32_0 = arith.constant 0 : i32
    return %arg0, %c0_i32 : i32, i32
  }
  func.func @transform_2(%arg0: i32) -> (i32, i32, i32) {
    %c0_i32 = arith.constant 0 : i32
    %c0_i32_0 = arith.constant 0 : i32
    %c0_i32_1 = arith.constant 0 : i32
    return %arg0, %c0_i32, %c0_i32_0 : i32, i32, i32
  }
  func.func @transform_3(%arg0: i32) -> (i32, i32, i32) {
    %c0_i32 = arith.constant 0 : i32
    %c0_i32_0 = arith.constant 0 : i32
    %c0_i32_1 = arith.constant 0 : i32
    return %arg0, %c0_i32, %c0_i32_0 : i32, i32, i32
  }
  func.func @transform_4(%arg0: i32) -> (i32, i32) {
    %c0_i32 = arith.constant 0 : i32
    %c0_i32_0 = arith.constant 0 : i32
    %c0_i32_1 = arith.constant 0 : i32
    return %c0_i32, %c0_i32_0 : i32, i32
  }
  func.func @transform_5(%arg0: i32) -> (i32, i32) {
    %c0_i32 = arith.constant 0 : i32
    %c0_i32_0 = arith.constant 0 : i32
    %c0_i32_1 = arith.constant 0 : i32
    return %c0_i32, %c0_i32_0 : i32, i32
  }
  func.func @transform_6(%arg0: i32) -> (i32, i32) {
    %c0_i32 = arith.constant 0 : i32
    %c0_i32_0 = arith.constant 0 : i32
    %c0_i32_1 = arith.constant 0 : i32
    return %c0_i32, %c0_i32_0 : i32, i32
  }
  func.func @transform_7(%arg0: i32) -> (i32, i32) {
    %c0_i32 = arith.constant 0 : i32
    %c0_i32_0 = arith.constant 0 : i32
    %c0_i32_1 = arith.constant 0 : i32
    return %c0_i32, %c0_i32_0 : i32, i32
  }
  func.func @transform_8(%arg0: i32) -> (i32, i32) {
    %c0_i32 = arith.constant 0 : i32
    %c0_i32_0 = arith.constant 0 : i32
    %c0_i32_1 = arith.constant 0 : i32
    return %c0_i32, %c0_i32_0 : i32, i32
  }
  func.func @transform_9(%arg0: i32) -> (i32, i32) {
    %c0_i32 = arith.constant 0 : i32
    %c0_i32_0 = arith.constant 0 : i32
    %c0_i32_1 = arith.constant 0 : i32
    return %c0_i32, %c0_i32_0 : i32, i32
  }
  func.func @transform_10(%arg0: i32) -> (i32, i32) {
    %c0_i32 = arith.constant 0 : i32
    %c0_i32_0 = arith.constant 0 : i32
    %c0_i32_1 = arith.constant 0 : i32
    return %c0_i32, %c0_i32_0 : i32, i32
  }
  func.func @transform_11(%arg0: i32) -> (i32, i32) {
    %c0_i32 = arith.constant 0 : i32
    %c0_i32_0 = arith.constant 0 : i32
    %c0_i32_1 = arith.constant 0 : i32
    return %c0_i32, %c0_i32_0 : i32, i32
  }
  func.func @transform_12(%arg0: i32) -> (i32, i32) {
    %c0_i32 = arith.constant 0 : i32
    %c0_i32_0 = arith.constant 0 : i32
    %c0_i32_1 = arith.constant 0 : i32
    return %c0_i32, %c0_i32_0 : i32, i32
  }
  func.func @transform_13(%arg0: i32) -> (i32, i32) {
    %c0_i32 = arith.constant 0 : i32
    %c0_i32_0 = arith.constant 0 : i32
    %c0_i32_1 = arith.constant 0 : i32
    return %c0_i32, %c0_i32_0 : i32, i32
  }
  func.func @transform_14(%arg0: i32) -> (i32, i32) {
    %c0_i32 = arith.constant 0 : i32
    %c0_i32_0 = arith.constant 0 : i32
    %c0_i32_1 = arith.constant 0 : i32
    return %c0_i32, %c0_i32_0 : i32, i32
  }
  func.func @transform_15(%arg0: i32) -> (i32, i32) {
    %c0_i32 = arith.constant 0 : i32
    %c0_i32_0 = arith.constant 0 : i32
    %c0_i32_1 = arith.constant 0 : i32
    return %c0_i32, %c0_i32_0 : i32, i32
  }
  func.func @transform_16(%arg0: i32) -> (i32, i32) {
    %c0_i32 = arith.constant 0 : i32
    %c0_i32_0 = arith.constant 0 : i32
    %c0_i32_1 = arith.constant 0 : i32
    return %c0_i32, %c0_i32_0 : i32, i32
  }
  func.func @transform_17(%arg0: i32) -> (i32, i32) {
    %c0_i32 = arith.constant 0 : i32
    %c0_i32_0 = arith.constant 0 : i32
    %c0_i32_1 = arith.constant 0 : i32
    return %c0_i32, %c0_i32_0 : i32, i32
  }
  func.func @transform_18(%arg0: i32) -> (i32, i32) {
    %c0_i32 = arith.constant 0 : i32
    %c0_i32_0 = arith.constant 0 : i32
    %c0_i32_1 = arith.constant 0 : i32
    return %c0_i32, %c0_i32_0 : i32, i32
  }
  func.func @transform_19(%arg0: i32) -> (i32, i32) {
    %c0_i32 = arith.constant 0 : i32
    %c0_i32_0 = arith.constant 0 : i32
    %c0_i32_1 = arith.constant 0 : i32
    return %c0_i32, %c0_i32_0 : i32, i32
  }
  func.func @transform_20(%arg0: i32) -> (i32, i32) {
    %c0_i32 = arith.constant 0 : i32
    %c0_i32_0 = arith.constant 0 : i32
    %c0_i32_1 = arith.constant 0 : i32
    return %c0_i32, %c0_i32_0 : i32, i32
  }
  func.func @transform_21(%arg0: i32) -> (i32, i32) {
    %c0_i32 = arith.constant 0 : i32
    %c0_i32_0 = arith.constant 0 : i32
    %c0_i32_1 = arith.constant 0 : i32
    return %c0_i32, %c0_i32_0 : i32, i32
  }
  func.func @transform_22(%arg0: i32) -> (i32, i32) {
    %c0_i32 = arith.constant 0 : i32
    %c0_i32_0 = arith.constant 0 : i32
    %c0_i32_1 = arith.constant 0 : i32
    return %c0_i32, %c0_i32_0 : i32, i32
  }
  func.func @transform_23(%arg0: i32) -> (i32, i32) {
    %c0_i32 = arith.constant 0 : i32
    %c0_i32_0 = arith.constant 0 : i32
    %c0_i32_1 = arith.constant 0 : i32
    return %c0_i32, %c0_i32_0 : i32, i32
  }
  func.func @transform_24(%arg0: i32) -> (i32, i32) {
    %c0_i32 = arith.constant 0 : i32
    %c0_i32_0 = arith.constant 0 : i32
    return %arg0, %c0_i32 : i32, i32
  }
}

</mosaic_0001>

<llo_original>
// kernel: tpu_custom_call.1
$region0: #{tpu_custom_call.1}
  #allocation0 [shape = 'u32[]', space=smem, size = 0x4, offset = 0x4, fixed_abs, tag = 'smem constant byte address 0x4 - core index']
  #allocation1 [shape = 'u32[144,128]{1,0:T(1,128)}', space=vmem, size = 0x12000, scoped, tag = 'internal scratch']
  %s0 = inlined_call_operand.hbm [shape: f32[32,128], index: 0, kind: input, shape index: {}]
  %s1 = inlined_call_operand.hbm [shape: f32[64,128], index: 1, kind: input, shape index: {}]
  %s2 = inlined_call_operand.vmem [shape: f32[4,1,16], index: 2, kind: input, shape index: {}]
  %s3 = inlined_call_operand.hbm [shape: f32[4,8,8], index: 3, kind: input, shape index: {}]
  %s4 = inlined_call_operand.vmem [shape: f32[1,128], index: 4, kind: input, shape index: {}]
  %s5 = inlined_call_operand.vmem [shape: f32[1,128], index: 5, kind: input, shape index: {}]
  %s6 = inlined_call_operand.hbm [shape: bf16[128,384], index: 6, kind: input, shape index: {}]
  %s7 = inlined_call_operand.vmem [shape: f32[1,384], index: 7, kind: input, shape index: {}]
  %s8 = inlined_call_operand.hbm [shape: bf16[128,128], index: 8, kind: input, shape index: {}]
  %s9 = inlined_call_operand.vmem [shape: f32[1,128], index: 9, kind: input, shape index: {}]
  %s10 = inlined_call_operand.vmem [shape: f32[1,128], index: 10, kind: input, shape index: {}]
  %s11 = inlined_call_operand.vmem [shape: f32[1,128], index: 11, kind: input, shape index: {}]
  %s12 = inlined_call_operand.hbm [shape: bf16[128,128], index: 12, kind: input, shape index: {}]
  %s13 = inlined_call_operand.vmem [shape: f32[1,128], index: 13, kind: input, shape index: {}]
  %s14 = inlined_call_operand.hbm [shape: bf16[128,256], index: 14, kind: input, shape index: {}]
  %s15 = inlined_call_operand.vmem [shape: f32[1,256], index: 15, kind: input, shape index: {}]
  %s16 = inlined_call_operand.hbm [shape: bf16[128,128], index: 16, kind: input, shape index: {}]
  %s17 = inlined_call_operand.vmem [shape: f32[1,128], index: 17, kind: input, shape index: {}]
  %s18 = inlined_call_operand.vmem [shape: f32[1,128], index: 18, kind: input, shape index: {}]
  %s19 = inlined_call_operand.vmem [shape: f32[1,128], index: 19, kind: input, shape index: {}]
  %s20 = inlined_call_operand.hbm [shape: bf16[128,256], index: 20, kind: input, shape index: {}]
  %s21 = inlined_call_operand.vmem [shape: f32[1,256], index: 21, kind: input, shape index: {}]
  %s22 = inlined_call_operand.hbm [shape: bf16[256,128], index: 22, kind: input, shape index: {}]
  %s23 = inlined_call_operand.vmem [shape: f32[1,128], index: 23, kind: input, shape index: {}]
  %s24 = inlined_call_operand.hbm [shape: f32[32,128], index: 24, kind: output, shape index: {}]
  %s25 = sld [smem:[#allocation0]]
  $region169: #{tpu_custom_call.1} parent=0
    _
  %s27 = ssub.s32 1, %s25
  %s28 = scalar_select 0, %s27, %s25
  $region1: #{tpu_custom_call.1} parent=0
    #allocation2 [shape = 'u8[16384]{0}', space=vmem, size = 0x4000, scoped, tag = 'input window, operand 0']
    #allocation3 [shape = 's32[2]{0}', space=sflag, size = 0x8, scoped, tag = 'scoped memory for tpu_custom_call.1']
    #allocation4 [shape = 's32[2]{0}', space=sflag, size = 0x8, scoped, tag = 'scoped memory for tpu_custom_call.1']
    #allocation5 [shape = 'u8[32768]{0}', space=vmem, size = 0x8000, scoped, tag = 'input window, operand 1']
    #allocation6 [shape = 's32[2]{0}', space=sflag, size = 0x8, scoped, tag = 'scoped memory for tpu_custom_call.1']
    #allocation7 [shape = 'u8[16384]{0}', space=vmem, size = 0x4000, scoped, tag = 'input window, operand 3']
    #allocation8 [shape = 'u8[98304]{0}', space=vmem, size = 0x18000, scoped, tag = 'input window, operand 6, single buffered']
    #allocation9 [shape = 's32[1]{0}', space=sflag, size = 0x4, scoped, tag = 'scoped memory for tpu_custom_call.1']
    #allocation10 [shape = 'u8[32768]{0}', space=vmem, size = 0x8000, scoped, tag = 'input window, operand 8, single buffered']
    #allocation11 [shape = 'u8[32768]{0}', space=vmem, size = 0x8000, scoped, tag = 'input window, operand 12, single buffered']
    #allocation12 [shape = 's32[1]{0}', space=sflag, size = 0x4, scoped, tag = 'scoped memory for tpu_custom_call.1']
    #allocation13 [shape = 'u8[65536]{0}', space=vmem, size = 0x10000, scoped, tag = 'input window, operand 14, single buffered']
    #allocation14 [shape = 'u8[32768]{0}', space=vmem, size = 0x8000, scoped, tag = 'input window, operand 16, single buffered']
    #allocation15 [shape = 's32[1]{0}', space=sflag, size = 0x4, scoped, tag = 'scoped memory for tpu_custom_call.1']
    #allocation16 [shape = 'u8[65536]{0}', space=vmem, size = 0x10000, scoped, tag = 'input window, operand 20, single buffered']
    #allocation17 [shape = 'u8[65536]{0}', space=vmem, size = 0x10000, scoped, tag = 'input window, operand 22, single buffered']
    #allocation18 [shape = 's32[1]{0}', space=sflag, size = 0x4, scoped, tag = 'scoped memory for tpu_custom_call.1']
    #allocation19 [shape = 'u8[16384]{0}', space=vmem, size = 0x4000, scoped, tag = 'output window, operand 0']
    %29 = vsyncpa [#allocation3], 0
    %s30 = scalar_lea.sflag [#allocation3], 1
    %31 = vsyncpa %s30, 0
    %32 = vsyncpa [#allocation6], 0
    %s33 = scalar_lea.sflag [#allocation6], 1
    %34 = vsyncpa %s33, 0
    %35 = vsyncpa [#allocation9], 0
    %36 = vsyncpa [#allocation12], 0
    %37 = vsyncpa [#allocation15], 0
    %38 = vsyncpa [#allocation18], 0
    %39 = vsyncpa [#allocation4], 0
    %s40 = scalar_lea.sflag [#allocation4], 1
    %41 = vsyncpa %s40, 0
    loop: start=0, step=1, limit=4
    $region2: #{tpu_custom_call.1} parent=1 // loop_pre_header
      _
    $region3: #{tpu_custom_call.1} parent=1 // loop_header
      %s43 = sphi 0, %s47
      %p44 = scmp.ge.s32.totalorder %s43, 4
      %s53 = sphi 0, %s55
      %s56 = sphi 0, %s53
      %s57 = sphi 0, %s56
      %s73 = sphi 0, %s57
      %s79 = sphi 0, %s81
      %s82 = sphi 0, %s79
      %s83 = sphi 0, %s82
      %s99 = sphi 0, %s83
      %s105 = sphi 0, %s107
      %s108 = sphi 0, %s105
      %s109 = sphi 0, %s108
      %s125 = sphi 0, %s109
      %s131 = sphi 0, %s133
      %s134 = sphi 0, %s131
      %s135 = sphi 0, %s134
      %s151 = sphi 0, %s135
      %s155 = sphi 0, %s155
      %s157 = sphi 0, %s155
      %s158 = sphi 0, %s157
      %s172 = sphi 0, %s158
      %s176 = sphi 0, %s176
      %s178 = sphi 0, %s176
      %s179 = sphi 0, %s178
      %s193 = sphi 0, %s179
      %s197 = sphi 0, %s197
      %s199 = sphi 0, %s197
      %s200 = sphi 0, %s199
      %s214 = sphi 0, %s200
      %s218 = sphi 0, %s218
      %s220 = sphi 0, %s218
      %s221 = sphi 0, %s220
      %s235 = sphi 0, %s221
      %s239 = sphi 0, %s239
      %s241 = sphi 0, %s239
      %s242 = sphi 0, %s241
      %s256 = sphi 0, %s242
      %s260 = sphi 0, %s260
      %s262 = sphi 0, %s260
      %s263 = sphi 0, %s262
      %s277 = sphi 0, %s263
      %s281 = sphi 0, %s281
      %s283 = sphi 0, %s281
      %s284 = sphi 0, %s283
      %s298 = sphi 0, %s284
      %s302 = sphi 0, %s302
      %s304 = sphi 0, %s302
      %s305 = sphi 0, %s304
      %s319 = sphi 0, %s305
      %s323 = sphi 0, %s323
      %s325 = sphi 0, %s323
      %s326 = sphi 0, %s325
      %s340 = sphi 0, %s326
      %s344 = sphi 0, %s344
      %s346 = sphi 0, %s344
      %s347 = sphi 0, %s346
      %s361 = sphi 0, %s347
      %s365 = sphi 0, %s365
      %s367 = sphi 0, %s365
      %s368 = sphi 0, %s367
      %s382 = sphi 0, %s368
      %s386 = sphi 0, %s386
      %s388 = sphi 0, %s386
      %s389 = sphi 0, %s388
      %s403 = sphi 0, %s389
      %s407 = sphi 0, %s407
      %s409 = sphi 0, %s407
      %s410 = sphi 0, %s409
      %s424 = sphi 0, %s410
      %s428 = sphi 0, %s428
      %s430 = sphi 0, %s428
      %s431 = sphi 0, %s430
      %s445 = sphi 0, %s431
      %s449 = sphi 0, %s449
      %s451 = sphi 0, %s449
      %s452 = sphi 0, %s451
      %s466 = sphi 0, %s452
      %s470 = sphi 0, %s470
      %s472 = sphi 0, %s470
      %s473 = sphi 0, %s472
      %s487 = sphi 0, %s473
      %s491 = sphi 0, %s491
      %s493 = sphi 0, %s491
      %s494 = sphi 0, %s493
      %s508 = sphi 0, %s494
      %s512 = sphi 0, %s512
      %s514 = sphi 0, %s512
      %s515 = sphi 0, %s514
      %s529 = sphi 0, %s515
      %s533 = sphi 0, %s533
      %s535 = sphi 0, %s533
      %s536 = sphi 0, %s535
      %s550 = sphi 0, %s536
      %s554 = sphi 0, %s554
      %s556 = sphi 0, %s554
      %s557 = sphi 0, %s556
      %s571 = sphi 0, %s557
      %s577 = sphi 0, %s579
      %s580 = sphi 0, %s577
      %s581 = sphi 0, %s580
      %s597 = sphi 0, %s581
    $region4: #{tpu_custom_call.1} parent=1 // loop_header_branch
      %46 = sbr.rel (%p44) target = $region8
    $region5: #{tpu_custom_call.1} parent=1 // loop_body
      %s48 = ssub.s32 %s43, 1
      %s49 = ssub.s32 %s43, 2
      %s50 = sadd.s32 %s43, 1
      %s51 = ssub.s32 %s43, %s50
      %p52 = scmp.eq.s32.totalorder %s51, 0
      %s54 = sadd.s32 %s53, 1
      %s55 = scalar_select %p52, %s53, %s54
      %p58 = pneg %p52
      %p59 = scmp.eq.s32.totalorder %s43, 1
      %p60 = por %p58, %p59
      %p61 = scmp.ne.s32.totalorder %s53, %s56
      %p62 = scmp.eq.s32.totalorder %s43, 0
      %p63 = por %p61, %p62
      %p64 = scmp.ne.s32.totalorder %s53, %s56
      %p65 = scmp.eq.s32.totalorder %s48, 1
      %p66 = por %p64, %p65
      %p67 = scmp.ne.s32.totalorder %s56, %s57
      %p68 = scmp.eq.s32.totalorder %s48, 0
      %p69 = por %p67, %p68
      %p70 = scmp.ne.s32.totalorder %s56, %s57
      %p71 = scmp.eq.s32.totalorder %s49, 1
      %p72 = por %p70, %p71
      %p74 = scmp.ne.s32.totalorder %s57, %s73
      %p75 = scmp.eq.s32.totalorder %s49, 0
      %p76 = por %p74, %p75
      %s77 = ssub.s32 %s43, %s50
      %p78 = scmp.eq.s32.totalorder %s77, 0
      %s80 = sadd.s32 %s79, 1
      %s81 = scalar_select %p78, %s79, %s80
      %p84 = pneg %p78
      %p85 = scmp.eq.s32.totalorder %s43, 1
      %p86 = por %p84, %p85
      %p87 = scmp.ne.s32.totalorder %s79, %s82
      %p88 = scmp.eq.s32.totalorder %s43, 0
      %p89 = por %p87, %p88
      %p90 = scmp.ne.s32.totalorder %s79, %s82
      %p91 = scmp.eq.s32.totalorder %s48, 1
      %p92 = por %p90, %p91
      %p93 = scmp.ne.s32.totalorder %s82, %s83
      %p94 = scmp.eq.s32.totalorder %s48, 0
      %p95 = por %p93, %p94
      %p96 = scmp.ne.s32.totalorder %s82, %s83
      %p97 = scmp.eq.s32.totalorder %s49, 1
      %p98 = por %p96, %p97
      %p100 = scmp.ne.s32.totalorder %s83, %s99
      %p101 = scmp.eq.s32.totalorder %s49, 0
      %p102 = por %p100, %p101
      %s103 = ssub.s32 %s43, %s50
      %p104 = scmp.eq.s32.totalorder %s103, 0
      %s106 = sadd.s32 %s105, 1
      %s107 = scalar_select %p104, %s105, %s106
      %p110 = pneg %p104
      %p111 = scmp.eq.s32.totalorder %s43, 1
      %p112 = por %p110, %p111
      %p113 = scmp.ne.s32.totalorder %s105, %s108
      %p114 = scmp.eq.s32.totalorder %s43, 0
      %p115 = por %p113, %p114
      %p116 = scmp.ne.s32.totalorder %s105, %s108
      %p117 = scmp.eq.s32.totalorder %s48, 1
      %p118 = por %p116, %p117
      %p119 = scmp.ne.s32.totalorder %s108, %s109
      %p120 = scmp.eq.s32.totalorder %s48, 0
      %p121 = por %p119, %p120
      %p122 = scmp.ne.s32.totalorder %s108, %s109
      %p123 = scmp.eq.s32.totalorder %s49, 1
      %p124 = por %p122, %p123
      %p126 = scmp.ne.s32.totalorder %s109, %s125
      %p127 = scmp.eq.s32.totalorder %s49, 0
      %p128 = por %p126, %p127
      %s129 = ssub.s32 %s43, %s50
      %p130 = scmp.eq.s32.totalorder %s129, 0
      %s132 = sadd.s32 %s131, 1
      %s133 = scalar_select %p130, %s131, %s132
      %p136 = pneg %p130
      %p137 = scmp.eq.s32.totalorder %s43, 1
      %p138 = por %p136, %p137
      %p139 = scmp.ne.s32.totalorder %s131, %s134
      %p140 = scmp.eq.s32.totalorder %s43, 0
      %p141 = por %p139, %p140
      %p142 = scmp.ne.s32.totalorder %s131, %s134
      %p143 = scmp.eq.s32.totalorder %s48, 1
      %p144 = por %p142, %p143
      %p145 = scmp.ne.s32.totalorder %s134, %s135
      %p146 = scmp.eq.s32.totalorder %s48, 0
      %p147 = por %p145, %p146
      %p148 = scmp.ne.s32.totalorder %s134, %s135
      %p149 = scmp.eq.s32.totalorder %s49, 1
      %p150 = por %p148, %p149
      %p152 = scmp.ne.s32.totalorder %s135, %s151
      %p153 = scmp.eq.s32.totalorder %s49, 0
      %p154 = por %p152, %p153
      %s156 = sadd.s32 %s155, 1
      %p159 = scmp.eq.s32.totalorder %s43, 1
      %p160 = scmp.ne.s32.totalorder %s155, %s157
      %p161 = scmp.eq.s32.totalorder %s43, 0
      %p162 = por %p160, %p161
      %p163 = scmp.ne.s32.totalorder %s155, %s157
      %p164 = scmp.eq.s32.totalorder %s48, 1
      %p165 = por %p163, %p164
      %p166 = scmp.ne.s32.totalorder %s157, %s158
      %p167 = scmp.eq.s32.totalorder %s48, 0
      %p168 = por %p166, %p167
      %p169 = scmp.ne.s32.totalorder %s157, %s158
      %p170 = scmp.eq.s32.totalorder %s49, 1
      %p171 = por %p169, %p170
      %p173 = scmp.ne.s32.totalorder %s158, %s172
      %p174 = scmp.eq.s32.totalorder %s49, 0
      %p175 = por %p173, %p174
      %s177 = sadd.s32 %s176, 1
      %p180 = scmp.eq.s32.totalorder %s43, 1
      %p181 = scmp.ne.s32.totalorder %s176, %s178
      %p182 = scmp.eq.s32.totalorder %s43, 0
      %p183 = por %p181, %p182
      %p184 = scmp.ne.s32.totalorder %s176, %s178
      %p185 = scmp.eq.s32.totalorder %s48, 1
      %p186 = por %p184, %p185
      %p187 = scmp.ne.s32.totalorder %s178, %s179
      %p188 = scmp.eq.s32.totalorder %s48, 0
      %p189 = por %p187, %p188
      %p190 = scmp.ne.s32.totalorder %s178, %s179
      %p191 = scmp.eq.s32.totalorder %s49, 1
      %p192 = por %p190, %p191
      %p194 = scmp.ne.s32.totalorder %s179, %s193
      %p195 = scmp.eq.s32.totalorder %s49, 0
      %p196 = por %p194, %p195
      %s198 = sadd.s32 %s197, 1
      %p201 = scmp.eq.s32.totalorder %s43, 1
      %p202 = scmp.ne.s32.totalorder %s197, %s199
      %p203 = scmp.eq.s32.totalorder %s43, 0
      %p204 = por %p202, %p203
      %p205 = scmp.ne.s32.totalorder %s197, %s199
      %p206 = scmp.eq.s32.totalorder %s48, 1
      %p207 = por %p205, %p206
      %p208 = scmp.ne.s32.totalorder %s199, %s200
      %p209 = scmp.eq.s32.totalorder %s48, 0
      %p210 = por %p208, %p209
      %p211 = scmp.ne.s32.totalorder %s199, %s200
      %p212 = scmp.eq.s32.totalorder %s49, 1
      %p213 = por %p211, %p212
      %p215 = scmp.ne.s32.totalorder %s200, %s214
      %p216 = scmp.eq.s32.totalorder %s49, 0
      %p217 = por %p215, %p216
      %s219 = sadd.s32 %s218, 1
      %p222 = scmp.eq.s32.totalorder %s43, 1
      %p223 = scmp.ne.s32.totalorder %s218, %s220
      %p224 = scmp.eq.s32.totalorder %s43, 0
      %p225 = por %p223, %p224
      %p226 = scmp.ne.s32.totalorder %s218, %s220
      %p227 = scmp.eq.s32.totalorder %s48, 1
      %p228 = por %p226, %p227
      %p229 = scmp.ne.s32.totalorder %s220, %s221
      %p230 = scmp.eq.s32.totalorder %s48, 0
      %p231 = por %p229, %p230
      %p232 = scmp.ne.s32.totalorder %s220, %s221
      %p233 = scmp.eq.s32.totalorder %s49, 1
      %p234 = por %p232, %p233
      %p236 = scmp.ne.s32.totalorder %s221, %s235
      %p237 = scmp.eq.s32.totalorder %s49, 0
      %p238 = por %p236, %p237
      %s240 = sadd.s32 %s239, 1
      %p243 = scmp.eq.s32.totalorder %s43, 1
      %p244 = scmp.ne.s32.totalorder %s239, %s241
      %p245 = scmp.eq.s32.totalorder %s43, 0
      %p246 = por %p244, %p245
      %p247 = scmp.ne.s32.totalorder %s239, %s241
      %p248 = scmp.eq.s32.totalorder %s48, 1
      %p249 = por %p247, %p248
      %p250 = scmp.ne.s32.totalorder %s241, %s242
      %p251 = scmp.eq.s32.totalorder %s48, 0
      %p252 = por %p250, %p251
      %p253 = scmp.ne.s32.totalorder %s241, %s242
      %p254 = scmp.eq.s32.totalorder %s49, 1
      %p255 = por %p253, %p254
      %p257 = scmp.ne.s32.totalorder %s242, %s256
      %p258 = scmp.eq.s32.totalorder %s49, 0
      %p259 = por %p257, %p258
      %s261 = sadd.s32 %s260, 1
      %p264 = scmp.eq.s32.totalorder %s43, 1
      %p265 = scmp.ne.s32.totalorder %s260, %s262
      %p266 = scmp.eq.s32.totalorder %s43, 0
      %p267 = por %p265, %p266
      %p268 = scmp.ne.s32.totalorder %s260, %s262
      %p269 = scmp.eq.s32.totalorder %s48, 1
      %p270 = por %p268, %p269
      %p271 = scmp.ne.s32.totalorder %s262, %s263
      %p272 = scmp.eq.s32.totalorder %s48, 0
      %p273 = por %p271, %p272
      %p274 = scmp.ne.s32.totalorder %s262, %s263
      %p275 = scmp.eq.s32.totalorder %s49, 1
      %p276 = por %p274, %p275
      %p278 = scmp.ne.s32.totalorder %s263, %s277
      %p279 = scmp.eq.s32.totalorder %s49, 0
      %p280 = por %p278, %p279
      %s282 = sadd.s32 %s281, 1
      %p285 = scmp.eq.s32.totalorder %s43, 1
      %p286 = scmp.ne.s32.totalorder %s281, %s283
      %p287 = scmp.eq.s32.totalorder %s43, 0
      %p288 = por %p286, %p287
      %p289 = scmp.ne.s32.totalorder %s281, %s283
      %p290 = scmp.eq.s32.totalorder %s48, 1
      %p291 = por %p289, %p290
      %p292 = scmp.ne.s32.totalorder %s283, %s284
      %p293 = scmp.eq.s32.totalorder %s48, 0
      %p294 = por %p292, %p293
      %p295 = scmp.ne.s32.totalorder %s283, %s284
      %p296 = scmp.eq.s32.totalorder %s49, 1
      %p297 = por %p295, %p296
      %p299 = scmp.ne.s32.totalorder %s284, %s298
      %p300 = scmp.eq.s32.totalorder %s49, 0
      %p301 = por %p299, %p300
      %s303 = sadd.s32 %s302, 1
      %p306 = scmp.eq.s32.totalorder %s43, 1
      %p307 = scmp.ne.s32.totalorder %s302, %s304
      %p308 = scmp.eq.s32.totalorder %s43, 0
      %p309 = por %p307, %p308
      %p310 = scmp.ne.s32.totalorder %s302, %s304
      %p311 = scmp.eq.s32.totalorder %s48, 1
      %p312 = por %p310, %p311
      %p313 = scmp.ne.s32.totalorder %s304, %s305
      %p314 = scmp.eq.s32.totalorder %s48, 0
      %p315 = por %p313, %p314
      %p316 = scmp.ne.s32.totalorder %s304, %s305
      %p317 = scmp.eq.s32.totalorder %s49, 1
      %p318 = por %p316, %p317
      %p320 = scmp.ne.s32.totalorder %s305, %s319
      %p321 = scmp.eq.s32.totalorder %s49, 0
      %p322 = por %p320, %p321
      %s324 = sadd.s32 %s323, 1
      %p327 = scmp.eq.s32.totalorder %s43, 1
      %p328 = scmp.ne.s32.totalorder %s323, %s325
      %p329 = scmp.eq.s32.totalorder %s43, 0
      %p330 = por %p328, %p329
      %p331 = scmp.ne.s32.totalorder %s323, %s325
      %p332 = scmp.eq.s32.totalorder %s48, 1
      %p333 = por %p331, %p332
      %p334 = scmp.ne.s32.totalorder %s325, %s326
      %p335 = scmp.eq.s32.totalorder %s48, 0
      %p336 = por %p334, %p335
      %p337 = scmp.ne.s32.totalorder %s325, %s326
      %p338 = scmp.eq.s32.totalorder %s49, 1
      %p339 = por %p337, %p338
      %p341 = scmp.ne.s32.totalorder %s326, %s340
      %p342 = scmp.eq.s32.totalorder %s49, 0
      %p343 = por %p341, %p342
      %s345 = sadd.s32 %s344, 1
      %p348 = scmp.eq.s32.totalorder %s43, 1
      %p349 = scmp.ne.s32.totalorder %s344, %s346
      %p350 = scmp.eq.s32.totalorder %s43, 0
      %p351 = por %p349, %p350
      %p352 = scmp.ne.s32.totalorder %s344, %s346
      %p353 = scmp.eq.s32.totalorder %s48, 1
      %p354 = por %p352, %p353
      %p355 = scmp.ne.s32.totalorder %s346, %s347
      %p356 = scmp.eq.s32.totalorder %s48, 0
      %p357 = por %p355, %p356
      %p358 = scmp.ne.s32.totalorder %s346, %s347
      %p359 = scmp.eq.s32.totalorder %s49, 1
      %p360 = por %p358, %p359
      %p362 = scmp.ne.s32.totalorder %s347, %s361
      %p363 = scmp.eq.s32.totalorder %s49, 0
      %p364 = por %p362, %p363
      %s366 = sadd.s32 %s365, 1
      %p369 = scmp.eq.s32.totalorder %s43, 1
      %p370 = scmp.ne.s32.totalorder %s365, %s367
      %p371 = scmp.eq.s32.totalorder %s43, 0
      %p372 = por %p370, %p371
      %p373 = scmp.ne.s32.totalorder %s365, %s367
      %p374 = scmp.eq.s32.totalorder %s48, 1
      %p375 = por %p373, %p374
      %p376 = scmp.ne.s32.totalorder %s367, %s368
      %p377 = scmp.eq.s32.totalorder %s48, 0
      %p378 = por %p376, %p377
      %p379 = scmp.ne.s32.totalorder %s367, %s368
      %p380 = scmp.eq.s32.totalorder %s49, 1
      %p381 = por %p379, %p380
      %p383 = scmp.ne.s32.totalorder %s368, %s382
      %p384 = scmp.eq.s32.totalorder %s49, 0
      %p385 = por %p383, %p384
      %s387 = sadd.s32 %s386, 1
      %p390 = scmp.eq.s32.totalorder %s43, 1
      %p391 = scmp.ne.s32.totalorder %s386, %s388
      %p392 = scmp.eq.s32.totalorder %s43, 0
      %p393 = por %p391, %p392
      %p394 = scmp.ne.s32.totalorder %s386, %s388
      %p395 = scmp.eq.s32.totalorder %s48, 1
      %p396 = por %p394, %p395
      %p397 = scmp.ne.s32.totalorder %s388, %s389
      %p398 = scmp.eq.s32.totalorder %s48, 0
      %p399 = por %p397, %p398
      %p400 = scmp.ne.s32.totalorder %s388, %s389
      %p401 = scmp.eq.s32.totalorder %s49, 1
      %p402 = por %p400, %p401
      %p404 = scmp.ne.s32.totalorder %s389, %s403
      %p405 = scmp.eq.s32.totalorder %s49, 0
      %p406 = por %p404, %p405
      %s408 = sadd.s32 %s407, 1
      %p411 = scmp.eq.s32.totalorder %s43, 1
      %p412 = scmp.ne.s32.totalorder %s407, %s409
      %p413 = scmp.eq.s32.totalorder %s43, 0
      %p414 = por %p412, %p413
      %p415 = scmp.ne.s32.totalorder %s407, %s409
      %p416 = scmp.eq.s32.totalorder %s48, 1
      %p417 = por %p415, %p416
      %p418 = scmp.ne.s32.totalorder %s409, %s410
      %p419 = scmp.eq.s32.totalorder %s48, 0
      %p420 = por %p418, %p419
      %p421 = scmp.ne.s32.totalorder %s409, %s410
      %p422 = scmp.eq.s32.totalorder %s49, 1
      %p423 = por %p421, %p422
      %p425 = scmp.ne.s32.totalorder %s410, %s424
      %p426 = scmp.eq.s32.totalorder %s49, 0
      %p427 = por %p425, %p426
      %s429 = sadd.s32 %s428, 1
      %p432 = scmp.eq.s32.totalorder %s43, 1
      %p433 = scmp.ne.s32.totalorder %s428, %s430
      %p434 = scmp.eq.s32.totalorder %s43, 0
      %p435 = por %p433, %p434
      %p436 = scmp.ne.s32.totalorder %s428, %s430
      %p437 = scmp.eq.s32.totalorder %s48, 1
      %p438 = por %p436, %p437
      %p439 = scmp.ne.s32.totalorder %s430, %s431
      %p440 = scmp.eq.s32.totalorder %s48, 0
      %p441 = por %p439, %p440
      %p442 = scmp.ne.s32.totalorder %s430, %s431
      %p443 = scmp.eq.s32.totalorder %s49, 1
      %p444 = por %p442, %p443
      %p446 = scmp.ne.s32.totalorder %s431, %s445
      %p447 = scmp.eq.s32.totalorder %s49, 0
      %p448 = por %p446, %p447
      %s450 = sadd.s32 %s449, 1
      %p453 = scmp.eq.s32.totalorder %s43, 1
      %p454 = scmp.ne.s32.totalorder %s449, %s451
      %p455 = scmp.eq.s32.totalorder %s43, 0
      %p456 = por %p454, %p455
      %p457 = scmp.ne.s32.totalorder %s449, %s451
      %p458 = scmp.eq.s32.totalorder %s48, 1
      %p459 = por %p457, %p458
      %p460 = scmp.ne.s32.totalorder %s451, %s452
      %p461 = scmp.eq.s32.totalorder %s48, 0
      %p462 = por %p460, %p461
      %p463 = scmp.ne.s32.totalorder %s451, %s452
      %p464 = scmp.eq.s32.totalorder %s49, 1
      %p465 = por %p463, %p464
      %p467 = scmp.ne.s32.totalorder %s452, %s466
      %p468 = scmp.eq.s32.totalorder %s49, 0
      %p469 = por %p467, %p468
      %s471 = sadd.s32 %s470, 1
      %p474 = scmp.eq.s32.totalorder %s43, 1
      %p475 = scmp.ne.s32.totalorder %s470, %s472
      %p476 = scmp.eq.s32.totalorder %s43, 0
      %p477 = por %p475, %p476
      %p478 = scmp.ne.s32.totalorder %s470, %s472
      %p479 = scmp.eq.s32.totalorder %s48, 1
      %p480 = por %p478, %p479
      %p481 = scmp.ne.s32.totalorder %s472, %s473
      %p482 = scmp.eq.s32.totalorder %s48, 0
      %p483 = por %p481, %p482
      %p484 = scmp.ne.s32.totalorder %s472, %s473
      %p485 = scmp.eq.s32.totalorder %s49, 1
      %p486 = por %p484, %p485
      %p488 = scmp.ne.s32.totalorder %s473, %s487
      %p489 = scmp.eq.s32.totalorder %s49, 0
      %p490 = por %p488, %p489
      %s492 = sadd.s32 %s491, 1
      %p495 = scmp.eq.s32.totalorder %s43, 1
      %p496 = scmp.ne.s32.totalorder %s491, %s493
      %p497 = scmp.eq.s32.totalorder %s43, 0
      %p498 = por %p496, %p497
      %p499 = scmp.ne.s32.totalorder %s491, %s493
      %p500 = scmp.eq.s32.totalorder %s48, 1
      %p501 = por %p499, %p500
      %p502 = scmp.ne.s32.totalorder %s493, %s494
      %p503 = scmp.eq.s32.totalorder %s48, 0
      %p504 = por %p502, %p503
      %p505 = scmp.ne.s32.totalorder %s493, %s494
      %p506 = scmp.eq.s32.totalorder %s49, 1
      %p507 = por %p505, %p506
      %p509 = scmp.ne.s32.totalorder %s494, %s508
      %p510 = scmp.eq.s32.totalorder %s49, 0
      %p511 = por %p509, %p510
      %s513 = sadd.s32 %s512, 1
      %p516 = scmp.eq.s32.totalorder %s43, 1
      %p517 = scmp.ne.s32.totalorder %s512, %s514
      %p518 = scmp.eq.s32.totalorder %s43, 0
      %p519 = por %p517, %p518
      %p520 = scmp.ne.s32.totalorder %s512, %s514
      %p521 = scmp.eq.s32.totalorder %s48, 1
      %p522 = por %p520, %p521
      %p523 = scmp.ne.s32.totalorder %s514, %s515
      %p524 = scmp.eq.s32.totalorder %s48, 0
      %p525 = por %p523, %p524
      %p526 = scmp.ne.s32.totalorder %s514, %s515
      %p527 = scmp.eq.s32.totalorder %s49, 1
      %p528 = por %p526, %p527
      %p530 = scmp.ne.s32.totalorder %s515, %s529
      %p531 = scmp.eq.s32.totalorder %s49, 0
      %p532 = por %p530, %p531
      %s534 = sadd.s32 %s533, 1
      %p537 = scmp.eq.s32.totalorder %s43, 1
      %p538 = scmp.ne.s32.totalorder %s533, %s535
      %p539 = scmp.eq.s32.totalorder %s43, 0
      %p540 = por %p538, %p539
      %p541 = scmp.ne.s32.totalorder %s533, %s535
      %p542 = scmp.eq.s32.totalorder %s48, 1
      %p543 = por %p541, %p542
      %p544 = scmp.ne.s32.totalorder %s535, %s536
      %p545 = scmp.eq.s32.totalorder %s48, 0
      %p546 = por %p544, %p545
      %p547 = scmp.ne.s32.totalorder %s535, %s536
      %p548 = scmp.eq.s32.totalorder %s49, 1
      %p549 = por %p547, %p548
      %p551 = scmp.ne.s32.totalorder %s536, %s550
      %p552 = scmp.eq.s32.totalorder %s49, 0
      %p553 = por %p551, %p552
      %s555 = sadd.s32 %s554, 1
      %p558 = scmp.eq.s32.totalorder %s43, 1
      %p559 = scmp.ne.s32.totalorder %s554, %s556
      %p560 = scmp.eq.s32.totalorder %s43, 0
      %p561 = por %p559, %p560
      %p562 = scmp.ne.s32.totalorder %s554, %s556
      %p563 = scmp.eq.s32.totalorder %s48, 1
      %p564 = por %p562, %p563
      %p565 = scmp.ne.s32.totalorder %s556, %s557
      %p566 = scmp.eq.s32.totalorder %s48, 0
      %p567 = por %p565, %p566
      %p568 = scmp.ne.s32.totalorder %s556, %s557
      %p569 = scmp.eq.s32.totalorder %s49, 1
      %p570 = por %p568, %p569
      %p572 = scmp.ne.s32.totalorder %s557, %s571
      %p573 = scmp.eq.s32.totalorder %s49, 0
      %p574 = por %p572, %p573
      %s575 = ssub.s32 %s43, %s50
      %p576 = scmp.eq.s32.totalorder %s575, 0
      %s578 = sadd.s32 %s577, 1
      %s579 = scalar_select %p576, %s577, %s578
      %p582 = pneg %p576
      %p583 = scmp.eq.s32.totalorder %s43, 1
      %p584 = por %p582, %p583
      %p585 = scmp.ne.s32.totalorder %s577, %s580
      %p586 = scmp.eq.s32.totalorder %s43, 0
      %p587 = por %p585, %p586
      %p588 = scmp.ne.s32.totalorder %s577, %s580
      %p589 = scmp.eq.s32.totalorder %s48, 1
      %p590 = por %p588, %p589
      %p591 = scmp.ne.s32.totalorder %s580, %s581
      %p592 = scmp.eq.s32.totalorder %s48, 0
      %p593 = por %p591, %p592
      %p594 = scmp.ne.s32.totalorder %s580, %s581
      %p595 = scmp.eq.s32.totalorder %s49, 1
      %p596 = por %p594, %p595
      %p598 = scmp.ne.s32.totalorder %s581, %s597
      %p599 = scmp.eq.s32.totalorder %s49, 0
      %p600 = por %p598, %p599
      %p601 = scmp.le.s32.totalorder 1, %s43
      %p602 = scmp.lt.s32.totalorder %s43, 3
      %p603 = pnand %p601, %p602
      %p604 = pneg %p603
      // Predicated region
      $region9: #{tpu_custom_call.1} parent=5 // pred_check
        _
      $region10: #{tpu_custom_call.1} parent=5 // pred_check_branch
        %606 = sbr.rel (%p603) target = $region12
      $region11: #{tpu_custom_call.1} parent=5 // pred_region
        %s607 = ssub.s32 %s43, 1
        // Predicated region
        $region13: #{tpu_custom_call.1} parent=11 // pred_check
          %p608 = pneg %p168
        $region14: #{tpu_custom_call.1} parent=11 // pred_check_branch
          %610 = sbr.rel (%p608) target = $region16
        $region15: #{tpu_custom_call.1} parent=11 // pred_region
          _
        $region16: #{tpu_custom_call.1} parent=11 // pred_fallthru
          _
        // Predicated region
        $region17: #{tpu_custom_call.1} parent=11 // pred_check
          %p611 = pneg %p189
        $region18: #{tpu_custom_call.1} parent=11 // pred_check_branch
          %613 = sbr.rel (%p611) target = $region20
        $region19: #{tpu_custom_call.1} parent=11 // pred_region
          _
        $region20: #{tpu_custom_call.1} parent=11 // pred_fallthru
          _
        // Predicated region
        $region21: #{tpu_custom_call.1} parent=11 // pred_check
          %p614 = pneg %p210
        $region22: #{tpu_custom_call.1} parent=11 // pred_check_branch
          %616 = sbr.rel (%p614) target = $region24
        $region23: #{tpu_custom_call.1} parent=11 // pred_region
          %s618 = ssub.s32 3072, 3072
          %619 = vsyncadd [#allocation9], %s618
          %s620 = sshll.u32 [#allocation8], 4
          %s621 = int_to_ptr.vmem [resolvable:$true] %s620
          %626 = dma.hbm_to_vmem [thread:$0]  %s6, 3072, %s621, [#allocation9], 192, 192, 12
        $region24: #{tpu_custom_call.1} parent=11 // pred_fallthru
          _
        // Predicated region
        $region25: #{tpu_custom_call.1} parent=11 // pred_check
          %p627 = pneg %p231
        $region26: #{tpu_custom_call.1} parent=11 // pred_check_branch
          %629 = sbr.rel (%p627) target = $region28
        $region27: #{tpu_custom_call.1} parent=11 // pred_region
          _
        $region28: #{tpu_custom_call.1} parent=11 // pred_fallthru
          _
        // Predicated region
        $region29: #{tpu_custom_call.1} parent=11 // pred_check
          %p630 = pneg %p252
        $region30: #{tpu_custom_call.1} parent=11 // pred_check_branch
          %632 = sbr.rel (%p630) target = $region32
        $region31: #{tpu_custom_call.1} parent=11 // pred_region
          %s634 = ssub.s32 1024, 1024
          %635 = vsyncadd [#allocation9], %s634
          %s636 = sshll.u32 [#allocation10], 4
          %s637 = int_to_ptr.vmem [resolvable:$true] %s636
          %642 = dma.hbm_to_vmem [thread:$0]  %s8, 1024, %s637, [#allocation9], 64, 64, 4
        $region32: #{tpu_custom_call.1} parent=11 // pred_fallthru
          _
        // Predicated region
        $region33: #{tpu_custom_call.1} parent=11 // pred_check
          %p643 = pneg %p273
        $region34: #{tpu_custom_call.1} parent=11 // pred_check_branch
          %645 = sbr.rel (%p643) target = $region36
        $region35: #{tpu_custom_call.1} parent=11 // pred_region
          _
        $region36: #{tpu_custom_call.1} parent=11 // pred_fallthru
          _
        // Predicated region
        $region37: #{tpu_custom_call.1} parent=11 // pred_check
          %p646 = pneg %p294
        $region38: #{tpu_custom_call.1} parent=11 // pred_check_branch
          %648 = sbr.rel (%p646) target = $region40
        $region39: #{tpu_custom_call.1} parent=11 // pred_region
          _
        $region40: #{tpu_custom_call.1} parent=11 // pred_fallthru
          _
        // Predicated region
        $region41: #{tpu_custom_call.1} parent=11 // pred_check
          %p649 = pneg %p315
        $region42: #{tpu_custom_call.1} parent=11 // pred_check_branch
          %651 = sbr.rel (%p649) target = $region44
        $region43: #{tpu_custom_call.1} parent=11 // pred_region
          _
        $region44: #{tpu_custom_call.1} parent=11 // pred_fallthru
          _
        // Predicated region
        $region45: #{tpu_custom_call.1} parent=11 // pred_check
          %p652 = pneg %p336
        $region46: #{tpu_custom_call.1} parent=11 // pred_check_branch
          %654 = sbr.rel (%p652) target = $region48
        $region47: #{tpu_custom_call.1} parent=11 // pred_region
          %s656 = ssub.s32 1024, 1024
          %657 = vsyncadd [#allocation12], %s656
          %s658 = sshll.u32 [#allocation11], 4
          %s659 = int_to_ptr.vmem [resolvable:$true] %s658
          %664 = dma.hbm_to_vmem [thread:$0]  %s12, 1024, %s659, [#allocation12], 64, 64, 4
        $region48: #{tpu_custom_call.1} parent=11 // pred_fallthru
          _
        // Predicated region
        $region49: #{tpu_custom_call.1} parent=11 // pred_check
          %p665 = pneg %p357
        $region50: #{tpu_custom_call.1} parent=11 // pred_check_branch
          %667 = sbr.rel (%p665) target = $region52
        $region51: #{tpu_custom_call.1} parent=11 // pred_region
          _
        $region52: #{tpu_custom_call.1} parent=11 // pred_fallthru
          _
        // Predicated region
        $region53: #{tpu_custom_call.1} parent=11 // pred_check
          %p668 = pneg %p378
        $region54: #{tpu_custom_call.1} parent=11 // pred_check_branch
          %670 = sbr.rel (%p668) target = $region56
        $region55: #{tpu_custom_call.1} parent=11 // pred_region
          %s672 = ssub.s32 2048, 2048
          %673 = vsyncadd [#allocation12], %s672
          %s674 = sshll.u32 [#allocation13], 4
          %s675 = int_to_ptr.vmem [resolvable:$true] %s674
          %680 = dma.hbm_to_vmem [thread:$0]  %s14, 2048, %s675, [#allocation12], 128, 128, 8
        $region56: #{tpu_custom_call.1} parent=11 // pred_fallthru
          _
        // Predicated region
        $region57: #{tpu_custom_call.1} parent=11 // pred_check
          %p681 = pneg %p399
        $region58: #{tpu_custom_call.1} parent=11 // pred_check_branch
          %683 = sbr.rel (%p681) target = $region60
        $region59: #{tpu_custom_call.1} parent=11 // pred_region
          _
        $region60: #{tpu_custom_call.1} parent=11 // pred_fallthru
          _
        // Predicated region
        $region61: #{tpu_custom_call.1} parent=11 // pred_check
          %p684 = pneg %p420
        $region62: #{tpu_custom_call.1} parent=11 // pred_check_branch
          %686 = sbr.rel (%p684) target = $region64
        $region63: #{tpu_custom_call.1} parent=11 // pred_region
          %s688 = ssub.s32 1024, 1024
          %689 = vsyncadd [#allocation15], %s688
          %s690 = sshll.u32 [#allocation14], 4
          %s691 = int_to_ptr.vmem [resolvable:$true] %s690
          %696 = dma.hbm_to_vmem [thread:$0]  %s16, 1024, %s691, [#allocation15], 64, 64, 4
        $region64: #{tpu_custom_call.1} parent=11 // pred_fallthru
          _
        // Predicated region
        $region65: #{tpu_custom_call.1} parent=11 // pred_check
          %p697 = pneg %p441
        $region66: #{tpu_custom_call.1} parent=11 // pred_check_branch
          %699 = sbr.rel (%p697) target = $region68
        $region67: #{tpu_custom_call.1} parent=11 // pred_region
          _
        $region68: #{tpu_custom_call.1} parent=11 // pred_fallthru
          _
        // Predicated region
        $region69: #{tpu_custom_call.1} parent=11 // pred_check
          %p700 = pneg %p462
        $region70: #{tpu_custom_call.1} parent=11 // pred_check_branch
          %702 = sbr.rel (%p700) target = $region72
        $region71: #{tpu_custom_call.1} parent=11 // pred_region
          _
        $region72: #{tpu_custom_call.1} parent=11 // pred_fallthru
          _
        // Predicated region
        $region73: #{tpu_custom_call.1} parent=11 // pred_check
          %p703 = pneg %p483
        $region74: #{tpu_custom_call.1} parent=11 // pred_check_branch
          %705 = sbr.rel (%p703) target = $region76
        $region75: #{tpu_custom_call.1} parent=11 // pred_region
          _
        $region76: #{tpu_custom_call.1} parent=11 // pred_fallthru
          _
        // Predicated region
        $region77: #{tpu_custom_call.1} parent=11 // pred_check
          %p706 = pneg %p504
        $region78: #{tpu_custom_call.1} parent=11 // pred_check_branch
          %708 = sbr.rel (%p706) target = $region80
        $region79: #{tpu_custom_call.1} parent=11 // pred_region
          %s710 = ssub.s32 2048, 2048
          %711 = vsyncadd [#allocation15], %s710
          %s712 = sshll.u32 [#allocation16], 4
          %s713 = int_to_ptr.vmem [resolvable:$true] %s712
          %718 = dma.hbm_to_vmem [thread:$0]  %s20, 2048, %s713, [#allocation15], 128, 128, 8
        $region80: #{tpu_custom_call.1} parent=11 // pred_fallthru
          _
        // Predicated region
        $region81: #{tpu_custom_call.1} parent=11 // pred_check
          %p719 = pneg %p525
        $region82: #{tpu_custom_call.1} parent=11 // pred_check_branch
          %721 = sbr.rel (%p719) target = $region84
        $region83: #{tpu_custom_call.1} parent=11 // pred_region
          _
        $region84: #{tpu_custom_call.1} parent=11 // pred_fallthru
          _
        // Predicated region
        $region85: #{tpu_custom_call.1} parent=11 // pred_check
          %p722 = pneg %p546
        $region86: #{tpu_custom_call.1} parent=11 // pred_check_branch
          %724 = sbr.rel (%p722) target = $region88
        $region87: #{tpu_custom_call.1} parent=11 // pred_region
          %s726 = ssub.s32 2048, 2048
          %727 = vsyncadd [#allocation18], %s726
          %s728 = sshll.u32 [#allocation17], 4
          %s729 = int_to_ptr.vmem [resolvable:$true] %s728
          %734 = dma.hbm_to_vmem [thread:$0]  %s22, 2048, %s729, [#allocation18], 64, 64, 4
        $region88: #{tpu_custom_call.1} parent=11 // pred_fallthru
          _
        // Predicated region
        $region89: #{tpu_custom_call.1} parent=11 // pred_check
          %p735 = pneg %p567
        $region90: #{tpu_custom_call.1} parent=11 // pred_check_branch
          %737 = sbr.rel (%p735) target = $region92
        $region91: #{tpu_custom_call.1} parent=11 // pred_region
          _
        $region92: #{tpu_custom_call.1} parent=11 // pred_fallthru
          _
      $region12: #{tpu_custom_call.1} parent=5 // pred_fallthru
        _
      %p738 = scmp.lt.s32.totalorder %s43, 2
      // Predicated region
      $region93: #{tpu_custom_call.1} parent=5 // pred_check
        %p739 = pneg %p738
      $region94: #{tpu_custom_call.1} parent=5 // pred_check_branch
        %741 = sbr.rel (%p739) target = $region96
      $region95: #{tpu_custom_call.1} parent=5 // pred_region
        // Predicated region
        $region97: #{tpu_custom_call.1} parent=95 // pred_check
          %p742 = pneg %p63
        $region98: #{tpu_custom_call.1} parent=95 // pred_check_branch
          %744 = sbr.rel (%p742) target = $region100
        $region99: #{tpu_custom_call.1} parent=95 // pred_region
          %s745 = sand.u32 %s53, 1
          %s746 = scalar_lea.sflag [#allocation3], %s745
          %s747 = sand.u32 %s53, 1
          %s748 = smul.addr %s747, 16
          %s749 = scalar_lea.vmem [#allocation2], %s748
          %s750 = smul.u32 2, %s43
          %s752 = ssub.s32 256, 256
          %753 = vsyncadd %s746, %s752
          %s754 = smul.addr %s750, 128
          %s755 = scalar_lea.hbm %s0, %s754
          %s756 = sshll.u32 %s749, 4
          %s757 = int_to_ptr.vmem [resolvable:$true] %s756
          %762 = dma.hbm_to_vmem [thread:$0]  %s755, 256, %s757, %s746, 128, 128, 8
        $region100: #{tpu_custom_call.1} parent=95 // pred_fallthru
          _
        // Predicated region
        $region101: #{tpu_custom_call.1} parent=95 // pred_check
          %p763 = pneg %p89
        $region102: #{tpu_custom_call.1} parent=95 // pred_check_branch
          %765 = sbr.rel (%p763) target = $region104
        $region103: #{tpu_custom_call.1} parent=95 // pred_region
          %s766 = sand.u32 %s43, 1
          %s767 = scalar_lea.sflag [#allocation6], %s766
          %s768 = sand.u32 %s79, 1
          %s769 = smul.addr %s768, 32
          %s770 = scalar_lea.vmem [#allocation5], %s769
          %s771 = smul.u32 4, %s43
          %s773 = ssub.s32 512, 512
          %774 = vsyncadd %s767, %s773
          %s775 = smul.addr %s771, 128
          %s776 = scalar_lea.hbm %s1, %s775
          %s777 = sshll.u32 %s770, 4
          %s778 = int_to_ptr.vmem [resolvable:$true] %s777
          %783 = dma.hbm_to_vmem [thread:$0]  %s776, 512, %s778, %s767, 128, 128, 8
        $region104: #{tpu_custom_call.1} parent=95 // pred_fallthru
          _
        // Predicated region
        $region105: #{tpu_custom_call.1} parent=95 // pred_check
          %p784 = pneg %p115
        $region106: #{tpu_custom_call.1} parent=95 // pred_check_branch
          %786 = sbr.rel (%p784) target = $region108
        $region107: #{tpu_custom_call.1} parent=95 // pred_region
          %s787 = smul.u32 2, %s43
          %p788 = scmp.lt.s32.totalorder %s787, 3
          %s789 = scalar_select %p788, %s787, 3
          %s790 = scalar_lea.vmem %s2, %s789
          %s791 = smul.u32 2, %s43
        $region108: #{tpu_custom_call.1} parent=95 // pred_fallthru
          _
        // Predicated region
        $region109: #{tpu_custom_call.1} parent=95 // pred_check
          %p792 = pneg %p141
        $region110: #{tpu_custom_call.1} parent=95 // pred_check_branch
          %794 = sbr.rel (%p792) target = $region112
        $region111: #{tpu_custom_call.1} parent=95 // pred_region
          %s795 = sand.u32 %s43, 1
          %s796 = scalar_lea.sflag [#allocation6], %s795
          %s797 = sand.u32 %s131, 1
          %s798 = smul.addr %s797, 16
          %s799 = scalar_lea.vmem [#allocation7], %s798
          %s800 = smul.u32 2, %s43
          %s802 = ssub.s32 256, 256
          %803 = vsyncadd %s796, %s802
          %s804 = smul.addr %s800, 128
          %s805 = scalar_lea.hbm %s3, %s804
          %s806 = sshll.u32 %s799, 4
          %s807 = int_to_ptr.vmem [resolvable:$true] %s806
          %812 = dma.hbm_to_vmem [thread:$0]  %s805, 256, %s807, %s796, 128, 128, 8
        $region112: #{tpu_custom_call.1} parent=95 // pred_fallthru
          _
      $region96: #{tpu_custom_call.1} parent=5 // pred_fallthru
        _
      %p813 = scmp.le.s32.totalorder 1, %s43
      %p814 = scmp.lt.s32.totalorder %s43, 3
      %p815 = pnand %p813, %p814
      %p816 = pneg %p815
      // Predicated region
      $region113: #{tpu_custom_call.1} parent=5 // pred_check
        _
      $region114: #{tpu_custom_call.1} parent=5 // pred_check_branch
        %818 = sbr.rel (%p815) target = $region116
      $region115: #{tpu_custom_call.1} parent=5 // pred_region
        %s819 = ssub.s32 %s43, 1
        %s820 = sand.u32 %s56, 1
        %s821 = scalar_lea.sflag [#allocation3], %s820
        %s822 = sand.u32 %s56, 1
        %s823 = smul.addr %s822, 16
        %s824 = scalar_lea.vmem [#allocation2], %s823
        // Predicated region
        $region117: #{tpu_custom_call.1} parent=115 // pred_check
          %p825 = pneg %p69
        $region118: #{tpu_custom_call.1} parent=115 // pred_check_branch
          %827 = sbr.rel (%p825) target = $region120
        $region119: #{tpu_custom_call.1} parent=115 // pred_region
          %828 = dma.done %s821, 256
        $region120: #{tpu_custom_call.1} parent=115 // pred_fallthru
          _
        %s829 = sand.u32 %s48, 1
        %s830 = scalar_lea.sflag [#allocation6], %s829
        %s831 = sand.u32 %s82, 1
        %s832 = smul.addr %s831, 32
        %s833 = scalar_lea.vmem [#allocation5], %s832
        // Predicated region
        $region121: #{tpu_custom_call.1} parent=115 // pred_check
          %p834 = pneg %p95
        $region122: #{tpu_custom_call.1} parent=115 // pred_check_branch
          %836 = sbr.rel (%p834) target = $region124
        $region123: #{tpu_custom_call.1} parent=115 // pred_region
          %837 = dma.done %s830, 512
        $region124: #{tpu_custom_call.1} parent=115 // pred_fallthru
          _
        %s838 = sand.u32 %s48, 1
        %s839 = scalar_lea.sflag [#allocation6], %s838
        %s840 = sand.u32 %s134, 1
        %s841 = smul.addr %s840, 16
        %s842 = scalar_lea.vmem [#allocation7], %s841
        // Predicated region
        $region125: #{tpu_custom_call.1} parent=115 // pred_check
          %p843 = pneg %p147
        $region126: #{tpu_custom_call.1} parent=115 // pred_check_branch
          %845 = sbr.rel (%p843) target = $region128
        $region127: #{tpu_custom_call.1} parent=115 // pred_region
          %846 = dma.done %s839, 256
        $region128: #{tpu_custom_call.1} parent=115 // pred_fallthru
          _
        // Predicated region
        $region129: #{tpu_custom_call.1} parent=115 // pred_check
          %p847 = pneg %p210
        $region130: #{tpu_custom_call.1} parent=115 // pred_check_branch
          %849 = sbr.rel (%p847) target = $region132
        $region131: #{tpu_custom_call.1} parent=115 // pred_region
          %850 = dma.done [#allocation9], 3072
        $region132: #{tpu_custom_call.1} parent=115 // pred_fallthru
          _
        // Predicated region
        $region133: #{tpu_custom_call.1} parent=115 // pred_check
          %p851 = pneg %p252
        $region134: #{tpu_custom_call.1} parent=115 // pred_check_branch
          %853 = sbr.rel (%p851) target = $region136
        $region135: #{tpu_custom_call.1} parent=115 // pred_region
          %854 = dma.done [#allocation9], 1024
        $region136: #{tpu_custom_call.1} parent=115 // pred_fallthru
          _
        // Predicated region
        $region137: #{tpu_custom_call.1} parent=115 // pred_check
          %p855 = pneg %p336
        $region138: #{tpu_custom_call.1} parent=115 // pred_check_branch
          %857 = sbr.rel (%p855) target = $region140
        $region139: #{tpu_custom_call.1} parent=115 // pred_region
          %858 = dma.done [#allocation12], 1024
        $region140: #{tpu_custom_call.1} parent=115 // pred_fallthru
          _
        // Predicated region
        $region141: #{tpu_custom_call.1} parent=115 // pred_check
          %p859 = pneg %p378
        $region142: #{tpu_custom_call.1} parent=115 // pred_check_branch
          %861 = sbr.rel (%p859) target = $region144
        $region143: #{tpu_custom_call.1} parent=115 // pred_region
          %862 = dma.done [#allocation12], 2048
        $region144: #{tpu_custom_call.1} parent=115 // pred_fallthru
          _
        // Predicated region
        $region145: #{tpu_custom_call.1} parent=115 // pred_check
          %p863 = pneg %p420
        $region146: #{tpu_custom_call.1} parent=115 // pred_check_branch
          %865 = sbr.rel (%p863) target = $region148
        $region147: #{tpu_custom_call.1} parent=115 // pred_region
          %866 = dma.done [#allocation15], 1024
        $region148: #{tpu_custom_call.1} parent=115 // pred_fallthru
          _
        // Predicated region
        $region149: #{tpu_custom_call.1} parent=115 // pred_check
          %p867 = pneg %p504
        $region150: #{tpu_custom_call.1} parent=115 // pred_check_branch
          %869 = sbr.rel (%p867) target = $region152
        $region151: #{tpu_custom_call.1} parent=115 // pred_region
          %870 = dma.done [#allocation15], 2048
        $region152: #{tpu_custom_call.1} parent=115 // pred_fallthru
          _
        // Predicated region
        $region153: #{tpu_custom_call.1} parent=115 // pred_check
          %p871 = pneg %p546
        $region154: #{tpu_custom_call.1} parent=115 // pred_check_branch
          %873 = sbr.rel (%p871) target = $region156
        $region155: #{tpu_custom_call.1} parent=115 // pred_region
          %874 = dma.done [#allocation18], 2048
        $region156: #{tpu_custom_call.1} parent=115 // pred_fallthru
          _
        %s875 = sand.u32 %s56, 1
        %s876 = scalar_lea.sflag [#allocation3], %s875
        %s877 = sand.u32 %s56, 1
        %s878 = smul.addr %s877, 16
        %s879 = scalar_lea.vmem [#allocation2], %s878
        %p880 = pneg %p69
        %p881 = pneg %p66
        %s882 = sand.u32 %s48, 1
        %s883 = scalar_lea.sflag [#allocation6], %s882
        %s884 = sand.u32 %s82, 1
        %s885 = smul.addr %s884, 32
        %s886 = scalar_lea.vmem [#allocation5], %s885
        %p887 = pneg %p95
        %p888 = pneg %p92
        %s889 = smul.u32 2, %s48
        %p890 = scmp.lt.s32.totalorder %s889, 3
        %s891 = scalar_select %p890, %s889, 3
        %s892 = scalar_lea.vmem %s2, %s891
        %p893 = pneg %p121
        %p894 = pneg %p118
        %s895 = sand.u32 %s48, 1
        %s896 = scalar_lea.sflag [#allocation6], %s895
        %s897 = sand.u32 %s134, 1
        %s898 = smul.addr %s897, 16
        %s899 = scalar_lea.vmem [#allocation7], %s898
        %p900 = pneg %p147
        %p901 = pneg %p144
        %p902 = pneg %p168
        %p903 = pneg %p165
        %p904 = pneg %p189
        %p905 = pneg %p186
        %p906 = pneg %p210
        %p907 = pneg %p207
        %p908 = pneg %p231
        %p909 = pneg %p228
        %p910 = pneg %p252
        %p911 = pneg %p249
        %p912 = pneg %p273
        %p913 = pneg %p270
        %p914 = pneg %p294
        %p915 = pneg %p291
        %p916 = pneg %p315
        %p917 = pneg %p312
        %p918 = pneg %p336
        %p919 = pneg %p333
        %p920 = pneg %p357
        %p921 = pneg %p354
        %p922 = pneg %p378
        %p923 = pneg %p375
        %p924 = pneg %p399
        %p925 = pneg %p396
        %p926 = pneg %p420
        %p927 = pneg %p417
        %p928 = pneg %p441
        %p929 = pneg %p438
        %p930 = pneg %p462
        %p931 = pneg %p459
        %p932 = pneg %p483
        %p933 = pneg %p480
        %p934 = pneg %p504
        %p935 = pneg %p501
        %p936 = pneg %p525
        %p937 = pneg %p522
        %p938 = pneg %p546
        %p939 = pneg %p543
        %p940 = pneg %p567
        %p941 = pneg %p564
        %p942 = pneg %p593
        %p943 = pneg %p590
        %s944 = sand.u32 %s580, 1
        %s945 = scalar_lea.sflag [#allocation4], %s944
        %s946 = sand.u32 %s580, 1
        %s947 = smul.addr %s946, 16
        %s948 = scalar_lea.vmem [#allocation19], %s947
        %s949 = smul.u32 2, %s48
        %s950 = smul.u32 4, %s48
        %s951 = smul.u32 2, %s48
        %p952 = scmp.lt.s32.totalorder %s951, 3
        %s953 = scalar_select %p952, %s951, 3
        %s954 = scalar_lea.vmem %s2, %s953
        %s955 = smul.u32 2, %s48
        %s956 = smul.u32 2, %s48
        %s957 = smul.u32 2, %s48
        %v959 = vld [vmem:[%s824] sm:$0xff]
        %v960 = vld [vmem:[%s824 + $0x8] sm:$0xff]
        %v961 = vld [vmem:[%s4] sm:$0x1]
        %v962 = vld [vmem:[%s5] sm:$0x1]
        %963 = vadd.xlane.f32.xlu0 %v959
        %v964 = vpop.xlane.xlu0 %963
        %965 = vadd.xlane.f32.xlu0 %v960
        %v966 = vpop.xlane.xlu0 %965
        %v967 = vrcp.pop 128.0
        %v968 = vmul.f32 %v964, %v967
        %v969 = vmul.f32 %v966, %v967
        %v970 = vsub.f32 %v959, %v968
        %v971 = vsub.f32 %v960, %v969
        %v972 = vmul.f32 %v970, %v970
        %v973 = vmul.f32 %v971, %v971
        %974 = vadd.xlane.f32.xlu0 %v972
        %v975 = vpop.xlane.xlu0 %974
        %976 = vadd.xlane.f32.xlu0 %v973
        %v977 = vpop.xlane.xlu0 %976
        %v978 = vrcp.pop 127.0
        %v979 = vmul.f32 %v975, %v978
        %v980 = vmul.f32 %v977, %v978
        %v981 = vrsqrt.pop %v979
        %v982 = vmul.f32 %v979, %v981
        %vm983 = vcmp.eq.f32.partialorder %v979, inf
        %v984 = vsel %vm983, %v979, %v982
        %vm985 = vcmp.eq.f32.partialorder %v979, 0.0
        %v986 = vand.u32 %v979, 2147483648
        %v987 = vsel %vm985, %v986, %v984
        %v988 = vrsqrt.pop %v980
        %v989 = vmul.f32 %v980, %v988
        %vm990 = vcmp.eq.f32.partialorder %v980, inf
        %v991 = vsel %vm990, %v980, %v989
        %vm992 = vcmp.eq.f32.partialorder %v980, 0.0
        %v993 = vand.u32 %v980, 2147483648
        %v994 = vsel %vm992, %v993, %v991
        %v996 = vlaneseq
        %v997 = vshrl.u32 %v996, 7
        %v998 = vsub.s32 0, %v997
        %v999 = vrot.slane %v961, %v998
        %v1001 = vmul.f32 %v999, %v970
        %v1002 = vmul.f32 %v999, %v971
        %v1003 = vadd.f32 %v987, 1e-06
        %v1004 = vadd.f32 %v994, 1e-06
        %v1005 = vrcp.pop %v1003
        %v1006 = vmul.f32 %v1001, %v1005
        %v1007 = vrcp.pop %v1004
        %v1008 = vmul.f32 %v1002, %v1007
        %v1010 = vlaneseq
        %v1011 = vshrl.u32 %v1010, 7
        %v1012 = vsub.s32 0, %v1011
        %v1013 = vrot.slane %v962, %v1012
        %v1015 = vadd.f32 %v1006, %v1013
        %v1016 = vadd.f32 %v1008, %v1013
        %v1017 = vpack.c.bf16 %v1016, %v1015
        %v1018 = vld [vmem:[#allocation8] sm:$0xff]
        %v1019 = vld [vmem:[#allocation8 + $0x8] sm:$0xf]
        %v1020 = vld [vmem:[#allocation8 + $0xc] sm:$0xff]
        %v1021 = vld [vmem:[#allocation8 + $0x14] sm:$0xf]
        %v1022 = vld [vmem:[#allocation8 + $0x18] sm:$0xff]
        %v1023 = vld [vmem:[#allocation8 + $0x20] sm:$0xf]
        %v1024 = vld [vmem:[#allocation8 + $0x24] sm:$0xff]
        %v1025 = vld [vmem:[#allocation8 + $0x2c] sm:$0xf]
        %v1026 = vld [vmem:[#allocation8 + $0x30] sm:$0xff]
        %v1027 = vld [vmem:[#allocation8 + $0x38] sm:$0xf]
        %v1028 = vld [vmem:[#allocation8 + $0x3c] sm:$0xff]
        %v1029 = vld [vmem:[#allocation8 + $0x44] sm:$0xf]
        %v1030 = vld [vmem:[#allocation8 + $0x48] sm:$0xff]
        %v1031 = vld [vmem:[#allocation8 + $0x50] sm:$0xf]
        %v1032 = vld [vmem:[#allocation8 + $0x54] sm:$0xff]
        %v1033 = vld [vmem:[#allocation8 + $0x5c] sm:$0xf]
        %v1034 = vld [vmem:[#allocation8 + $0x60] sm:$0xff]
        %v1035 = vld [vmem:[#allocation8 + $0x68] sm:$0xf]
        %v1036 = vld [vmem:[#allocation8 + $0x6c] sm:$0xff]
        %v1037 = vld [vmem:[#allocation8 + $0x74] sm:$0xf]
        %v1038 = vld [vmem:[#allocation8 + $0x78] sm:$0xff]
        %v1039 = vld [vmem:[#allocation8 + $0x80] sm:$0xf]
        %v1040 = vld [vmem:[#allocation8 + $0x84] sm:$0xff]
        %v1041 = vld [vmem:[#allocation8 + $0x8c] sm:$0xf]
        %v1042 = vld [vmem:[#allocation8 + $0x90] sm:$0xff]
        %v1043 = vld [vmem:[#allocation8 + $0x98] sm:$0xf]
        %v1044 = vld [vmem:[#allocation8 + $0x9c] sm:$0xff]
        %v1045 = vld [vmem:[#allocation8 + $0xa4] sm:$0xf]
        %v1046 = vld [vmem:[#allocation8 + $0xa8] sm:$0xff]
        %v1047 = vld [vmem:[#allocation8 + $0xb0] sm:$0xf]
        %v1048 = vld [vmem:[#allocation8 + $0xb4] sm:$0xff]
        %v1049 = vld [vmem:[#allocation8 + $0xbc] sm:$0xf]
        %v1050 = vld [vmem:[%s7] sm:$0x7]
        %v1052 = vlaneseq
        %v1053 = vshrl.u32 %v1052, 7
        %v1054 = vsub.s32 0, %v1053
        %v1055 = vrot.slane %v1050, %v1054
        %v1056 = vlaneseq
        %v1057 = vshrl.u32 %v1056, 7
        %v1058 = vsub.s32 1, %v1057
        %v1059 = vrot.slane %v1050, %v1058
        %v1060 = vlaneseq
        %v1061 = vshrl.u32 %v1060, 7
        %v1062 = vsub.s32 2, %v1061
        %v1063 = vrot.slane %v1050, %v1062
        %v1099 = vunpack.c.l.b16 %v1018
        %v1100 = vunpack.c.h.b16 %v1018
        %v1101 = vunpack.c.l.b16 %v1019
        %v1102 = vunpack.c.l.b16 %v1020
        %v1103 = vunpack.c.h.b16 %v1020
        %v1104 = vunpack.c.l.b16 %v1021
        %v1105 = vunpack.c.l.b16 %v1022
        %v1106 = vunpack.c.h.b16 %v1022
        %v1107 = vunpack.c.l.b16 %v1023
        %v1108 = vunpack.c.l.b16 %v1024
        %v1109 = vunpack.c.h.b16 %v1024
        %v1110 = vunpack.c.l.b16 %v1025
        %v1111 = vunpack.c.l.b16 %v1026
        %v1112 = vunpack.c.h.b16 %v1026
        %v1113 = vunpack.c.l.b16 %v1027
        %v1114 = vunpack.c.l.b16 %v1028
        %v1115 = vunpack.c.h.b16 %v1028
        %v1116 = vunpack.c.l.b16 %v1029
        %v1117 = vunpack.c.l.b16 %v1030
        %v1118 = vunpack.c.h.b16 %v1030
        %v1119 = vunpack.c.l.b16 %v1031
        %v1120 = vunpack.c.l.b16 %v1032
        %v1121 = vunpack.c.h.b16 %v1032
        %v1122 = vunpack.c.l.b16 %v1033
        %v1123 = vunpack.c.l.b16 %v1034
        %v1124 = vunpack.c.h.b16 %v1034
        %v1125 = vunpack.c.l.b16 %v1035
        %v1126 = vunpack.c.l.b16 %v1036
        %v1127 = vunpack.c.h.b16 %v1036
        %v1128 = vunpack.c.l.b16 %v1037
        %v1129 = vunpack.c.l.b16 %v1038
        %v1130 = vunpack.c.h.b16 %v1038
        %v1131 = vunpack.c.l.b16 %v1039
        %v1132 = vunpack.c.l.b16 %v1040
        %v1133 = vunpack.c.h.b16 %v1040
        %v1134 = vunpack.c.l.b16 %v1041
        %v1135 = vunpack.c.l.b16 %v1042
        %v1136 = vunpack.c.h.b16 %v1042
        %v1137 = vunpack.c.l.b16 %v1043
        %v1138 = vunpack.c.l.b16 %v1044
        %v1139 = vunpack.c.h.b16 %v1044
        %v1140 = vunpack.c.l.b16 %v1045
        %v1141 = vunpack.c.l.b16 %v1046
        %v1142 = vunpack.c.h.b16 %v1046
        %v1143 = vunpack.c.l.b16 %v1047
        %v1144 = vunpack.c.l.b16 %v1048
        %v1145 = vunpack.c.h.b16 %v1048
        %v1146 = vunpack.c.l.b16 %v1049
        %v1147 = vpack.c.b16 %v1102, %v1099
        %v1148 = vpack.c.b16 %v1103, %v1100
        %v1149 = vpack.c.b16 %v1104, %v1101
        %v1150 = vpack.c.b16 %v1108, %v1105
        %v1151 = vpack.c.b16 %v1109, %v1106
        %v1152 = vpack.c.b16 %v1110, %v1107
        %v1153 = vpack.c.b16 %v1114, %v1111
        %v1154 = vpack.c.b16 %v1115, %v1112
        %v1155 = vpack.c.b16 %v1116, %v1113
        %v1156 = vpack.c.b16 %v1120, %v1117
        %v1157 = vpack.c.b16 %v1121, %v1118
        %v1158 = vpack.c.b16 %v1122, %v1119
        %v1159 = vpack.c.b16 %v1126, %v1123
        %v1160 = vpack.c.b16 %v1127, %v1124
        %v1161 = vpack.c.b16 %v1128, %v1125
        %v1162 = vpack.c.b16 %v1132, %v1129
        %v1163 = vpack.c.b16 %v1133, %v1130
        %v1164 = vpack.c.b16 %v1134, %v1131
        %v1165 = vpack.c.b16 %v1138, %v1135
        %v1166 = vpack.c.b16 %v1139, %v1136
        %v1167 = vpack.c.b16 %v1140, %v1137
        %v1168 = vpack.c.b16 %v1144, %v1141
        %v1169 = vpack.c.b16 %v1145, %v1142
        %v1170 = vpack.c.b16 %v1146, %v1143
        %1195 = vmatprep.subr.bf16.mxu0 %v1148
        %1196 = vmatpush1.bf16.msra.mxu0 %v1147
        %1197 = vmatprep.subr.bf16.mxu0 %v1151
        %1198 = vmatpush1.bf16.msra.mxu0 %v1150
        %1199 = vmatprep.subr.bf16.mxu0 %v1154
        %1200 = vmatpush1.bf16.msra.mxu0 %v1153
        %1201 = vmatprep.subr.bf16.mxu0 %v1157
        %1202 = vmatpush1.bf16.msra.mxu0 %v1156
        %1203 = vmatprep.subr.bf16.mxu0 %v1160
        %1204 = vmatpush1.bf16.msra.mxu0 %v1159
        %1205 = vmatprep.subr.bf16.mxu0 %v1163
        %1206 = vmatpush1.bf16.msra.mxu0 %v1162
        %1207 = vmatprep.subr.bf16.mxu0 %v1166
        %1208 = vmatpush1.bf16.msra.mxu0 %v1165
        %1209 = vmatprep.subr.bf16.mxu0 %v1169
        %1210 = vmatpush1.bf16.msra.mxu0 %v1168
        %1211 = vmatprep.subr.bf16.mxu0 0
        %1212 = vmatpush1.bf16.msra.mxu0 0
        %1213 = vmatprep.subr.bf16.mxu0 0
        %1214 = vmatpush1.bf16.msra.mxu0 0
        %1215 = vmatprep.subr.bf16.mxu0 0
        %1216 = vmatpush1.bf16.msra.mxu0 0
        %1217 = vmatprep.subr.bf16.mxu0 0
        %1218 = vmatpush1.bf16.msra.mxu0 0
        %1219 = vmatprep.subr.bf16.mxu0 0
        %1220 = vmatpush1.bf16.msra.mxu0 0
        %1221 = vmatprep.subr.bf16.mxu0 0
        %1222 = vmatpush1.bf16.msra.mxu0 0
        %1223 = vmatprep.subr.bf16.mxu0 0
        %1224 = vmatpush1.bf16.msra.mxu0 0
        %1225 = vmatprep.subr.bf16.mxu0 0
        %1226 = vmatpush1.bf16.msra.mxu0 0
        %1227 = vmatprep.mubr.bf16.mxu0 0
        %1228 = vmatmul.mubr.bf16.gmra.mrb[0].mxu0 %v1017
        %v1229 = vpop.f32.mrb[0].mxu0
        %v1230 = vadd.f32 %v1055, %v1229
        %v1231 = vpop.f32.mrb[0].mxu0
        %v1232 = vadd.f32 %v1059, %v1231
        %v1233 = vpop.f32.mrb[0].mxu0
        %v1234 = vadd.f32 %v1055, %v1233
        %v1235 = vpop.f32.mrb[0].mxu0
        %v1236 = vadd.f32 %v1059, %v1235
        %1237 = vdwg.mxu0
        %1238 = vmatprep.subr.bf16.mxu0 0
        %1239 = vmatpush1.bf16.msra.mxu0 %v1149
        %1240 = vmatprep.subr.bf16.mxu0 0
        %1241 = vmatpush1.bf16.msra.mxu0 %v1152
        %1242 = vmatprep.subr.bf16.mxu0 0
        %1243 = vmatpush1.bf16.msra.mxu0 %v1155
        %1244 = vmatprep.subr.bf16.mxu0 0
        %1245 = vmatpush1.bf16.msra.mxu0 %v1158
        %1246 = vmatprep.subr.bf16.mxu0 0
        %1247 = vmatpush1.bf16.msra.mxu0 %v1161
        %1248 = vmatprep.subr.bf16.mxu0 0
        %1249 = vmatpush1.bf16.msra.mxu0 %v1164
        %1250 = vmatprep.subr.bf16.mxu0 0
        %1251 = vmatpush1.bf16.msra.mxu0 %v1167
        %1252 = vmatprep.subr.bf16.mxu0 0
        %1253 = vmatpush1.bf16.msra.mxu0 %v1170
        %1254 = vmatprep.subr.bf16.mxu0 0
        %1255 = vmatpush1.bf16.msra.mxu0 0
        %1256 = vmatprep.subr.bf16.mxu0 0
        %1257 = vmatpush1.bf16.msra.mxu0 0
        %1258 = vmatprep.subr.bf16.mxu0 0
        %1259 = vmatpush1.bf16.msra.mxu0 0
        %1260 = vmatprep.subr.bf16.mxu0 0
        %1261 = vmatpush1.bf16.msra.mxu0 0
        %1262 = vmatprep.subr.bf16.mxu0 0
        %1263 = vmatpush1.bf16.msra.mxu0 0
        %1264 = vmatprep.subr.bf16.mxu0 0
        %1265 = vmatpush1.bf16.msra.mxu0 0
        %1266 = vmatprep.subr.bf16.mxu0 0
        %1267 = vmatpush1.bf16.msra.mxu0 0
        %1268 = vmatprep.subr.bf16.mxu0 0
        %1269 = vmatpush1.bf16.msra.mxu0 0
        %1270 = vmatprep.mubr.bf16.mxu0 0
        %1271 = vmatmul.mubr.bf16.gmra.mrb[0].mxu0 %v1017
        %v1272 = vpop.f32.mrb[0].mxu0
        %v1273 = vadd.f32 %v1063, %v1272
        %v1274 = vpop.f32.mrb[0].mxu0
        %v1275 = vpop.f32.mrb[0].mxu0
        %v1276 = vadd.f32 %v1063, %v1275
        %v1277 = vpop.f32.mrb[0].mxu0
        %1278 = vdwg.mxu0
        %v1279 = vpack.c.bf16 %v1234, %v1230
        %v1280 = vpack.c.bf16 %v1236, %v1232
        %v1281 = vpack.c.bf16 %v1276, %v1273
        %v1282 = vld [vmem:[%s842] sm:$0xff]
        %1284 = vrot.lane.b32.xlu0 %v1279, 96
        %v1285 = vpop.permute.xlu0 %1284
        %1286 = vrot.lane.b32.xlu0 %v1279, 64
        %v1287 = vpop.permute.xlu0 %1286
        %1288 = vrot.lane.b32.xlu0 %v1279, 32
        %v1289 = vpop.permute.xlu0 %1288
        %1291 = vrot.lane.b32.xlu0 %v1280, 96
        %v1292 = vpop.permute.xlu0 %1291
        %1293 = vrot.lane.b32.xlu0 %v1280, 64
        %v1294 = vpop.permute.xlu0 %1293
        %1295 = vrot.lane.b32.xlu0 %v1280, 32
        %v1296 = vpop.permute.xlu0 %1295
        %1298 = vrot.lane.b32.xlu0 %v1281, 96
        %v1299 = vpop.permute.xlu0 %1298
        %1300 = vrot.lane.b32.xlu0 %v1281, 64
        %v1301 = vpop.permute.xlu0 %1300
        %1302 = vrot.lane.b32.xlu0 %v1281, 32
        %v1303 = vpop.permute.xlu0 %1302
        %vm1304 = vcmask 261120
        %v1306 = vsel %vm1304, %v1279, 0
        %v1309 = vsel %vm1304, %v1280, 0
        %1311 = vmatprep.subr.bf16.mxu0 0
        %1312 = vmatpush1.bf16.xpose.msra.mxu0 %v1309
        %1313 = vmatprep.subr.bf16.mxu0 0
        %1314 = vmatpush1.bf16.xpose.msra.mxu0 0
        %1315 = vmatprep.subr.bf16.mxu0 0
        %1316 = vmatpush1.bf16.xpose.msra.mxu0 0
        %1317 = vmatprep.subr.bf16.mxu0 0
        %1318 = vmatpush1.bf16.xpose.msra.mxu0 0
        %1319 = vmatprep.subr.bf16.mxu0 0
        %1320 = vmatpush1.bf16.xpose.msra.mxu0 0
        %1321 = vmatprep.subr.bf16.mxu0 0
        %1322 = vmatpush1.bf16.xpose.msra.mxu0 0
        %1323 = vmatprep.subr.bf16.mxu0 0
        %1324 = vmatpush1.bf16.xpose.msra.mxu0 0
        %1325 = vmatprep.subr.bf16.mxu0 0
        %1326 = vmatpush1.bf16.xpose.msra.mxu0 0
        %1327 = vmatprep.subr.bf16.mxu0 0
        %1328 = vmatpush1.bf16.xpose.msra.mxu0 0
        %1329 = vmatprep.subr.bf16.mxu0 0
        %1330 = vmatpush1.bf16.xpose.msra.mxu0 0
        %1331 = vmatprep.subr.bf16.mxu0 0
        %1332 = vmatpush1.bf16.xpose.msra.mxu0 0
        %1333 = vmatprep.subr.bf16.mxu0 0
        %1334 = vmatpush1.bf16.xpose.msra.mxu0 0
        %1335 = vmatprep.subr.bf16.mxu0 0
        %1336 = vmatpush1.bf16.xpose.msra.mxu0 0
        %1337 = vmatprep.subr.bf16.mxu0 0
        %1338 = vmatpush1.bf16.xpose.msra.mxu0 0
        %1339 = vmatprep.subr.bf16.mxu0 0
        %1340 = vmatpush1.bf16.xpose.msra.mxu0 0
        %1341 = vmatprep.subr.bf16.mxu0 0
        %1342 = vmatpush1.bf16.xpose.msra.mxu0 0
        %1343 = vmatprep.mubr.bf16.mxu0 0
        %1344 = vmatmul.mubr.bf16.gmra.mrb[0].mxu0 %v1306
        %v1345 = vpop.f32.mrb[0].mxu0
        %v1346 = vadd.f32 0.0, %v1345
        %v1347 = vpop.f32.mrb[0].mxu0
        %v1348 = vpop.f32.mrb[0].mxu0
        %v1349 = vpop.f32.mrb[0].mxu0
        %1350 = vdwg.mxu0
        %v1352 = vsel %vm1304, %v1285, 0
        %v1355 = vsel %vm1304, %v1292, 0
        %1357 = vmatprep.subr.bf16.mxu0 0
        %1358 = vmatpush1.bf16.xpose.msra.mxu0 %v1355
        %1359 = vmatprep.subr.bf16.mxu0 0
        %1360 = vmatpush1.bf16.xpose.msra.mxu0 0
        %1361 = vmatprep.subr.bf16.mxu0 0
        %1362 = vmatpush1.bf16.xpose.msra.mxu0 0
        %1363 = vmatprep.subr.bf16.mxu0 0
        %1364 = vmatpush1.bf16.xpose.msra.mxu0 0
        %1365 = vmatprep.subr.bf16.mxu0 0
        %1366 = vmatpush1.bf16.xpose.msra.mxu0 0
        %1367 = vmatprep.subr.bf16.mxu0 0
        %1368 = vmatpush1.bf16.xpose.msra.mxu0 0
        %1369 = vmatprep.subr.bf16.mxu0 0
        %1370 = vmatpush1.bf16.xpose.msra.mxu0 0
        %1371 = vmatprep.subr.bf16.mxu0 0
        %1372 = vmatpush1.bf16.xpose.msra.mxu0 0
        %1373 = vmatprep.subr.bf16.mxu0 0
        %1374 = vmatpush1.bf16.xpose.msra.mxu0 0
        %1375 = vmatprep.subr.bf16.mxu0 0
        %1376 = vmatpush1.bf16.xpose.msra.mxu0 0
        %1377 = vmatprep.subr.bf16.mxu0 0
        %1378 = vmatpush1.bf16.xpose.msra.mxu0 0
        %1379 = vmatprep.subr.bf16.mxu0 0
        %1380 = vmatpush1.bf16.xpose.msra.mxu0 0
        %1381 = vmatprep.subr.bf16.mxu0 0
        %1382 = vmatpush1.bf16.xpose.msra.mxu0 0
        %1383 = vmatprep.subr.bf16.mxu0 0
        %1384 = vmatpush1.bf16.xpose.msra.mxu0 0
        %1385 = vmatprep.subr.bf16.mxu0 0
        %1386 = vmatpush1.bf16.xpose.msra.mxu0 0
        %1387 = vmatprep.subr.bf16.mxu0 0
        %1388 = vmatpush1.bf16.xpose.msra.mxu0 0
        %1389 = vmatprep.mubr.bf16.mxu0 0
        %1390 = vmatmul.mubr.bf16.gmra.mrb[0].mxu0 %v1352
        %v1391 = vpop.f32.mrb[0].mxu0
        %v1392 = vadd.f32 0.0, %v1391
        %v1393 = vpop.f32.mrb[0].mxu0
        %v1394 = vpop.f32.mrb[0].mxu0
        %v1395 = vpop.f32.mrb[0].mxu0
        %1396 = vdwg.mxu0
        %v1398 = vsel %vm1304, %v1287, 0
        %v1401 = vsel %vm1304, %v1294, 0
        %1403 = vmatprep.subr.bf16.mxu0 0
        %1404 = vmatpush1.bf16.xpose.msra.mxu0 %v1401
        %1405 = vmatprep.subr.bf16.mxu0 0
        %1406 = vmatpush1.bf16.xpose.msra.mxu0 0
        %1407 = vmatprep.subr.bf16.mxu0 0
        %1408 = vmatpush1.bf16.xpose.msra.mxu0 0
        %1409 = vmatprep.subr.bf16.mxu0 0
        %1410 = vmatpush1.bf16.xpose.msra.mxu0 0
        %1411 = vmatprep.subr.bf16.mxu0 0
        %1412 = vmatpush1.bf16.xpose.msra.mxu0 0
        %1413 = vmatprep.subr.bf16.mxu0 0
        %1414 = vmatpush1.bf16.xpose.msra.mxu0 0
        %1415 = vmatprep.subr.bf16.mxu0 0
        %1416 = vmatpush1.bf16.xpose.msra.mxu0 0
        %1417 = vmatprep.subr.bf16.mxu0 0
        %1418 = vmatpush1.bf16.xpose.msra.mxu0 0
        %1419 = vmatprep.subr.bf16.mxu0 0
        %1420 = vmatpush1.bf16.xpose.msra.mxu0 0
        %1421 = vmatprep.subr.bf16.mxu0 0
        %1422 = vmatpush1.bf16.xpose.msra.mxu0 0
        %1423 = vmatprep.subr.bf16.mxu0 0
        %1424 = vmatpush1.bf16.xpose.msra.mxu0 0
        %1425 = vmatprep.subr.bf16.mxu0 0
        %1426 = vmatpush1.bf16.xpose.msra.mxu0 0
        %1427 = vmatprep.subr.bf16.mxu0 0
        %1428 = vmatpush1.bf16.xpose.msra.mxu0 0
        %1429 = vmatprep.subr.bf16.mxu0 0
        %1430 = vmatpush1.bf16.xpose.msra.mxu0 0
        %1431 = vmatprep.subr.bf16.mxu0 0
        %1432 = vmatpush1.bf16.xpose.msra.mxu0 0
        %1433 = vmatprep.subr.bf16.mxu0 0
        %1434 = vmatpush1.bf16.xpose.msra.mxu0 0
        %1435 = vmatprep.mubr.bf16.mxu0 0
        %1436 = vmatmul.mubr.bf16.gmra.mrb[0].mxu0 %v1398
        %v1437 = vpop.f32.mrb[0].mxu0
        %v1438 = vadd.f32 0.0, %v1437
        %v1439 = vpop.f32.mrb[0].mxu0
        %v1440 = vpop.f32.mrb[0].mxu0
        %v1441 = vpop.f32.mrb[0].mxu0
        %1442 = vdwg.mxu0
        %v1444 = vsel %vm1304, %v1289, 0
        %v1447 = vsel %vm1304, %v1296, 0
        %1449 = vmatprep.subr.bf16.mxu0 0
        %1450 = vmatpush1.bf16.xpose.msra.mxu0 %v1447
        %1451 = vmatprep.subr.bf16.mxu0 0
        %1452 = vmatpush1.bf16.xpose.msra.mxu0 0
        %1453 = vmatprep.subr.bf16.mxu0 0
        %1454 = vmatpush1.bf16.xpose.msra.mxu0 0
        %1455 = vmatprep.subr.bf16.mxu0 0
        %1456 = vmatpush1.bf16.xpose.msra.mxu0 0
        %1457 = vmatprep.subr.bf16.mxu0 0
        %1458 = vmatpush1.bf16.xpose.msra.mxu0 0
        %1459 = vmatprep.subr.bf16.mxu0 0
        %1460 = vmatpush1.bf16.xpose.msra.mxu0 0
        %1461 = vmatprep.subr.bf16.mxu0 0
        %1462 = vmatpush1.bf16.xpose.msra.mxu0 0
        %1463 = vmatprep.subr.bf16.mxu0 0
        %1464 = vmatpush1.bf16.xpose.msra.mxu0 0
        %1465 = vmatprep.subr.bf16.mxu0 0
        %1466 = vmatpush1.bf16.xpose.msra.mxu0 0
        %1467 = vmatprep.subr.bf16.mxu0 0
        %1468 = vmatpush1.bf16.xpose.msra.mxu0 0
        %1469 = vmatprep.subr.bf16.mxu0 0
        %1470 = vmatpush1.bf16.xpose.msra.mxu0 0
        %1471 = vmatprep.subr.bf16.mxu0 0
        %1472 = vmatpush1.bf16.xpose.msra.mxu0 0
        %1473 = vmatprep.subr.bf16.mxu0 0
        %1474 = vmatpush1.bf16.xpose.msra.mxu0 0
        %1475 = vmatprep.subr.bf16.mxu0 0
        %1476 = vmatpush1.bf16.xpose.msra.mxu0 0
        %1477 = vmatprep.subr.bf16.mxu0 0
        %1478 = vmatpush1.bf16.xpose.msra.mxu0 0
        %1479 = vmatprep.subr.bf16.mxu0 0
        %1480 = vmatpush1.bf16.xpose.msra.mxu0 0
        %1481 = vmatprep.mubr.bf16.mxu0 0
        %1482 = vmatmul.mubr.bf16.gmra.mrb[0].mxu0 %v1444
        %v1483 = vpop.f32.mrb[0].mxu0
        %v1484 = vadd.f32 0.0, %v1483
        %v1485 = vpop.f32.mrb[0].mxu0
        %v1486 = vpop.f32.mrb[0].mxu0
        %v1487 = vpop.f32.mrb[0].mxu0
        %1488 = vdwg.mxu0
        %v1489 = vmul.f32 %v1346, 0.17677669
        %v1490 = vmul.f32 %v1392, 0.17677669
        %v1491 = vmul.f32 %v1438, 0.17677669
        %v1492 = vmul.f32 %v1484, 0.17677669
        %v1493 = vadd.f32 %v1489, %v1282
        %v1494 = vadd.f32 %v1490, %v1282
        %v1495 = vadd.f32 %v1491, %v1282
        %v1496 = vadd.f32 %v1492, %v1282
        %vm1497 = vcmask 64512
        %v1498 = vsel %vm1497, %v1493, -inf
        %1499 = vmax.xlane.f32.xlu0 %v1498
        %v1500 = vpop.xlane.xlu0 %1499
        %v1501 = vsel %vm1497, %v1494, -inf
        %1502 = vmax.xlane.f32.xlu0 %v1501
        %v1503 = vpop.xlane.xlu0 %1502
        %v1504 = vsel %vm1497, %v1495, -inf
        %1505 = vmax.xlane.f32.xlu0 %v1504
        %v1506 = vpop.xlane.xlu0 %1505
        %v1507 = vsel %vm1497, %v1496, -inf
        %1508 = vmax.xlane.f32.xlu0 %v1507
        %v1509 = vpop.xlane.xlu0 %1508
        %v1510 = vsub.f32 %v1493, %v1500
        %v1511 = vsub.f32 %v1494, %v1503
        %v1512 = vsub.f32 %v1495, %v1506
        %v1513 = vsub.f32 %v1496, %v1509
        %v1514 = vmul.f32 %v1510, 1.442695
        %v1515 = vpow.pop %v1514
        %v1516 = vmul.f32 %v1511, 1.442695
        %v1517 = vpow.pop %v1516
        %v1518 = vmul.f32 %v1512, 1.442695
        %v1519 = vpow.pop %v1518
        %v1520 = vmul.f32 %v1513, 1.442695
        %v1521 = vpow.pop %v1520
        %v1522 = vsel %vm1497, %v1515, 0.0
        %1523 = vadd.xlane.f32.xlu0 %v1522
        %v1524 = vpop.xlane.xlu0 %1523
        %v1525 = vsel %vm1497, %v1517, 0.0
        %1526 = vadd.xlane.f32.xlu0 %v1525
        %v1527 = vpop.xlane.xlu0 %1526
        %v1528 = vsel %vm1497, %v1519, 0.0
        %1529 = vadd.xlane.f32.xlu0 %v1528
        %v1530 = vpop.xlane.xlu0 %1529
        %v1531 = vsel %vm1497, %v1521, 0.0
        %1532 = vadd.xlane.f32.xlu0 %v1531
        %v1533 = vpop.xlane.xlu0 %1532
        %v1534 = vrcp.pop %v1524
        %v1535 = vrcp.pop %v1527
        %v1536 = vrcp.pop %v1530
        %v1537 = vrcp.pop %v1533
        %v1538 = vmul.f32 %v1515, %v1534
        %v1539 = vmul.f32 %v1517, %v1535
        %v1540 = vmul.f32 %v1519, %v1536
        %v1541 = vmul.f32 %v1521, %v1537
        %v1542 = vpack.c.bf16 %v1538, %v1538
        %v1543 = vpack.c.bf16 %v1539, %v1539
        %v1544 = vpack.c.bf16 %v1540, %v1540
        %v1545 = vpack.c.bf16 %v1541, %v1541
        %v1547 = vsel %vm1497, %v1542, 0
        %vm1549 = vcmask 1043456
        %v1551 = vsel %vm1549, %v1281, 0
        %1553 = vmatprep.subr.bf16.mxu0 0
        %1554 = vmatpush1.bf16.msra.mxu0 %v1551
        %1555 = vmatprep.subr.bf16.mxu0 0
        %1556 = vmatpush1.bf16.msra.mxu0 0
        %1557 = vmatprep.subr.bf16.mxu0 0
        %1558 = vmatpush1.bf16.msra.mxu0 0
        %1559 = vmatprep.subr.bf16.mxu0 0
        %1560 = vmatpush1.bf16.msra.mxu0 0
        %1561 = vmatprep.subr.bf16.mxu0 0
        %1562 = vmatpush1.bf16.msra.mxu0 0
        %1563 = vmatprep.subr.bf16.mxu0 0
        %1564 = vmatpush1.bf16.msra.mxu0 0
        %1565 = vmatprep.subr.bf16.mxu0 0
        %1566 = vmatpush1.bf16.msra.mxu0 0
        %1567 = vmatprep.subr.bf16.mxu0 0
        %1568 = vmatpush1.bf16.msra.mxu0 0
        %1569 = vmatprep.subr.bf16.mxu0 0
        %1570 = vmatpush1.bf16.msra.mxu0 0
        %1571 = vmatprep.subr.bf16.mxu0 0
        %1572 = vmatpush1.bf16.msra.mxu0 0
        %1573 = vmatprep.subr.bf16.mxu0 0
        %1574 = vmatpush1.bf16.msra.mxu0 0
        %1575 = vmatprep.subr.bf16.mxu0 0
        %1576 = vmatpush1.bf16.msra.mxu0 0
        %1577 = vmatprep.subr.bf16.mxu0 0
        %1578 = vmatpush1.bf16.msra.mxu0 0
        %1579 = vmatprep.subr.bf16.mxu0 0
        %1580 = vmatpush1.bf16.msra.mxu0 0
        %1581 = vmatprep.subr.bf16.mxu0 0
        %1582 = vmatpush1.bf16.msra.mxu0 0
        %1583 = vmatprep.subr.bf16.mxu0 0
        %1584 = vmatpush1.bf16.msra.mxu0 0
        %1585 = vmatprep.mubr.bf16.mxu0 0
        %1586 = vmatmul.mubr.bf16.gmra.mrb[0].mxu0 %v1547
        %v1587 = vpop.f32.mrb[0].mxu0
        %v1588 = vadd.f32 0.0, %v1587
        %v1589 = vpop.f32.mrb[0].mxu0
        %v1590 = vpop.f32.mrb[0].mxu0
        %v1591 = vpop.f32.mrb[0].mxu0
        %1592 = vdwg.mxu0
        %v1594 = vsel %vm1497, %v1543, 0
        %v1597 = vsel %vm1549, %v1299, 0
        %1599 = vmatprep.subr.bf16.mxu0 0
        %1600 = vmatpush1.bf16.msra.mxu0 %v1597
        %1601 = vmatprep.subr.bf16.mxu0 0
        %1602 = vmatpush1.bf16.msra.mxu0 0
        %1603 = vmatprep.subr.bf16.mxu0 0
        %1604 = vmatpush1.bf16.msra.mxu0 0
        %1605 = vmatprep.subr.bf16.mxu0 0
        %1606 = vmatpush1.bf16.msra.mxu0 0
        %1607 = vmatprep.subr.bf16.mxu0 0
        %1608 = vmatpush1.bf16.msra.mxu0 0
        %1609 = vmatprep.subr.bf16.mxu0 0
        %1610 = vmatpush1.bf16.msra.mxu0 0
        %1611 = vmatprep.subr.bf16.mxu0 0
        %1612 = vmatpush1.bf16.msra.mxu0 0
        %1613 = vmatprep.subr.bf16.mxu0 0
        %1614 = vmatpush1.bf16.msra.mxu0 0
        %1615 = vmatprep.subr.bf16.mxu0 0
        %1616 = vmatpush1.bf16.msra.mxu0 0
        %1617 = vmatprep.subr.bf16.mxu0 0
        %1618 = vmatpush1.bf16.msra.mxu0 0
        %1619 = vmatprep.subr.bf16.mxu0 0
        %1620 = vmatpush1.bf16.msra.mxu0 0
        %1621 = vmatprep.subr.bf16.mxu0 0
        %1622 = vmatpush1.bf16.msra.mxu0 0
        %1623 = vmatprep.subr.bf16.mxu0 0
        %1624 = vmatpush1.bf16.msra.mxu0 0
        %1625 = vmatprep.subr.bf16.mxu0 0
        %1626 = vmatpush1.bf16.msra.mxu0 0
        %1627 = vmatprep.subr.bf16.mxu0 0
        %1628 = vmatpush1.bf16.msra.mxu0 0
        %1629 = vmatprep.subr.bf16.mxu0 0
        %1630 = vmatpush1.bf16.msra.mxu0 0
        %1631 = vmatprep.mubr.bf16.mxu0 0
        %1632 = vmatmul.mubr.bf16.gmra.mrb[0].mxu0 %v1594
        %v1633 = vpop.f32.mrb[0].mxu0
        %v1634 = vadd.f32 0.0, %v1633
        %v1635 = vpop.f32.mrb[0].mxu0
        %v1636 = vpop.f32.mrb[0].mxu0
        %v1637 = vpop.f32.mrb[0].mxu0
        %1638 = vdwg.mxu0
        %v1640 = vsel %vm1497, %v1544, 0
        %v1643 = vsel %vm1549, %v1301, 0
        %1645 = vmatprep.subr.bf16.mxu0 0
        %1646 = vmatpush1.bf16.msra.mxu0 %v1643
        %1647 = vmatprep.subr.bf16.mxu0 0
        %1648 = vmatpush1.bf16.msra.mxu0 0
        %1649 = vmatprep.subr.bf16.mxu0 0
        %1650 = vmatpush1.bf16.msra.mxu0 0
        %1651 = vmatprep.subr.bf16.mxu0 0
        %1652 = vmatpush1.bf16.msra.mxu0 0
        %1653 = vmatprep.subr.bf16.mxu0 0
        %1654 = vmatpush1.bf16.msra.mxu0 0
        %1655 = vmatprep.subr.bf16.mxu0 0
        %1656 = vmatpush1.bf16.msra.mxu0 0
        %1657 = vmatprep.subr.bf16.mxu0 0
        %1658 = vmatpush1.bf16.msra.mxu0 0
        %1659 = vmatprep.subr.bf16.mxu0 0
        %1660 = vmatpush1.bf16.msra.mxu0 0
        %1661 = vmatprep.subr.bf16.mxu0 0
        %1662 = vmatpush1.bf16.msra.mxu0 0
        %1663 = vmatprep.subr.bf16.mxu0 0
        %1664 = vmatpush1.bf16.msra.mxu0 0
        %1665 = vmatprep.subr.bf16.mxu0 0
        %1666 = vmatpush1.bf16.msra.mxu0 0
        %1667 = vmatprep.subr.bf16.mxu0 0
        %1668 = vmatpush1.bf16.msra.mxu0 0
        %1669 = vmatprep.subr.bf16.mxu0 0
        %1670 = vmatpush1.bf16.msra.mxu0 0
        %1671 = vmatprep.subr.bf16.mxu0 0
        %1672 = vmatpush1.bf16.msra.mxu0 0
        %1673 = vmatprep.subr.bf16.mxu0 0
        %1674 = vmatpush1.bf16.msra.mxu0 0
        %1675 = vmatprep.subr.bf16.mxu0 0
        %1676 = vmatpush1.bf16.msra.mxu0 0
        %1677 = vmatprep.mubr.bf16.mxu0 0
        %1678 = vmatmul.mubr.bf16.gmra.mrb[0].mxu0 %v1640
        %v1679 = vpop.f32.mrb[0].mxu0
        %v1680 = vadd.f32 0.0, %v1679
        %v1681 = vpop.f32.mrb[0].mxu0
        %v1682 = vpop.f32.mrb[0].mxu0
        %v1683 = vpop.f32.mrb[0].mxu0
        %1684 = vdwg.mxu0
        %v1686 = vsel %vm1497, %v1545, 0
        %v1689 = vsel %vm1549, %v1303, 0
        %1691 = vmatprep.subr.bf16.mxu0 0
        %1692 = vmatpush1.bf16.msra.mxu0 %v1689
        %1693 = vmatprep.subr.bf16.mxu0 0
        %1694 = vmatpush1.bf16.msra.mxu0 0
        %1695 = vmatprep.subr.bf16.mxu0 0
        %1696 = vmatpush1.bf16.msra.mxu0 0
        %1697 = vmatprep.subr.bf16.mxu0 0
        %1698 = vmatpush1.bf16.msra.mxu0 0
        %1699 = vmatprep.subr.bf16.mxu0 0
        %1700 = vmatpush1.bf16.msra.mxu0 0
        %1701 = vmatprep.subr.bf16.mxu0 0
        %1702 = vmatpush1.bf16.msra.mxu0 0
        %1703 = vmatprep.subr.bf16.mxu0 0
        %1704 = vmatpush1.bf16.msra.mxu0 0
        %1705 = vmatprep.subr.bf16.mxu0 0
        %1706 = vmatpush1.bf16.msra.mxu0 0
        %1707 = vmatprep.subr.bf16.mxu0 0
        %1708 = vmatpush1.bf16.msra.mxu0 0
        %1709 = vmatprep.subr.bf16.mxu0 0
        %1710 = vmatpush1.bf16.msra.mxu0 0
        %1711 = vmatprep.subr.bf16.mxu0 0
        %1712 = vmatpush1.bf16.msra.mxu0 0
        %1713 = vmatprep.subr.bf16.mxu0 0
        %1714 = vmatpush1.bf16.msra.mxu0 0
        %1715 = vmatprep.subr.bf16.mxu0 0
        %1716 = vmatpush1.bf16.msra.mxu0 0
        %1717 = vmatprep.subr.bf16.mxu0 0
        %1718 = vmatpush1.bf16.msra.mxu0 0
        %1719 = vmatprep.subr.bf16.mxu0 0
        %1720 = vmatpush1.bf16.msra.mxu0 0
        %1721 = vmatprep.subr.bf16.mxu0 0
        %1722 = vmatpush1.bf16.msra.mxu0 0
        %1723 = vmatprep.mubr.bf16.mxu0 0
        %1724 = vmatmul.mubr.bf16.gmra.mrb[0].mxu0 %v1686
        %v1725 = vpop.f32.mrb[0].mxu0
        %v1726 = vadd.f32 0.0, %v1725
        %v1727 = vpop.f32.mrb[0].mxu0
        %v1728 = vpop.f32.mrb[0].mxu0
        %v1729 = vpop.f32.mrb[0].mxu0
        %1730 = vdwg.mxu0
        %1732 = vrot.lane.b32.xlu0 %v1634, 32
        %v1733 = vpop.permute.xlu0 %1732
        %1736 = vrot.lane.b32.xlu0 %v1680, 64
        %v1737 = vpop.permute.xlu0 %1736
        %1740 = vrot.lane.b32.xlu0 %v1726, 96
        %v1741 = vpop.permute.xlu0 %1740
        %v1743 = vsel %vm1304, %v1588, %v1733
        %vm1744 = vcmask 523264
        %v1745 = vsel %vm1744, %v1743, %v1737
        %vm1746 = vcmask 785408
        %v1747 = vsel %vm1746, %v1745, %v1741
        %s1748 = scalar_lea.vmem %s842, 8 [#allocation7]
        %v1749 = vld [vmem:[%s1748] sm:$0xff]
        %v1750 = vrot.slane %v1279, 4
        %v1751 = vrot.slane %v1280, 4
        %v1753 = vsel %vm1304, %v1750, 0
        %v1756 = vsel %vm1304, %v1751, 0
        %1758 = vmatprep.subr.bf16.mxu0 0
        %1759 = vmatpush1.bf16.xpose.msra.mxu0 %v1756
        %1760 = vmatprep.subr.bf16.mxu0 0
        %1761 = vmatpush1.bf16.xpose.msra.mxu0 0
        %1762 = vmatprep.subr.bf16.mxu0 0
        %1763 = vmatpush1.bf16.xpose.msra.mxu0 0
        %1764 = vmatprep.subr.bf16.mxu0 0
        %1765 = vmatpush1.bf16.xpose.msra.mxu0 0
        %1766 = vmatprep.subr.bf16.mxu0 0
        %1767 = vmatpush1.bf16.xpose.msra.mxu0 0
        %1768 = vmatprep.subr.bf16.mxu0 0
        %1769 = vmatpush1.bf16.xpose.msra.mxu0 0
        %1770 = vmatprep.subr.bf16.mxu0 0
        %1771 = vmatpush1.bf16.xpose.msra.mxu0 0
        %1772 = vmatprep.subr.bf16.mxu0 0
        %1773 = vmatpush1.bf16.xpose.msra.mxu0 0
        %1774 = vmatprep.subr.bf16.mxu0 0
        %1775 = vmatpush1.bf16.xpose.msra.mxu0 0
        %1776 = vmatprep.subr.bf16.mxu0 0
        %1777 = vmatpush1.bf16.xpose.msra.mxu0 0
        %1778 = vmatprep.subr.bf16.mxu0 0
        %1779 = vmatpush1.bf16.xpose.msra.mxu0 0
        %1780 = vmatprep.subr.bf16.mxu0 0
        %1781 = vmatpush1.bf16.xpose.msra.mxu0 0
        %1782 = vmatprep.subr.bf16.mxu0 0
        %1783 = vmatpush1.bf16.xpose.msra.mxu0 0
        %1784 = vmatprep.subr.bf16.mxu0 0
        %1785 = vmatpush1.bf16.xpose.msra.mxu0 0
        %1786 = vmatprep.subr.bf16.mxu0 0
        %1787 = vmatpush1.bf16.xpose.msra.mxu0 0
        %1788 = vmatprep.subr.bf16.mxu0 0
        %1789 = vmatpush1.bf16.xpose.msra.mxu0 0
        %1790 = vmatprep.mubr.bf16.mxu0 0
        %1791 = vmatmul.mubr.bf16.gmra.mrb[0].mxu0 %v1753
        %v1792 = vpop.f32.mrb[0].mxu0
        %v1793 = vadd.f32 0.0, %v1792
        %v1794 = vpop.f32.mrb[0].mxu0
        %v1795 = vpop.f32.mrb[0].mxu0
        %v1796 = vpop.f32.mrb[0].mxu0
        %1797 = vdwg.mxu0
        %v1798 = vrot.slane %v1285, 4
        %v1799 = vrot.slane %v1292, 4
        %v1801 = vsel %vm1304, %v1798, 0
        %v1804 = vsel %vm1304, %v1799, 0
        %1806 = vmatprep.subr.bf16.mxu0 0
        %1807 = vmatpush1.bf16.xpose.msra.mxu0 %v1804
        %1808 = vmatprep.subr.bf16.mxu0 0
        %1809 = vmatpush1.bf16.xpose.msra.mxu0 0
        %1810 = vmatprep.subr.bf16.mxu0 0
        %1811 = vmatpush1.bf16.xpose.msra.mxu0 0
        %1812 = vmatprep.subr.bf16.mxu0 0
        %1813 = vmatpush1.bf16.xpose.msra.mxu0 0
        %1814 = vmatprep.subr.bf16.mxu0 0
        %1815 = vmatpush1.bf16.xpose.msra.mxu0 0
        %1816 = vmatprep.subr.bf16.mxu0 0
        %1817 = vmatpush1.bf16.xpose.msra.mxu0 0
        %1818 = vmatprep.subr.bf16.mxu0 0
        %1819 = vmatpush1.bf16.xpose.msra.mxu0 0
        %1820 = vmatprep.subr.bf16.mxu0 0
        %1821 = vmatpush1.bf16.xpose.msra.mxu0 0
        %1822 = vmatprep.subr.bf16.mxu0 0
        %1823 = vmatpush1.bf16.xpose.msra.mxu0 0
        %1824 = vmatprep.subr.bf16.mxu0 0
        %1825 = vmatpush1.bf16.xpose.msra.mxu0 0
        %1826 = vmatprep.subr.bf16.mxu0 0
        %1827 = vmatpush1.bf16.xpose.msra.mxu0 0
        %1828 = vmatprep.subr.bf16.mxu0 0
        %1829 = vmatpush1.bf16.xpose.msra.mxu0 0
        %1830 = vmatprep.subr.bf16.mxu0 0
        %1831 = vmatpush1.bf16.xpose.msra.mxu0 0
        %1832 = vmatprep.subr.bf16.mxu0 0
        %1833 = vmatpush1.bf16.xpose.msra.mxu0 0
        %1834 = vmatprep.subr.bf16.mxu0 0
        %1835 = vmatpush1.bf16.xpose.msra.mxu0 0
        %1836 = vmatprep.subr.bf16.mxu0 0
        %1837 = vmatpush1.bf16.xpose.msra.mxu0 0
        %1838 = vmatprep.mubr.bf16.mxu0 0
        %1839 = vmatmul.mubr.bf16.gmra.mrb[0].mxu0 %v1801
        %v1840 = vpop.f32.mrb[0].mxu0
        %v1841 = vadd.f32 0.0, %v1840
        %v1842 = vpop.f32.mrb[0].mxu0
        %v1843 = vpop.f32.mrb[0].mxu0
        %v1844 = vpop.f32.mrb[0].mxu0
        %1845 = vdwg.mxu0
        %v1846 = vrot.slane %v1287, 4
        %v1847 = vrot.slane %v1294, 4
        %v1849 = vsel %vm1304, %v1846, 0
        %v1852 = vsel %vm1304, %v1847, 0
        %1854 = vmatprep.subr.bf16.mxu0 0
        %1855 = vmatpush1.bf16.xpose.msra.mxu0 %v1852
        %1856 = vmatprep.subr.bf16.mxu0 0
        %1857 = vmatpush1.bf16.xpose.msra.mxu0 0
        %1858 = vmatprep.subr.bf16.mxu0 0
        %1859 = vmatpush1.bf16.xpose.msra.mxu0 0
        %1860 = vmatprep.subr.bf16.mxu0 0
        %1861 = vmatpush1.bf16.xpose.msra.mxu0 0
        %1862 = vmatprep.subr.bf16.mxu0 0
        %1863 = vmatpush1.bf16.xpose.msra.mxu0 0
        %1864 = vmatprep.subr.bf16.mxu0 0
        %1865 = vmatpush1.bf16.xpose.msra.mxu0 0
        %1866 = vmatprep.subr.bf16.mxu0 0
        %1867 = vmatpush1.bf16.xpose.msra.mxu0 0
        %1868 = vmatprep.subr.bf16.mxu0 0
        %1869 = vmatpush1.bf16.xpose.msra.mxu0 0
        %1870 = vmatprep.subr.bf16.mxu0 0
        %1871 = vmatpush1.bf16.xpose.msra.mxu0 0
        %1872 = vmatprep.subr.bf16.mxu0 0
        %1873 = vmatpush1.bf16.xpose.msra.mxu0 0
        %1874 = vmatprep.subr.bf16.mxu0 0
        %1875 = vmatpush1.bf16.xpose.msra.mxu0 0
        %1876 = vmatprep.subr.bf16.mxu0 0
        %1877 = vmatpush1.bf16.xpose.msra.mxu0 0
        %1878 = vmatprep.subr.bf16.mxu0 0
        %1879 = vmatpush1.bf16.xpose.msra.mxu0 0
        %1880 = vmatprep.subr.bf16.mxu0 0
        %1881 = vmatpush1.bf16.xpose.msra.mxu0 0
        %1882 = vmatprep.subr.bf16.mxu0 0
        %1883 = vmatpush1.bf16.xpose.msra.mxu0 0
        %1884 = vmatprep.subr.bf16.mxu0 0
        %1885 = vmatpush1.bf16.xpose.msra.mxu0 0
        %1886 = vmatprep.mubr.bf16.mxu0 0
        %1887 = vmatmul.mubr.bf16.gmra.mrb[0].mxu0 %v1849
        %v1888 = vpop.f32.mrb[0].mxu0
        %v1889 = vadd.f32 0.0, %v1888
        %v1890 = vpop.f32.mrb[0].mxu0
        %v1891 = vpop.f32.mrb[0].mxu0
        %v1892 = vpop.f32.mrb[0].mxu0
        %1893 = vdwg.mxu0
        %v1894 = vrot.slane %v1289, 4
        %v1895 = vrot.slane %v1296, 4
        %v1897 = vsel %vm1304, %v1894, 0
        %v1900 = vsel %vm1304, %v1895, 0
        %1902 = vmatprep.subr.bf16.mxu0 0
        %1903 = vmatpush1.bf16.xpose.msra.mxu0 %v1900
        %1904 = vmatprep.subr.bf16.mxu0 0
        %1905 = vmatpush1.bf16.xpose.msra.mxu0 0
        %1906 = vmatprep.subr.bf16.mxu0 0
        %1907 = vmatpush1.bf16.xpose.msra.mxu0 0
        %1908 = vmatprep.subr.bf16.mxu0 0
        %1909 = vmatpush1.bf16.xpose.msra.mxu0 0
        %1910 = vmatprep.subr.bf16.mxu0 0
        %1911 = vmatpush1.bf16.xpose.msra.mxu0 0
        %1912 = vmatprep.subr.bf16.mxu0 0
        %1913 = vmatpush1.bf16.xpose.msra.mxu0 0
        %1914 = vmatprep.subr.bf16.mxu0 0
        %1915 = vmatpush1.bf16.xpose.msra.mxu0 0
        %1916 = vmatprep.subr.bf16.mxu0 0
        %1917 = vmatpush1.bf16.xpose.msra.mxu0 0
        %1918 = vmatprep.subr.bf16.mxu0 0
        %1919 = vmatpush1.bf16.xpose.msra.mxu0 0
        %1920 = vmatprep.subr.bf16.mxu0 0
        %1921 = vmatpush1.bf16.xpose.msra.mxu0 0
        %1922 = vmatprep.subr.bf16.mxu0 0
        %1923 = vmatpush1.bf16.xpose.msra.mxu0 0
        %1924 = vmatprep.subr.bf16.mxu0 0
        %1925 = vmatpush1.bf16.xpose.msra.mxu0 0
        %1926 = vmatprep.subr.bf16.mxu0 0
        %1927 = vmatpush1.bf16.xpose.msra.mxu0 0
        %1928 = vmatprep.subr.bf16.mxu0 0
        %1929 = vmatpush1.bf16.xpose.msra.mxu0 0
        %1930 = vmatprep.subr.bf16.mxu0 0
        %1931 = vmatpush1.bf16.xpose.msra.mxu0 0
        %1932 = vmatprep.subr.bf16.mxu0 0
        %1933 = vmatpush1.bf16.xpose.msra.mxu0 0
        %1934 = vmatprep.mubr.bf16.mxu0 0
        %1935 = vmatmul.mubr.bf16.gmra.mrb[0].mxu0 %v1897
        %v1936 = vpop.f32.mrb[0].mxu0
        %v1937 = vadd.f32 0.0, %v1936
        %v1938 = vpop.f32.mrb[0].mxu0
        %v1939 = vpop.f32.mrb[0].mxu0
        %v1940 = vpop.f32.mrb[0].mxu0
        %1941 = vdwg.mxu0
        %v1942 = vmul.f32 %v1793, 0.17677669
        %v1943 = vmul.f32 %v1841, 0.17677669
        %v1944 = vmul.f32 %v1889, 0.17677669
        %v1945 = vmul.f32 %v1937, 0.17677669
        %v1946 = vadd.f32 %v1942, %v1749
        %v1947 = vadd.f32 %v1943, %v1749
        %v1948 = vadd.f32 %v1944, %v1749
        %v1949 = vadd.f32 %v1945, %v1749
        %v1950 = vsel %vm1497, %v1946, -inf
        %1951 = vmax.xlane.f32.xlu0 %v1950
        %v1952 = vpop.xlane.xlu0 %1951
        %v1953 = vsel %vm1497, %v1947, -inf
        %1954 = vmax.xlane.f32.xlu0 %v1953
        %v1955 = vpop.xlane.xlu0 %1954
        %v1956 = vsel %vm1497, %v1948, -inf
        %1957 = vmax.xlane.f32.xlu0 %v1956
        %v1958 = vpop.xlane.xlu0 %1957
        %v1959 = vsel %vm1497, %v1949, -inf
        %1960 = vmax.xlane.f32.xlu0 %v1959
        %v1961 = vpop.xlane.xlu0 %1960
        %v1962 = vsub.f32 %v1946, %v1952
        %v1963 = vsub.f32 %v1947, %v1955
        %v1964 = vsub.f32 %v1948, %v1958
        %v1965 = vsub.f32 %v1949, %v1961
        %v1966 = vmul.f32 %v1962, 1.442695
        %v1967 = vpow.pop %v1966
        %v1968 = vmul.f32 %v1963, 1.442695
        %v1969 = vpow.pop %v1968
        %v1970 = vmul.f32 %v1964, 1.442695
        %v1971 = vpow.pop %v1970
        %v1972 = vmul.f32 %v1965, 1.442695
        %v1973 = vpow.pop %v1972
        %v1974 = vsel %vm1497, %v1967, 0.0
        %1975 = vadd.xlane.f32.xlu0 %v1974
        %v1976 = vpop.xlane.xlu0 %1975
        %v1977 = vsel %vm1497, %v1969, 0.0
        %1978 = vadd.xlane.f32.xlu0 %v1977
        %v1979 = vpop.xlane.xlu0 %1978
        %v1980 = vsel %vm1497, %v1971, 0.0
        %1981 = vadd.xlane.f32.xlu0 %v1980
        %v1982 = vpop.xlane.xlu0 %1981
        %v1983 = vsel %vm1497, %v1973, 0.0
        %1984 = vadd.xlane.f32.xlu0 %v1983
        %v1985 = vpop.xlane.xlu0 %1984
        %v1986 = vrcp.pop %v1976
        %v1987 = vrcp.pop %v1979
        %v1988 = vrcp.pop %v1982
        %v1989 = vrcp.pop %v1985
        %v1990 = vmul.f32 %v1967, %v1986
        %v1991 = vmul.f32 %v1969, %v1987
        %v1992 = vmul.f32 %v1971, %v1988
        %v1993 = vmul.f32 %v1973, %v1989
        %v1994 = vpack.c.bf16 %v1990, %v1990
        %v1995 = vpack.c.bf16 %v1991, %v1991
        %v1996 = vpack.c.bf16 %v1992, %v1992
        %v1997 = vpack.c.bf16 %v1993, %v1993
        %v1998 = vrot.slane %v1281, 4
        %v2000 = vsel %vm1497, %v1994, 0
        %v2003 = vsel %vm1549, %v1998, 0
        %2005 = vmatprep.subr.bf16.mxu0 0
        %2006 = vmatpush1.bf16.msra.mxu0 %v2003
        %2007 = vmatprep.subr.bf16.mxu0 0
        %2008 = vmatpush1.bf16.msra.mxu0 0
        %2009 = vmatprep.subr.bf16.mxu0 0
        %2010 = vmatpush1.bf16.msra.mxu0 0
        %2011 = vmatprep.subr.bf16.mxu0 0
        %2012 = vmatpush1.bf16.msra.mxu0 0
        %2013 = vmatprep.subr.bf16.mxu0 0
        %2014 = vmatpush1.bf16.msra.mxu0 0
        %2015 = vmatprep.subr.bf16.mxu0 0
        %2016 = vmatpush1.bf16.msra.mxu0 0
        %2017 = vmatprep.subr.bf16.mxu0 0
        %2018 = vmatpush1.bf16.msra.mxu0 0
        %2019 = vmatprep.subr.bf16.mxu0 0
        %2020 = vmatpush1.bf16.msra.mxu0 0
        %2021 = vmatprep.subr.bf16.mxu0 0
        %2022 = vmatpush1.bf16.msra.mxu0 0
        %2023 = vmatprep.subr.bf16.mxu0 0
        %2024 = vmatpush1.bf16.msra.mxu0 0
        %2025 = vmatprep.subr.bf16.mxu0 0
        %2026 = vmatpush1.bf16.msra.mxu0 0
        %2027 = vmatprep.subr.bf16.mxu0 0
        %2028 = vmatpush1.bf16.msra.mxu0 0
        %2029 = vmatprep.subr.bf16.mxu0 0
        %2030 = vmatpush1.bf16.msra.mxu0 0
        %2031 = vmatprep.subr.bf16.mxu0 0
        %2032 = vmatpush1.bf16.msra.mxu0 0
        %2033 = vmatprep.subr.bf16.mxu0 0
        %2034 = vmatpush1.bf16.msra.mxu0 0
        %2035 = vmatprep.subr.bf16.mxu0 0
        %2036 = vmatpush1.bf16.msra.mxu0 0
        %2037 = vmatprep.mubr.bf16.mxu0 0
        %2038 = vmatmul.mubr.bf16.gmra.mrb[0].mxu0 %v2000
        %v2039 = vpop.f32.mrb[0].mxu0
        %v2040 = vadd.f32 0.0, %v2039
        %v2041 = vpop.f32.mrb[0].mxu0
        %v2042 = vpop.f32.mrb[0].mxu0
        %v2043 = vpop.f32.mrb[0].mxu0
        %2044 = vdwg.mxu0
        %v2045 = vrot.slane %v1299, 4
        %v2047 = vsel %vm1497, %v1995, 0
        %v2050 = vsel %vm1549, %v2045, 0
        %2052 = vmatprep.subr.bf16.mxu0 0
        %2053 = vmatpush1.bf16.msra.mxu0 %v2050
        %2054 = vmatprep.subr.bf16.mxu0 0
        %2055 = vmatpush1.bf16.msra.mxu0 0
        %2056 = vmatprep.subr.bf16.mxu0 0
        %2057 = vmatpush1.bf16.msra.mxu0 0
        %2058 = vmatprep.subr.bf16.mxu0 0
        %2059 = vmatpush1.bf16.msra.mxu0 0
        %2060 = vmatprep.subr.bf16.mxu0 0
        %2061 = vmatpush1.bf16.msra.mxu0 0
        %2062 = vmatprep.subr.bf16.mxu0 0
        %2063 = vmatpush1.bf16.msra.mxu0 0
        %2064 = vmatprep.subr.bf16.mxu0 0
        %2065 = vmatpush1.bf16.msra.mxu0 0
        %2066 = vmatprep.subr.bf16.mxu0 0
        %2067 = vmatpush1.bf16.msra.mxu0 0
        %2068 = vmatprep.subr.bf16.mxu0 0
        %2069 = vmatpush1.bf16.msra.mxu0 0
        %2070 = vmatprep.subr.bf16.mxu0 0
        %2071 = vmatpush1.bf16.msra.mxu0 0
        %2072 = vmatprep.subr.bf16.mxu0 0
        %2073 = vmatpush1.bf16.msra.mxu0 0
        %2074 = vmatprep.subr.bf16.mxu0 0
        %2075 = vmatpush1.bf16.msra.mxu0 0
        %2076 = vmatprep.subr.bf16.mxu0 0
        %2077 = vmatpush1.bf16.msra.mxu0 0
        %2078 = vmatprep.subr.bf16.mxu0 0
        %2079 = vmatpush1.bf16.msra.mxu0 0
        %2080 = vmatprep.subr.bf16.mxu0 0
        %2081 = vmatpush1.bf16.msra.mxu0 0
        %2082 = vmatprep.subr.bf16.mxu0 0
        %2083 = vmatpush1.bf16.msra.mxu0 0
        %2084 = vmatprep.mubr.bf16.mxu0 0
        %2085 = vmatmul.mubr.bf16.gmra.mrb[0].mxu0 %v2047
        %v2086 = vpop.f32.mrb[0].mxu0
        %v2087 = vadd.f32 0.0, %v2086
        %v2088 = vpop.f32.mrb[0].mxu0
        %v2089 = vpop.f32.mrb[0].mxu0
        %v2090 = vpop.f32.mrb[0].mxu0
        %2091 = vdwg.mxu0
        %v2092 = vrot.slane %v1301, 4
        %v2094 = vsel %vm1497, %v1996, 0
        %v2097 = vsel %vm1549, %v2092, 0
        %2099 = vmatprep.subr.bf16.mxu0 0
        %2100 = vmatpush1.bf16.msra.mxu0 %v2097
        %2101 = vmatprep.subr.bf16.mxu0 0
        %2102 = vmatpush1.bf16.msra.mxu0 0
        %2103 = vmatprep.subr.bf16.mxu0 0
        %2104 = vmatpush1.bf16.msra.mxu0 0
        %2105 = vmatprep.subr.bf16.mxu0 0
        %2106 = vmatpush1.bf16.msra.mxu0 0
        %2107 = vmatprep.subr.bf16.mxu0 0
        %2108 = vmatpush1.bf16.msra.mxu0 0
        %2109 = vmatprep.subr.bf16.mxu0 0
        %2110 = vmatpush1.bf16.msra.mxu0 0
        %2111 = vmatprep.subr.bf16.mxu0 0
        %2112 = vmatpush1.bf16.msra.mxu0 0
        %2113 = vmatprep.subr.bf16.mxu0 0
        %2114 = vmatpush1.bf16.msra.mxu0 0
        %2115 = vmatprep.subr.bf16.mxu0 0
        %2116 = vmatpush1.bf16.msra.mxu0 0
        %2117 = vmatprep.subr.bf16.mxu0 0
        %2118 = vmatpush1.bf16.msra.mxu0 0
        %2119 = vmatprep.subr.bf16.mxu0 0
        %2120 = vmatpush1.bf16.msra.mxu0 0
        %2121 = vmatprep.subr.bf16.mxu0 0
        %2122 = vmatpush1.bf16.msra.mxu0 0
        %2123 = vmatprep.subr.bf16.mxu0 0
        %2124 = vmatpush1.bf16.msra.mxu0 0
        %2125 = vmatprep.subr.bf16.mxu0 0
        %2126 = vmatpush1.bf16.msra.mxu0 0
        %2127 = vmatprep.subr.bf16.mxu0 0
        %2128 = vmatpush1.bf16.msra.mxu0 0
        %2129 = vmatprep.subr.bf16.mxu0 0
        %2130 = vmatpush1.bf16.msra.mxu0 0
        %2131 = vmatprep.mubr.bf16.mxu0 0
        %2132 = vmatmul.mubr.bf16.gmra.mrb[0].mxu0 %v2094
        %v2133 = vpop.f32.mrb[0].mxu0
        %v2134 = vadd.f32 0.0, %v2133
        %v2135 = vpop.f32.mrb[0].mxu0
        %v2136 = vpop.f32.mrb[0].mxu0
        %v2137 = vpop.f32.mrb[0].mxu0
        %2138 = vdwg.mxu0
        %v2139 = vrot.slane %v1303, 4
        %v2141 = vsel %vm1497, %v1997, 0
        %v2144 = vsel %vm1549, %v2139, 0
        %2146 = vmatprep.subr.bf16.mxu0 0
        %2147 = vmatpush1.bf16.msra.mxu0 %v2144
        %2148 = vmatprep.subr.bf16.mxu0 0
        %2149 = vmatpush1.bf16.msra.mxu0 0
        %2150 = vmatprep.subr.bf16.mxu0 0
        %2151 = vmatpush1.bf16.msra.mxu0 0
        %2152 = vmatprep.subr.bf16.mxu0 0
        %2153 = vmatpush1.bf16.msra.mxu0 0
        %2154 = vmatprep.subr.bf16.mxu0 0
        %2155 = vmatpush1.bf16.msra.mxu0 0
        %2156 = vmatprep.subr.bf16.mxu0 0
        %2157 = vmatpush1.bf16.msra.mxu0 0
        %2158 = vmatprep.subr.bf16.mxu0 0
        %2159 = vmatpush1.bf16.msra.mxu0 0
        %2160 = vmatprep.subr.bf16.mxu0 0
        %2161 = vmatpush1.bf16.msra.mxu0 0
        %2162 = vmatprep.subr.bf16.mxu0 0
        %2163 = vmatpush1.bf16.msra.mxu0 0
        %2164 = vmatprep.subr.bf16.mxu0 0
        %2165 = vmatpush1.bf16.msra.mxu0 0
        %2166 = vmatprep.subr.bf16.mxu0 0
        %2167 = vmatpush1.bf16.msra.mxu0 0
        %2168 = vmatprep.subr.bf16.mxu0 0
        %2169 = vmatpush1.bf16.msra.mxu0 0
        %2170 = vmatprep.subr.bf16.mxu0 0
        %2171 = vmatpush1.bf16.msra.mxu0 0
        %2172 = vmatprep.subr.bf16.mxu0 0
        %2173 = vmatpush1.bf16.msra.mxu0 0
        %2174 = vmatprep.subr.bf16.mxu0 0
        %2175 = vmatpush1.bf16.msra.mxu0 0
        %2176 = vmatprep.subr.bf16.mxu0 0
        %2177 = vmatpush1.bf16.msra.mxu0 0
        %2178 = vmatprep.mubr.bf16.mxu0 0
        %2179 = vmatmul.mubr.bf16.gmra.mrb[0].mxu0 %v2141
        %v2180 = vpop.f32.mrb[0].mxu0
        %v2181 = vadd.f32 0.0, %v2180
        %v2182 = vpop.f32.mrb[0].mxu0
        %v2183 = vpop.f32.mrb[0].mxu0
        %v2184 = vpop.f32.mrb[0].mxu0
        %2185 = vdwg.mxu0
        %2187 = vrot.lane.b32.xlu0 %v2087, 32
        %v2188 = vpop.permute.xlu0 %2187
        %2191 = vrot.lane.b32.xlu0 %v2134, 64
        %v2192 = vpop.permute.xlu0 %2191
        %2195 = vrot.lane.b32.xlu0 %v2181, 96
        %v2196 = vpop.permute.xlu0 %2195
        %v2198 = vsel %vm1304, %v2040, %v2188
        %v2199 = vsel %vm1744, %v2198, %v2192
        %v2200 = vsel %vm1746, %v2199, %v2196
        %v2201 = vpack.c.bf16 %v2200, %v1747
        %v2202 = vld [vmem:[#allocation10] sm:$0xf]
        %v2203 = vld [vmem:[#allocation10 + $0x4] sm:$0xf]
        %v2204 = vld [vmem:[#allocation10 + $0x8] sm:$0xf]
        %v2205 = vld [vmem:[#allocation10 + $0xc] sm:$0xf]
        %v2206 = vld [vmem:[#allocation10 + $0x10] sm:$0xf]
        %v2207 = vld [vmem:[#allocation10 + $0x14] sm:$0xf]
        %v2208 = vld [vmem:[#allocation10 + $0x18] sm:$0xf]
        %v2209 = vld [vmem:[#allocation10 + $0x1c] sm:$0xf]
        %v2210 = vld [vmem:[#allocation10 + $0x20] sm:$0xf]
        %v2211 = vld [vmem:[#allocation10 + $0x24] sm:$0xf]
        %v2212 = vld [vmem:[#allocation10 + $0x28] sm:$0xf]
        %v2213 = vld [vmem:[#allocation10 + $0x2c] sm:$0xf]
        %v2214 = vld [vmem:[#allocation10 + $0x30] sm:$0xf]
        %v2215 = vld [vmem:[#allocation10 + $0x34] sm:$0xf]
        %v2216 = vld [vmem:[#allocation10 + $0x38] sm:$0xf]
        %v2217 = vld [vmem:[#allocation10 + $0x3c] sm:$0xf]
        %v2218 = vld [vmem:[%s9] sm:$0x1]
        %v2220 = vlaneseq
        %v2221 = vshrl.u32 %v2220, 7
        %v2222 = vsub.s32 0, %v2221
        %v2223 = vrot.slane %v2218, %v2222
        %v2241 = vunpack.c.l.b16 %v2202
        %v2242 = vunpack.c.l.b16 %v2203
        %v2243 = vunpack.c.l.b16 %v2204
        %v2244 = vunpack.c.l.b16 %v2205
        %v2245 = vunpack.c.l.b16 %v2206
        %v2246 = vunpack.c.l.b16 %v2207
        %v2247 = vunpack.c.l.b16 %v2208
        %v2248 = vunpack.c.l.b16 %v2209
        %v2249 = vunpack.c.l.b16 %v2210
        %v2250 = vunpack.c.l.b16 %v2211
        %v2251 = vunpack.c.l.b16 %v2212
        %v2252 = vunpack.c.l.b16 %v2213
        %v2253 = vunpack.c.l.b16 %v2214
        %v2254 = vunpack.c.l.b16 %v2215
        %v2255 = vunpack.c.l.b16 %v2216
        %v2256 = vunpack.c.l.b16 %v2217
        %v2257 = vpack.c.b16 %v2242, %v2241
        %v2258 = vpack.c.b16 %v2244, %v2243
        %v2259 = vpack.c.b16 %v2246, %v2245
        %v2260 = vpack.c.b16 %v2248, %v2247
        %v2261 = vpack.c.b16 %v2250, %v2249
        %v2262 = vpack.c.b16 %v2252, %v2251
        %v2263 = vpack.c.b16 %v2254, %v2253
        %v2264 = vpack.c.b16 %v2256, %v2255
        %2273 = vmatprep.subr.bf16.mxu0 0
        %2274 = vmatpush1.bf16.msra.mxu0 %v2257
        %2275 = vmatprep.subr.bf16.mxu0 0
        %2276 = vmatpush1.bf16.msra.mxu0 %v2258
        %2277 = vmatprep.subr.bf16.mxu0 0
        %2278 = vmatpush1.bf16.msra.mxu0 %v2259
        %2279 = vmatprep.subr.bf16.mxu0 0
        %2280 = vmatpush1.bf16.msra.mxu0 %v2260
        %2281 = vmatprep.subr.bf16.mxu0 0
        %2282 = vmatpush1.bf16.msra.mxu0 %v2261
        %2283 = vmatprep.subr.bf16.mxu0 0
        %2284 = vmatpush1.bf16.msra.mxu0 %v2262
        %2285 = vmatprep.subr.bf16.mxu0 0
        %2286 = vmatpush1.bf16.msra.mxu0 %v2263
        %2287 = vmatprep.subr.bf16.mxu0 0
        %2288 = vmatpush1.bf16.msra.mxu0 %v2264
        %2289 = vmatprep.subr.bf16.mxu0 0
        %2290 = vmatpush1.bf16.msra.mxu0 0
        %2291 = vmatprep.subr.bf16.mxu0 0
        %2292 = vmatpush1.bf16.msra.mxu0 0
        %2293 = vmatprep.subr.bf16.mxu0 0
        %2294 = vmatpush1.bf16.msra.mxu0 0
        %2295 = vmatprep.subr.bf16.mxu0 0
        %2296 = vmatpush1.bf16.msra.mxu0 0
        %2297 = vmatprep.subr.bf16.mxu0 0
        %2298 = vmatpush1.bf16.msra.mxu0 0
        %2299 = vmatprep.subr.bf16.mxu0 0
        %2300 = vmatpush1.bf16.msra.mxu0 0
        %2301 = vmatprep.subr.bf16.mxu0 0
        %2302 = vmatpush1.bf16.msra.mxu0 0
        %2303 = vmatprep.subr.bf16.mxu0 0
        %2304 = vmatpush1.bf16.msra.mxu0 0
        %2305 = vmatprep.mubr.bf16.mxu0 0
        %2306 = vmatmul.mubr.bf16.gmra.mrb[0].mxu0 %v2201
        %v2307 = vpop.f32.mrb[0].mxu0
        %v2308 = vadd.f32 %v2223, %v2307
        %v2309 = vpop.f32.mrb[0].mxu0
        %v2310 = vpop.f32.mrb[0].mxu0
        %v2311 = vadd.f32 %v2223, %v2310
        %v2312 = vpop.f32.mrb[0].mxu0
        %2313 = vdwg.mxu0
        %v2314 = vadd.f32 %v959, %v2308
        %v2315 = vadd.f32 %v960, %v2311
        %v2316 = vld [vmem:[%s10] sm:$0x1]
        %v2317 = vld [vmem:[%s11] sm:$0x1]
        %2318 = vadd.xlane.f32.xlu0 %v2314
        %v2319 = vpop.xlane.xlu0 %2318
        %2320 = vadd.xlane.f32.xlu0 %v2315
        %v2321 = vpop.xlane.xlu0 %2320
        %v2322 = vmul.f32 %v2319, %v967
        %v2323 = vmul.f32 %v2321, %v967
        %v2324 = vsub.f32 %v2314, %v2322
        %v2325 = vsub.f32 %v2315, %v2323
        %v2326 = vmul.f32 %v2324, %v2324
        %v2327 = vmul.f32 %v2325, %v2325
        %2328 = vadd.xlane.f32.xlu0 %v2326
        %v2329 = vpop.xlane.xlu0 %2328
        %2330 = vadd.xlane.f32.xlu0 %v2327
        %v2331 = vpop.xlane.xlu0 %2330
        %v2332 = vmul.f32 %v2329, %v978
        %v2333 = vmul.f32 %v2331, %v978
        %v2334 = vrsqrt.pop %v2332
        %v2335 = vmul.f32 %v2332, %v2334
        %vm2336 = vcmp.eq.f32.partialorder %v2332, inf
        %v2337 = vsel %vm2336, %v2332, %v2335
        %vm2338 = vcmp.eq.f32.partialorder %v2332, 0.0
        %v2339 = vand.u32 %v2332, 2147483648
        %v2340 = vsel %vm2338, %v2339, %v2337
        %v2341 = vrsqrt.pop %v2333
        %v2342 = vmul.f32 %v2333, %v2341
        %vm2343 = vcmp.eq.f32.partialorder %v2333, inf
        %v2344 = vsel %vm2343, %v2333, %v2342
        %vm2345 = vcmp.eq.f32.partialorder %v2333, 0.0
        %v2346 = vand.u32 %v2333, 2147483648
        %v2347 = vsel %vm2345, %v2346, %v2344
        %v2349 = vlaneseq
        %v2350 = vshrl.u32 %v2349, 7
        %v2351 = vsub.s32 0, %v2350
        %v2352 = vrot.slane %v2316, %v2351
        %v2354 = vmul.f32 %v2352, %v2324
        %v2355 = vmul.f32 %v2352, %v2325
        %v2356 = vadd.f32 %v2340, 1e-06
        %v2357 = vadd.f32 %v2347, 1e-06
        %v2358 = vrcp.pop %v2356
        %v2359 = vmul.f32 %v2354, %v2358
        %v2360 = vrcp.pop %v2357
        %v2361 = vmul.f32 %v2355, %v2360
        %v2363 = vlaneseq
        %v2364 = vshrl.u32 %v2363, 7
        %v2365 = vsub.s32 0, %v2364
        %v2366 = vrot.slane %v2317, %v2365
        %v2368 = vadd.f32 %v2359, %v2366
        %v2369 = vadd.f32 %v2361, %v2366
        %v2370 = vpack.c.bf16 %v2369, %v2368
        %v2371 = vld [vmem:[#allocation11] sm:$0xf]
        %v2372 = vld [vmem:[#allocation11 + $0x4] sm:$0xf]
        %v2373 = vld [vmem:[#allocation11 + $0x8] sm:$0xf]
        %v2374 = vld [vmem:[#allocation11 + $0xc] sm:$0xf]
        %v2375 = vld [vmem:[#allocation11 + $0x10] sm:$0xf]
        %v2376 = vld [vmem:[#allocation11 + $0x14] sm:$0xf]
        %v2377 = vld [vmem:[#allocation11 + $0x18] sm:$0xf]
        %v2378 = vld [vmem:[#allocation11 + $0x1c] sm:$0xf]
        %v2379 = vld [vmem:[#allocation11 + $0x20] sm:$0xf]
        %v2380 = vld [vmem:[#allocation11 + $0x24] sm:$0xf]
        %v2381 = vld [vmem:[#allocation11 + $0x28] sm:$0xf]
        %v2382 = vld [vmem:[#allocation11 + $0x2c] sm:$0xf]
        %v2383 = vld [vmem:[#allocation11 + $0x30] sm:$0xf]
        %v2384 = vld [vmem:[#allocation11 + $0x34] sm:$0xf]
        %v2385 = vld [vmem:[#allocation11 + $0x38] sm:$0xf]
        %v2386 = vld [vmem:[#allocation11 + $0x3c] sm:$0xf]
        %v2387 = vld [vmem:[%s13] sm:$0x1]
        %v2389 = vlaneseq
        %v2390 = vshrl.u32 %v2389, 7
        %v2391 = vsub.s32 0, %v2390
        %v2392 = vrot.slane %v2387, %v2391
        %v2410 = vunpack.c.l.b16 %v2371
        %v2411 = vunpack.c.l.b16 %v2372
        %v2412 = vunpack.c.l.b16 %v2373
        %v2413 = vunpack.c.l.b16 %v2374
        %v2414 = vunpack.c.l.b16 %v2375
        %v2415 = vunpack.c.l.b16 %v2376
        %v2416 = vunpack.c.l.b16 %v2377
        %v2417 = vunpack.c.l.b16 %v2378
        %v2418 = vunpack.c.l.b16 %v2379
        %v2419 = vunpack.c.l.b16 %v2380
        %v2420 = vunpack.c.l.b16 %v2381
        %v2421 = vunpack.c.l.b16 %v2382
        %v2422 = vunpack.c.l.b16 %v2383
        %v2423 = vunpack.c.l.b16 %v2384
        %v2424 = vunpack.c.l.b16 %v2385
        %v2425 = vunpack.c.l.b16 %v2386
        %v2426 = vpack.c.b16 %v2411, %v2410
        %v2427 = vpack.c.b16 %v2413, %v2412
        %v2428 = vpack.c.b16 %v2415, %v2414
        %v2429 = vpack.c.b16 %v2417, %v2416
        %v2430 = vpack.c.b16 %v2419, %v2418
        %v2431 = vpack.c.b16 %v2421, %v2420
        %v2432 = vpack.c.b16 %v2423, %v2422
        %v2433 = vpack.c.b16 %v2425, %v2424
        %2442 = vmatprep.subr.bf16.mxu0 0
        %2443 = vmatpush1.bf16.msra.mxu0 %v2426
        %2444 = vmatprep.subr.bf16.mxu0 0
        %2445 = vmatpush1.bf16.msra.mxu0 %v2427
        %2446 = vmatprep.subr.bf16.mxu0 0
        %2447 = vmatpush1.bf16.msra.mxu0 %v2428
        %2448 = vmatprep.subr.bf16.mxu0 0
        %2449 = vmatpush1.bf16.msra.mxu0 %v2429
        %2450 = vmatprep.subr.bf16.mxu0 0
        %2451 = vmatpush1.bf16.msra.mxu0 %v2430
        %2452 = vmatprep.subr.bf16.mxu0 0
        %2453 = vmatpush1.bf16.msra.mxu0 %v2431
        %2454 = vmatprep.subr.bf16.mxu0 0
        %2455 = vmatpush1.bf16.msra.mxu0 %v2432
        %2456 = vmatprep.subr.bf16.mxu0 0
        %2457 = vmatpush1.bf16.msra.mxu0 %v2433
        %2458 = vmatprep.subr.bf16.mxu0 0
        %2459 = vmatpush1.bf16.msra.mxu0 0
        %2460 = vmatprep.subr.bf16.mxu0 0
        %2461 = vmatpush1.bf16.msra.mxu0 0
        %2462 = vmatprep.subr.bf16.mxu0 0
        %2463 = vmatpush1.bf16.msra.mxu0 0
        %2464 = vmatprep.subr.bf16.mxu0 0
        %2465 = vmatpush1.bf16.msra.mxu0 0
        %2466 = vmatprep.subr.bf16.mxu0 0
        %2467 = vmatpush1.bf16.msra.mxu0 0
        %2468 = vmatprep.subr.bf16.mxu0 0
        %2469 = vmatpush1.bf16.msra.mxu0 0
        %2470 = vmatprep.subr.bf16.mxu0 0
        %2471 = vmatpush1.bf16.msra.mxu0 0
        %2472 = vmatprep.subr.bf16.mxu0 0
        %2473 = vmatpush1.bf16.msra.mxu0 0
        %2474 = vmatprep.mubr.bf16.mxu0 0
        %2475 = vmatmul.mubr.bf16.gmra.mrb[0].mxu0 %v2370
        %v2476 = vpop.f32.mrb[0].mxu0
        %v2477 = vadd.f32 %v2392, %v2476
        %v2478 = vpop.f32.mrb[0].mxu0
        %v2479 = vpop.f32.mrb[0].mxu0
        %v2480 = vadd.f32 %v2392, %v2479
        %v2481 = vpop.f32.mrb[0].mxu0
        %2482 = vdwg.mxu0
        %v2483 = vpack.c.bf16 %v2480, %v2477
        %v2484 = vld [vmem:[%s833] sm:$0xff]
        %v2485 = vld [vmem:[%s833 + $0x8] sm:$0xff]
        %v2486 = vld [vmem:[%s833 + $0x10] sm:$0xff]
        %v2487 = vld [vmem:[%s833 + $0x18] sm:$0xff]
        %v2488 = vpack.c.bf16 %v2485, %v2484
        %v2489 = vpack.c.bf16 %v2487, %v2486
        %v2490 = vld [vmem:[#allocation13] sm:$0xff]
        %v2491 = vld [vmem:[#allocation13 + $0x8] sm:$0xff]
        %v2492 = vld [vmem:[#allocation13 + $0x10] sm:$0xff]
        %v2493 = vld [vmem:[#allocation13 + $0x18] sm:$0xff]
        %v2494 = vld [vmem:[#allocation13 + $0x20] sm:$0xff]
        %v2495 = vld [vmem:[#allocation13 + $0x28] sm:$0xff]
        %v2496 = vld [vmem:[#allocation13 + $0x30] sm:$0xff]
        %v2497 = vld [vmem:[#allocation13 + $0x38] sm:$0xff]
        %v2498 = vld [vmem:[#allocation13 + $0x40] sm:$0xff]
        %v2499 = vld [vmem:[#allocation13 + $0x48] sm:$0xff]
        %v2500 = vld [vmem:[#allocation13 + $0x50] sm:$0xff]
        %v2501 = vld [vmem:[#allocation13 + $0x58] sm:$0xff]
        %v2502 = vld [vmem:[#allocation13 + $0x60] sm:$0xff]
        %v2503 = vld [vmem:[#allocation13 + $0x68] sm:$0xff]
        %v2504 = vld [vmem:[#allocation13 + $0x70] sm:$0xff]
        %v2505 = vld [vmem:[#allocation13 + $0x78] sm:$0xff]
        %v2506 = vld [vmem:[%s15] sm:$0x3]
        %v2508 = vlaneseq
        %v2509 = vshrl.u32 %v2508, 7
        %v2510 = vsub.s32 0, %v2509
        %v2511 = vrot.slane %v2506, %v2510
        %v2512 = vlaneseq
        %v2513 = vshrl.u32 %v2512, 7
        %v2514 = vsub.s32 1, %v2513
        %v2515 = vrot.slane %v2506, %v2514
        %v2534 = vunpack.c.l.b16 %v2490
        %v2535 = vunpack.c.h.b16 %v2490
        %v2536 = vunpack.c.l.b16 %v2491
        %v2537 = vunpack.c.h.b16 %v2491
        %v2538 = vunpack.c.l.b16 %v2492
        %v2539 = vunpack.c.h.b16 %v2492
        %v2540 = vunpack.c.l.b16 %v2493
        %v2541 = vunpack.c.h.b16 %v2493
        %v2542 = vunpack.c.l.b16 %v2494
        %v2543 = vunpack.c.h.b16 %v2494
        %v2544 = vunpack.c.l.b16 %v2495
        %v2545 = vunpack.c.h.b16 %v2495
        %v2546 = vunpack.c.l.b16 %v2496
        %v2547 = vunpack.c.h.b16 %v2496
        %v2548 = vunpack.c.l.b16 %v2497
        %v2549 = vunpack.c.h.b16 %v2497
        %v2550 = vunpack.c.l.b16 %v2498
        %v2551 = vunpack.c.h.b16 %v2498
        %v2552 = vunpack.c.l.b16 %v2499
        %v2553 = vunpack.c.h.b16 %v2499
        %v2554 = vunpack.c.l.b16 %v2500
        %v2555 = vunpack.c.h.b16 %v2500
        %v2556 = vunpack.c.l.b16 %v2501
        %v2557 = vunpack.c.h.b16 %v2501
        %v2558 = vunpack.c.l.b16 %v2502
        %v2559 = vunpack.c.h.b16 %v2502
        %v2560 = vunpack.c.l.b16 %v2503
        %v2561 = vunpack.c.h.b16 %v2503
        %v2562 = vunpack.c.l.b16 %v2504
        %v2563 = vunpack.c.h.b16 %v2504
        %v2564 = vunpack.c.l.b16 %v2505
        %v2565 = vunpack.c.h.b16 %v2505
        %v2566 = vpack.c.b16 %v2536, %v2534
        %v2567 = vpack.c.b16 %v2537, %v2535
        %v2568 = vpack.c.b16 %v2540, %v2538
        %v2569 = vpack.c.b16 %v2541, %v2539
        %v2570 = vpack.c.b16 %v2544, %v2542
        %v2571 = vpack.c.b16 %v2545, %v2543
        %v2572 = vpack.c.b16 %v2548, %v2546
        %v2573 = vpack.c.b16 %v2549, %v2547
        %v2574 = vpack.c.b16 %v2552, %v2550
        %v2575 = vpack.c.b16 %v2553, %v2551
        %v2576 = vpack.c.b16 %v2556, %v2554
        %v2577 = vpack.c.b16 %v2557, %v2555
        %v2578 = vpack.c.b16 %v2560, %v2558
        %v2579 = vpack.c.b16 %v2561, %v2559
        %v2580 = vpack.c.b16 %v2564, %v2562
        %v2581 = vpack.c.b16 %v2565, %v2563
        %2598 = vmatprep.subr.bf16.mxu0 %v2567
        %2599 = vmatpush1.bf16.msra.mxu0 %v2566
        %2600 = vmatprep.subr.bf16.mxu0 %v2569
        %2601 = vmatpush1.bf16.msra.mxu0 %v2568
        %2602 = vmatprep.subr.bf16.mxu0 %v2571
        %2603 = vmatpush1.bf16.msra.mxu0 %v2570
        %2604 = vmatprep.subr.bf16.mxu0 %v2573
        %2605 = vmatpush1.bf16.msra.mxu0 %v2572
        %2606 = vmatprep.subr.bf16.mxu0 %v2575
        %2607 = vmatpush1.bf16.msra.mxu0 %v2574
        %2608 = vmatprep.subr.bf16.mxu0 %v2577
        %2609 = vmatpush1.bf16.msra.mxu0 %v2576
        %2610 = vmatprep.subr.bf16.mxu0 %v2579
        %2611 = vmatpush1.bf16.msra.mxu0 %v2578
        %2612 = vmatprep.subr.bf16.mxu0 %v2581
        %2613 = vmatpush1.bf16.msra.mxu0 %v2580
        %2614 = vmatprep.subr.bf16.mxu0 0
        %2615 = vmatpush1.bf16.msra.mxu0 0
        %2616 = vmatprep.subr.bf16.mxu0 0
        %2617 = vmatpush1.bf16.msra.mxu0 0
        %2618 = vmatprep.subr.bf16.mxu0 0
        %2619 = vmatpush1.bf16.msra.mxu0 0
        %2620 = vmatprep.subr.bf16.mxu0 0
        %2621 = vmatpush1.bf16.msra.mxu0 0
        %2622 = vmatprep.subr.bf16.mxu0 0
        %2623 = vmatpush1.bf16.msra.mxu0 0
        %2624 = vmatprep.subr.bf16.mxu0 0
        %2625 = vmatpush1.bf16.msra.mxu0 0
        %2626 = vmatprep.subr.bf16.mxu0 0
        %2627 = vmatpush1.bf16.msra.mxu0 0
        %2628 = vmatprep.subr.bf16.mxu0 0
        %2629 = vmatpush1.bf16.msra.mxu0 0
        %2630 = vmatprep.mubr.bf16.mxu0 0
        %2631 = vmatmul.mubr.bf16.gmra.mrb[0].mxu0 %v2488
        %v2632 = vpop.f32.mrb[0].mxu0
        %v2633 = vadd.f32 %v2511, %v2632
        %v2634 = vpop.f32.mrb[0].mxu0
        %v2635 = vadd.f32 %v2515, %v2634
        %v2636 = vpop.f32.mrb[0].mxu0
        %v2637 = vadd.f32 %v2511, %v2636
        %v2638 = vpop.f32.mrb[0].mxu0
        %v2639 = vadd.f32 %v2515, %v2638
        %2640 = vmatprep.mubr.bf16.mxu0 0
        %2641 = vmatmul.mubr.bf16.gmra.mrb[0].mxu0 %v2489
        %v2642 = vpop.f32.mrb[0].mxu0
        %v2643 = vadd.f32 %v2511, %v2642
        %v2644 = vpop.f32.mrb[0].mxu0
        %v2645 = vadd.f32 %v2515, %v2644
        %v2646 = vpop.f32.mrb[0].mxu0
        %v2647 = vadd.f32 %v2511, %v2646
        %v2648 = vpop.f32.mrb[0].mxu0
        %v2649 = vadd.f32 %v2515, %v2648
        %2650 = vdwg.mxu0
        %v2651 = vpack.c.bf16 %v2637, %v2633
        %v2652 = vpack.c.bf16 %v2639, %v2635
        %v2653 = vpack.c.bf16 %v2647, %v2643
        %v2654 = vpack.c.bf16 %v2649, %v2645
        %v2655 = vld [vmem:[%s954] sm:$0x1]
        %2657 = vrot.lane.b32.xlu0 %v2483, 96
        %v2658 = vpop.permute.xlu0 %2657
        %2659 = vrot.lane.b32.xlu0 %v2483, 64
        %v2660 = vpop.permute.xlu0 %2659
        %2661 = vrot.lane.b32.xlu0 %v2483, 32
        %v2662 = vpop.permute.xlu0 %2661
        %2664 = vrot.lane.b32.xlu0 %v2651, 96
        %v2665 = vpop.permute.xlu0 %2664
        %2666 = vrot.lane.b32.xlu0 %v2651, 64
        %v2667 = vpop.permute.xlu0 %2666
        %2668 = vrot.lane.b32.xlu0 %v2651, 32
        %v2669 = vpop.permute.xlu0 %2668
        %2671 = vrot.lane.b32.xlu0 %v2652, 96
        %v2672 = vpop.permute.xlu0 %2671
        %2674 = vrot.lane.b32.xlu0 %v2652, 64
        %v2675 = vpop.permute.xlu0 %2674
        %2677 = vrot.lane.b32.xlu0 %v2652, 32
        %v2678 = vpop.permute.xlu0 %2677
        %v2681 = vsel %vm1304, %v2483, 0
        %v2684 = vsel %vm1304, %v2651, 0
        %2686 = vmatprep.subr.bf16.mxu0 0
        %2687 = vmatpush1.bf16.xpose.msra.mxu0 %v2684
        %2688 = vmatprep.subr.bf16.mxu0 0
        %2689 = vmatpush1.bf16.xpose.msra.mxu0 0
        %2690 = vmatprep.subr.bf16.mxu0 0
        %2691 = vmatpush1.bf16.xpose.msra.mxu0 0
        %2692 = vmatprep.subr.bf16.mxu0 0
        %2693 = vmatpush1.bf16.xpose.msra.mxu0 0
        %2694 = vmatprep.subr.bf16.mxu0 0
        %2695 = vmatpush1.bf16.xpose.msra.mxu0 0
        %2696 = vmatprep.subr.bf16.mxu0 0
        %2697 = vmatpush1.bf16.xpose.msra.mxu0 0
        %2698 = vmatprep.subr.bf16.mxu0 0
        %2699 = vmatpush1.bf16.xpose.msra.mxu0 0
        %2700 = vmatprep.subr.bf16.mxu0 0
        %2701 = vmatpush1.bf16.xpose.msra.mxu0 0
        %2702 = vmatprep.subr.bf16.mxu0 0
        %2703 = vmatpush1.bf16.xpose.msra.mxu0 0
        %2704 = vmatprep.subr.bf16.mxu0 0
        %2705 = vmatpush1.bf16.xpose.msra.mxu0 0
        %2706 = vmatprep.subr.bf16.mxu0 0
        %2707 = vmatpush1.bf16.xpose.msra.mxu0 0
        %2708 = vmatprep.subr.bf16.mxu0 0
        %2709 = vmatpush1.bf16.xpose.msra.mxu0 0
        %2710 = vmatprep.subr.bf16.mxu0 0
        %2711 = vmatpush1.bf16.xpose.msra.mxu0 0
        %2712 = vmatprep.subr.bf16.mxu0 0
        %2713 = vmatpush1.bf16.xpose.msra.mxu0 0
        %2714 = vmatprep.subr.bf16.mxu0 0
        %2715 = vmatpush1.bf16.xpose.msra.mxu0 0
        %2716 = vmatprep.subr.bf16.mxu0 0
        %2717 = vmatpush1.bf16.xpose.msra.mxu0 0
        %2718 = vmatprep.mubr.bf16.mxu0 0
        %2719 = vmatmul.mubr.bf16.gmra.mrb[0].mxu0 %v2681
        %v2720 = vpop.f32.mrb[0].mxu0
        %v2721 = vadd.f32 0.0, %v2720
        %v2722 = vpop.f32.mrb[0].mxu0
        %v2723 = vpop.f32.mrb[0].mxu0
        %v2724 = vpop.f32.mrb[0].mxu0
        %2725 = vdwg.mxu0
        %v2727 = vsel %vm1304, %v2658, 0
        %v2730 = vsel %vm1304, %v2665, 0
        %2732 = vmatprep.subr.bf16.mxu0 0
        %2733 = vmatpush1.bf16.xpose.msra.mxu0 %v2730
        %2734 = vmatprep.subr.bf16.mxu0 0
        %2735 = vmatpush1.bf16.xpose.msra.mxu0 0
        %2736 = vmatprep.subr.bf16.mxu0 0
        %2737 = vmatpush1.bf16.xpose.msra.mxu0 0
        %2738 = vmatprep.subr.bf16.mxu0 0
        %2739 = vmatpush1.bf16.xpose.msra.mxu0 0
        %2740 = vmatprep.subr.bf16.mxu0 0
        %2741 = vmatpush1.bf16.xpose.msra.mxu0 0
        %2742 = vmatprep.subr.bf16.mxu0 0
        %2743 = vmatpush1.bf16.xpose.msra.mxu0 0
        %2744 = vmatprep.subr.bf16.mxu0 0
        %2745 = vmatpush1.bf16.xpose.msra.mxu0 0
        %2746 = vmatprep.subr.bf16.mxu0 0
        %2747 = vmatpush1.bf16.xpose.msra.mxu0 0
        %2748 = vmatprep.subr.bf16.mxu0 0
        %2749 = vmatpush1.bf16.xpose.msra.mxu0 0
        %2750 = vmatprep.subr.bf16.mxu0 0
        %2751 = vmatpush1.bf16.xpose.msra.mxu0 0
        %2752 = vmatprep.subr.bf16.mxu0 0
        %2753 = vmatpush1.bf16.xpose.msra.mxu0 0
        %2754 = vmatprep.subr.bf16.mxu0 0
        %2755 = vmatpush1.bf16.xpose.msra.mxu0 0
        %2756 = vmatprep.subr.bf16.mxu0 0
        %2757 = vmatpush1.bf16.xpose.msra.mxu0 0
        %2758 = vmatprep.subr.bf16.mxu0 0
        %2759 = vmatpush1.bf16.xpose.msra.mxu0 0
        %2760 = vmatprep.subr.bf16.mxu0 0
        %2761 = vmatpush1.bf16.xpose.msra.mxu0 0
        %2762 = vmatprep.subr.bf16.mxu0 0
        %2763 = vmatpush1.bf16.xpose.msra.mxu0 0
        %2764 = vmatprep.mubr.bf16.mxu0 0
        %2765 = vmatmul.mubr.bf16.gmra.mrb[0].mxu0 %v2727
        %v2766 = vpop.f32.mrb[0].mxu0
        %v2767 = vadd.f32 0.0, %v2766
        %v2768 = vpop.f32.mrb[0].mxu0
        %v2769 = vpop.f32.mrb[0].mxu0
        %v2770 = vpop.f32.mrb[0].mxu0
        %2771 = vdwg.mxu0
        %v2773 = vsel %vm1304, %v2660, 0
        %v2776 = vsel %vm1304, %v2667, 0
        %2778 = vmatprep.subr.bf16.mxu0 0
        %2779 = vmatpush1.bf16.xpose.msra.mxu0 %v2776
        %2780 = vmatprep.subr.bf16.mxu0 0
        %2781 = vmatpush1.bf16.xpose.msra.mxu0 0
        %2782 = vmatprep.subr.bf16.mxu0 0
        %2783 = vmatpush1.bf16.xpose.msra.mxu0 0
        %2784 = vmatprep.subr.bf16.mxu0 0
        %2785 = vmatpush1.bf16.xpose.msra.mxu0 0
        %2786 = vmatprep.subr.bf16.mxu0 0
        %2787 = vmatpush1.bf16.xpose.msra.mxu0 0
        %2788 = vmatprep.subr.bf16.mxu0 0
        %2789 = vmatpush1.bf16.xpose.msra.mxu0 0
        %2790 = vmatprep.subr.bf16.mxu0 0
        %2791 = vmatpush1.bf16.xpose.msra.mxu0 0
        %2792 = vmatprep.subr.bf16.mxu0 0
        %2793 = vmatpush1.bf16.xpose.msra.mxu0 0
        %2794 = vmatprep.subr.bf16.mxu0 0
        %2795 = vmatpush1.bf16.xpose.msra.mxu0 0
        %2796 = vmatprep.subr.bf16.mxu0 0
        %2797 = vmatpush1.bf16.xpose.msra.mxu0 0
        %2798 = vmatprep.subr.bf16.mxu0 0
        %2799 = vmatpush1.bf16.xpose.msra.mxu0 0
        %2800 = vmatprep.subr.bf16.mxu0 0
        %2801 = vmatpush1.bf16.xpose.msra.mxu0 0
        %2802 = vmatprep.subr.bf16.mxu0 0
        %2803 = vmatpush1.bf16.xpose.msra.mxu0 0
        %2804 = vmatprep.subr.bf16.mxu0 0
        %2805 = vmatpush1.bf16.xpose.msra.mxu0 0
        %2806 = vmatprep.subr.bf16.mxu0 0
        %2807 = vmatpush1.bf16.xpose.msra.mxu0 0
        %2808 = vmatprep.subr.bf16.mxu0 0
        %2809 = vmatpush1.bf16.xpose.msra.mxu0 0
        %2810 = vmatprep.mubr.bf16.mxu0 0
        %2811 = vmatmul.mubr.bf16.gmra.mrb[0].mxu0 %v2773
        %v2812 = vpop.f32.mrb[0].mxu0
        %v2813 = vadd.f32 0.0, %v2812
        %v2814 = vpop.f32.mrb[0].mxu0
        %v2815 = vpop.f32.mrb[0].mxu0
        %v2816 = vpop.f32.mrb[0].mxu0
        %2817 = vdwg.mxu0
        %v2819 = vsel %vm1304, %v2662, 0
        %v2822 = vsel %vm1304, %v2669, 0
        %2824 = vmatprep.subr.bf16.mxu0 0
        %2825 = vmatpush1.bf16.xpose.msra.mxu0 %v2822
        %2826 = vmatprep.subr.bf16.mxu0 0
        %2827 = vmatpush1.bf16.xpose.msra.mxu0 0
        %2828 = vmatprep.subr.bf16.mxu0 0
        %2829 = vmatpush1.bf16.xpose.msra.mxu0 0
        %2830 = vmatprep.subr.bf16.mxu0 0
        %2831 = vmatpush1.bf16.xpose.msra.mxu0 0
        %2832 = vmatprep.subr.bf16.mxu0 0
        %2833 = vmatpush1.bf16.xpose.msra.mxu0 0
        %2834 = vmatprep.subr.bf16.mxu0 0
        %2835 = vmatpush1.bf16.xpose.msra.mxu0 0
        %2836 = vmatprep.subr.bf16.mxu0 0
        %2837 = vmatpush1.bf16.xpose.msra.mxu0 0
        %2838 = vmatprep.subr.bf16.mxu0 0
        %2839 = vmatpush1.bf16.xpose.msra.mxu0 0
        %2840 = vmatprep.subr.bf16.mxu0 0
        %2841 = vmatpush1.bf16.xpose.msra.mxu0 0
        %2842 = vmatprep.subr.bf16.mxu0 0
        %2843 = vmatpush1.bf16.xpose.msra.mxu0 0
        %2844 = vmatprep.subr.bf16.mxu0 0
        %2845 = vmatpush1.bf16.xpose.msra.mxu0 0
        %2846 = vmatprep.subr.bf16.mxu0 0
        %2847 = vmatpush1.bf16.xpose.msra.mxu0 0
        %2848 = vmatprep.subr.bf16.mxu0 0
        %2849 = vmatpush1.bf16.xpose.msra.mxu0 0
        %2850 = vmatprep.subr.bf16.mxu0 0
        %2851 = vmatpush1.bf16.xpose.msra.mxu0 0
        %2852 = vmatprep.subr.bf16.mxu0 0
        %2853 = vmatpush1.bf16.xpose.msra.mxu0 0
        %2854 = vmatprep.subr.bf16.mxu0 0
        %2855 = vmatpush1.bf16.xpose.msra.mxu0 0
        %2856 = vmatprep.mubr.bf16.mxu0 0
        %2857 = vmatmul.mubr.bf16.gmra.mrb[0].mxu0 %v2819
        %v2858 = vpop.f32.mrb[0].mxu0
        %v2859 = vadd.f32 0.0, %v2858
        %v2860 = vpop.f32.mrb[0].mxu0
        %v2861 = vpop.f32.mrb[0].mxu0
        %v2862 = vpop.f32.mrb[0].mxu0
        %2863 = vdwg.mxu0
        %v2864 = vmul.f32 %v2721, 0.17677669
        %v2865 = vmul.f32 %v2767, 0.17677669
        %v2866 = vmul.f32 %v2813, 0.17677669
        %v2867 = vmul.f32 %v2859, 0.17677669
        %v2869 = vlaneseq
        %v2870 = vshrl.u32 %v2869, 7
        %v2871 = vsub.s32 0, %v2870
        %v2872 = vrot.slane %v2655, %v2871
        %v2874 = vadd.f32 %v2864, %v2872
        %v2875 = vadd.f32 %v2865, %v2872
        %v2876 = vadd.f32 %v2866, %v2872
        %v2877 = vadd.f32 %v2867, %v2872
        %vm2878 = vcmask 130048
        %v2879 = vsel %vm2878, %v2874, -inf
        %2880 = vmax.xlane.f32.xlu0 %v2879
        %v2881 = vpop.xlane.xlu0 %2880
        %v2882 = vsel %vm2878, %v2875, -inf
        %2883 = vmax.xlane.f32.xlu0 %v2882
        %v2884 = vpop.xlane.xlu0 %2883
        %v2885 = vsel %vm2878, %v2876, -inf
        %2886 = vmax.xlane.f32.xlu0 %v2885
        %v2887 = vpop.xlane.xlu0 %2886
        %v2888 = vsel %vm2878, %v2877, -inf
        %2889 = vmax.xlane.f32.xlu0 %v2888
        %v2890 = vpop.xlane.xlu0 %2889
        %v2891 = vsub.f32 %v2874, %v2881
        %v2892 = vsub.f32 %v2875, %v2884
        %v2893 = vsub.f32 %v2876, %v2887
        %v2894 = vsub.f32 %v2877, %v2890
        %v2895 = vmul.f32 %v2891, 1.442695
        %v2896 = vpow.pop %v2895
        %v2897 = vmul.f32 %v2892, 1.442695
        %v2898 = vpow.pop %v2897
        %v2899 = vmul.f32 %v2893, 1.442695
        %v2900 = vpow.pop %v2899
        %v2901 = vmul.f32 %v2894, 1.442695
        %v2902 = vpow.pop %v2901
        %v2903 = vsel %vm2878, %v2896, 0.0
        %2904 = vadd.xlane.f32.xlu0 %v2903
        %v2905 = vpop.xlane.xlu0 %2904
        %v2906 = vsel %vm2878, %v2898, 0.0
        %2907 = vadd.xlane.f32.xlu0 %v2906
        %v2908 = vpop.xlane.xlu0 %2907
        %v2909 = vsel %vm2878, %v2900, 0.0
        %2910 = vadd.xlane.f32.xlu0 %v2909
        %v2911 = vpop.xlane.xlu0 %2910
        %v2912 = vsel %vm2878, %v2902, 0.0
        %2913 = vadd.xlane.f32.xlu0 %v2912
        %v2914 = vpop.xlane.xlu0 %2913
        %v2915 = vrcp.pop %v2905
        %v2916 = vrcp.pop %v2908
        %v2917 = vrcp.pop %v2911
        %v2918 = vrcp.pop %v2914
        %v2919 = vmul.f32 %v2896, %v2915
        %v2920 = vmul.f32 %v2898, %v2916
        %v2921 = vmul.f32 %v2900, %v2917
        %v2922 = vmul.f32 %v2902, %v2918
        %v2923 = vpack.c.bf16 %v2919, %v2919
        %v2924 = vpack.c.bf16 %v2920, %v2920
        %v2925 = vpack.c.bf16 %v2921, %v2921
        %v2926 = vpack.c.bf16 %v2922, %v2922
        %v2928 = vsel %vm2878, %v2923, 0
        %2930 = vmatprep.subr.bf16.mxu0 0
        %2931 = vmatpush1.bf16.msra.mxu0 %v2652
        %2932 = vmatprep.subr.bf16.mxu0 0
        %2933 = vmatpush1.bf16.msra.mxu0 0
        %2934 = vmatprep.subr.bf16.mxu0 0
        %2935 = vmatpush1.bf16.msra.mxu0 0
        %2936 = vmatprep.subr.bf16.mxu0 0
        %2937 = vmatpush1.bf16.msra.mxu0 0
        %2938 = vmatprep.subr.bf16.mxu0 0
        %2939 = vmatpush1.bf16.msra.mxu0 0
        %2940 = vmatprep.subr.bf16.mxu0 0
        %2941 = vmatpush1.bf16.msra.mxu0 0
        %2942 = vmatprep.subr.bf16.mxu0 0
        %2943 = vmatpush1.bf16.msra.mxu0 0
        %2944 = vmatprep.subr.bf16.mxu0 0
        %2945 = vmatpush1.bf16.msra.mxu0 0
        %2946 = vmatprep.subr.bf16.mxu0 0
        %2947 = vmatpush1.bf16.msra.mxu0 0
        %2948 = vmatprep.subr.bf16.mxu0 0
        %2949 = vmatpush1.bf16.msra.mxu0 0
        %2950 = vmatprep.subr.bf16.mxu0 0
        %2951 = vmatpush1.bf16.msra.mxu0 0
        %2952 = vmatprep.subr.bf16.mxu0 0
        %2953 = vmatpush1.bf16.msra.mxu0 0
        %2954 = vmatprep.subr.bf16.mxu0 0
        %2955 = vmatpush1.bf16.msra.mxu0 0
        %2956 = vmatprep.subr.bf16.mxu0 0
        %2957 = vmatpush1.bf16.msra.mxu0 0
        %2958 = vmatprep.subr.bf16.mxu0 0
        %2959 = vmatpush1.bf16.msra.mxu0 0
        %2960 = vmatprep.subr.bf16.mxu0 0
        %2961 = vmatpush1.bf16.msra.mxu0 0
        %2962 = vmatprep.mubr.bf16.mxu0 0
        %2963 = vmatmul.mubr.bf16.gmra.mrb[0].mxu0 %v2928
        %v2964 = vpop.f32.mrb[0].mxu0
        %v2965 = vadd.f32 0.0, %v2964
        %v2966 = vpop.f32.mrb[0].mxu0
        %v2967 = vpop.f32.mrb[0].mxu0
        %v2968 = vpop.f32.mrb[0].mxu0
        %2969 = vdwg.mxu0
        %v2971 = vsel %vm2878, %v2924, 0
        %2973 = vmatprep.subr.bf16.mxu0 0
        %2974 = vmatpush1.bf16.msra.mxu0 %v2672
        %2975 = vmatprep.subr.bf16.mxu0 0
        %2976 = vmatpush1.bf16.msra.mxu0 0
        %2977 = vmatprep.subr.bf16.mxu0 0
        %2978 = vmatpush1.bf16.msra.mxu0 0
        %2979 = vmatprep.subr.bf16.mxu0 0
        %2980 = vmatpush1.bf16.msra.mxu0 0
        %2981 = vmatprep.subr.bf16.mxu0 0
        %2982 = vmatpush1.bf16.msra.mxu0 0
        %2983 = vmatprep.subr.bf16.mxu0 0
        %2984 = vmatpush1.bf16.msra.mxu0 0
        %2985 = vmatprep.subr.bf16.mxu0 0
        %2986 = vmatpush1.bf16.msra.mxu0 0
        %2987 = vmatprep.subr.bf16.mxu0 0
        %2988 = vmatpush1.bf16.msra.mxu0 0
        %2989 = vmatprep.subr.bf16.mxu0 0
        %2990 = vmatpush1.bf16.msra.mxu0 0
        %2991 = vmatprep.subr.bf16.mxu0 0
        %2992 = vmatpush1.bf16.msra.mxu0 0
        %2993 = vmatprep.subr.bf16.mxu0 0
        %2994 = vmatpush1.bf16.msra.mxu0 0
        %2995 = vmatprep.subr.bf16.mxu0 0
        %2996 = vmatpush1.bf16.msra.mxu0 0
        %2997 = vmatprep.subr.bf16.mxu0 0
        %2998 = vmatpush1.bf16.msra.mxu0 0
        %2999 = vmatprep.subr.bf16.mxu0 0
        %3000 = vmatpush1.bf16.msra.mxu0 0
        %3001 = vmatprep.subr.bf16.mxu0 0
        %3002 = vmatpush1.bf16.msra.mxu0 0
        %3003 = vmatprep.subr.bf16.mxu0 0
        %3004 = vmatpush1.bf16.msra.mxu0 0
        %3005 = vmatprep.mubr.bf16.mxu0 0
        %3006 = vmatmul.mubr.bf16.gmra.mrb[0].mxu0 %v2971
        %v3007 = vpop.f32.mrb[0].mxu0
        %v3008 = vadd.f32 0.0, %v3007
        %v3009 = vpop.f32.mrb[0].mxu0
        %v3010 = vpop.f32.mrb[0].mxu0
        %v3011 = vpop.f32.mrb[0].mxu0
        %3012 = vdwg.mxu0
        %v3014 = vsel %vm2878, %v2925, 0
        %3016 = vmatprep.subr.bf16.mxu0 0
        %3017 = vmatpush1.bf16.msra.mxu0 %v2675
        %3018 = vmatprep.subr.bf16.mxu0 0
        %3019 = vmatpush1.bf16.msra.mxu0 0
        %3020 = vmatprep.subr.bf16.mxu0 0
        %3021 = vmatpush1.bf16.msra.mxu0 0
        %3022 = vmatprep.subr.bf16.mxu0 0
        %3023 = vmatpush1.bf16.msra.mxu0 0
        %3024 = vmatprep.subr.bf16.mxu0 0
        %3025 = vmatpush1.bf16.msra.mxu0 0
        %3026 = vmatprep.subr.bf16.mxu0 0
        %3027 = vmatpush1.bf16.msra.mxu0 0
        %3028 = vmatprep.subr.bf16.mxu0 0
        %3029 = vmatpush1.bf16.msra.mxu0 0
        %3030 = vmatprep.subr.bf16.mxu0 0
        %3031 = vmatpush1.bf16.msra.mxu0 0
        %3032 = vmatprep.subr.bf16.mxu0 0
        %3033 = vmatpush1.bf16.msra.mxu0 0
        %3034 = vmatprep.subr.bf16.mxu0 0
        %3035 = vmatpush1.bf16.msra.mxu0 0
        %3036 = vmatprep.subr.bf16.mxu0 0
        %3037 = vmatpush1.bf16.msra.mxu0 0
        %3038 = vmatprep.subr.bf16.mxu0 0
        %3039 = vmatpush1.bf16.msra.mxu0 0
        %3040 = vmatprep.subr.bf16.mxu0 0
        %3041 = vmatpush1.bf16.msra.mxu0 0
        %3042 = vmatprep.subr.bf16.mxu0 0
        %3043 = vmatpush1.bf16.msra.mxu0 0
        %3044 = vmatprep.subr.bf16.mxu0 0
        %3045 = vmatpush1.bf16.msra.mxu0 0
        %3046 = vmatprep.subr.bf16.mxu0 0
        %3047 = vmatpush1.bf16.msra.mxu0 0
        %3048 = vmatprep.mubr.bf16.mxu0 0
        %3049 = vmatmul.mubr.bf16.gmra.mrb[0].mxu0 %v3014
        %v3050 = vpop.f32.mrb[0].mxu0
        %v3051 = vadd.f32 0.0, %v3050
        %v3052 = vpop.f32.mrb[0].mxu0
        %v3053 = vpop.f32.mrb[0].mxu0
        %v3054 = vpop.f32.mrb[0].mxu0
        %3055 = vdwg.mxu0
        %v3057 = vsel %vm2878, %v2926, 0
        %3059 = vmatprep.subr.bf16.mxu0 0
        %3060 = vmatpush1.bf16.msra.mxu0 %v2678
        %3061 = vmatprep.subr.bf16.mxu0 0
        %3062 = vmatpush1.bf16.msra.mxu0 0
        %3063 = vmatprep.subr.bf16.mxu0 0
        %3064 = vmatpush1.bf16.msra.mxu0 0
        %3065 = vmatprep.subr.bf16.mxu0 0
        %3066 = vmatpush1.bf16.msra.mxu0 0
        %3067 = vmatprep.subr.bf16.mxu0 0
        %3068 = vmatpush1.bf16.msra.mxu0 0
        %3069 = vmatprep.subr.bf16.mxu0 0
        %3070 = vmatpush1.bf16.msra.mxu0 0
        %3071 = vmatprep.subr.bf16.mxu0 0
        %3072 = vmatpush1.bf16.msra.mxu0 0
        %3073 = vmatprep.subr.bf16.mxu0 0
        %3074 = vmatpush1.bf16.msra.mxu0 0
        %3075 = vmatprep.subr.bf16.mxu0 0
        %3076 = vmatpush1.bf16.msra.mxu0 0
        %3077 = vmatprep.subr.bf16.mxu0 0
        %3078 = vmatpush1.bf16.msra.mxu0 0
        %3079 = vmatprep.subr.bf16.mxu0 0
        %3080 = vmatpush1.bf16.msra.mxu0 0
        %3081 = vmatprep.subr.bf16.mxu0 0
        %3082 = vmatpush1.bf16.msra.mxu0 0
        %3083 = vmatprep.subr.bf16.mxu0 0
        %3084 = vmatpush1.bf16.msra.mxu0 0
        %3085 = vmatprep.subr.bf16.mxu0 0
        %3086 = vmatpush1.bf16.msra.mxu0 0
        %3087 = vmatprep.subr.bf16.mxu0 0
        %3088 = vmatpush1.bf16.msra.mxu0 0
        %3089 = vmatprep.subr.bf16.mxu0 0
        %3090 = vmatpush1.bf16.msra.mxu0 0
        %3091 = vmatprep.mubr.bf16.mxu0 0
        %3092 = vmatmul.mubr.bf16.gmra.mrb[0].mxu0 %v3057
        %v3093 = vpop.f32.mrb[0].mxu0
        %v3094 = vadd.f32 0.0, %v3093
        %v3095 = vpop.f32.mrb[0].mxu0
        %v3096 = vpop.f32.mrb[0].mxu0
        %v3097 = vpop.f32.mrb[0].mxu0
        %3098 = vdwg.mxu0
        %3100 = vrot.lane.b32.xlu0 %v3008, 32
        %v3101 = vpop.permute.xlu0 %3100
        %3104 = vrot.lane.b32.xlu0 %v3051, 64
        %v3105 = vpop.permute.xlu0 %3104
        %3108 = vrot.lane.b32.xlu0 %v3094, 96
        %v3109 = vpop.permute.xlu0 %3108
        %v3111 = vsel %vm1304, %v2965, %v3101
        %v3112 = vsel %vm1744, %v3111, %v3105
        %v3113 = vsel %vm1746, %v3112, %v3109
        %s3114 = scalar_lea.vmem %s954, 1
        %v3115 = vld [vmem:[%s3114] sm:$0x1]
        %3117 = vrot.lane.b32.xlu0 %v2653, 96
        %v3118 = vpop.permute.xlu0 %3117
        %3119 = vrot.lane.b32.xlu0 %v2653, 64
        %v3120 = vpop.permute.xlu0 %3119
        %3121 = vrot.lane.b32.xlu0 %v2653, 32
        %v3122 = vpop.permute.xlu0 %3121
        %3124 = vrot.lane.b32.xlu0 %v2654, 96
        %v3125 = vpop.permute.xlu0 %3124
        %3127 = vrot.lane.b32.xlu0 %v2654, 64
        %v3128 = vpop.permute.xlu0 %3127
        %3130 = vrot.lane.b32.xlu0 %v2654, 32
        %v3131 = vpop.permute.xlu0 %3130
        %v3133 = vrot.slane %v2483, 4
        %v3135 = vsel %vm1304, %v3133, 0
        %v3138 = vsel %vm1304, %v2653, 0
        %3140 = vmatprep.subr.bf16.mxu0 0
        %3141 = vmatpush1.bf16.xpose.msra.mxu0 %v3138
        %3142 = vmatprep.subr.bf16.mxu0 0
        %3143 = vmatpush1.bf16.xpose.msra.mxu0 0
        %3144 = vmatprep.subr.bf16.mxu0 0
        %3145 = vmatpush1.bf16.xpose.msra.mxu0 0
        %3146 = vmatprep.subr.bf16.mxu0 0
        %3147 = vmatpush1.bf16.xpose.msra.mxu0 0
        %3148 = vmatprep.subr.bf16.mxu0 0
        %3149 = vmatpush1.bf16.xpose.msra.mxu0 0
        %3150 = vmatprep.subr.bf16.mxu0 0
        %3151 = vmatpush1.bf16.xpose.msra.mxu0 0
        %3152 = vmatprep.subr.bf16.mxu0 0
        %3153 = vmatpush1.bf16.xpose.msra.mxu0 0
        %3154 = vmatprep.subr.bf16.mxu0 0
        %3155 = vmatpush1.bf16.xpose.msra.mxu0 0
        %3156 = vmatprep.subr.bf16.mxu0 0
        %3157 = vmatpush1.bf16.xpose.msra.mxu0 0
        %3158 = vmatprep.subr.bf16.mxu0 0
        %3159 = vmatpush1.bf16.xpose.msra.mxu0 0
        %3160 = vmatprep.subr.bf16.mxu0 0
        %3161 = vmatpush1.bf16.xpose.msra.mxu0 0
        %3162 = vmatprep.subr.bf16.mxu0 0
        %3163 = vmatpush1.bf16.xpose.msra.mxu0 0
        %3164 = vmatprep.subr.bf16.mxu0 0
        %3165 = vmatpush1.bf16.xpose.msra.mxu0 0
        %3166 = vmatprep.subr.bf16.mxu0 0
        %3167 = vmatpush1.bf16.xpose.msra.mxu0 0
        %3168 = vmatprep.subr.bf16.mxu0 0
        %3169 = vmatpush1.bf16.xpose.msra.mxu0 0
        %3170 = vmatprep.subr.bf16.mxu0 0
        %3171 = vmatpush1.bf16.xpose.msra.mxu0 0
        %3172 = vmatprep.mubr.bf16.mxu0 0
        %3173 = vmatmul.mubr.bf16.gmra.mrb[0].mxu0 %v3135
        %v3174 = vpop.f32.mrb[0].mxu0
        %v3175 = vadd.f32 0.0, %v3174
        %v3176 = vpop.f32.mrb[0].mxu0
        %v3177 = vpop.f32.mrb[0].mxu0
        %v3178 = vpop.f32.mrb[0].mxu0
        %3179 = vdwg.mxu0
        %v3180 = vrot.slane %v2658, 4
        %v3182 = vsel %vm1304, %v3180, 0
        %v3185 = vsel %vm1304, %v3118, 0
        %3187 = vmatprep.subr.bf16.mxu0 0
        %3188 = vmatpush1.bf16.xpose.msra.mxu0 %v3185
        %3189 = vmatprep.subr.bf16.mxu0 0
        %3190 = vmatpush1.bf16.xpose.msra.mxu0 0
        %3191 = vmatprep.subr.bf16.mxu0 0
        %3192 = vmatpush1.bf16.xpose.msra.mxu0 0
        %3193 = vmatprep.subr.bf16.mxu0 0
        %3194 = vmatpush1.bf16.xpose.msra.mxu0 0
        %3195 = vmatprep.subr.bf16.mxu0 0
        %3196 = vmatpush1.bf16.xpose.msra.mxu0 0
        %3197 = vmatprep.subr.bf16.mxu0 0
        %3198 = vmatpush1.bf16.xpose.msra.mxu0 0
        %3199 = vmatprep.subr.bf16.mxu0 0
        %3200 = vmatpush1.bf16.xpose.msra.mxu0 0
        %3201 = vmatprep.subr.bf16.mxu0 0
        %3202 = vmatpush1.bf16.xpose.msra.mxu0 0
        %3203 = vmatprep.subr.bf16.mxu0 0
        %3204 = vmatpush1.bf16.xpose.msra.mxu0 0
        %3205 = vmatprep.subr.bf16.mxu0 0
        %3206 = vmatpush1.bf16.xpose.msra.mxu0 0
        %3207 = vmatprep.subr.bf16.mxu0 0
        %3208 = vmatpush1.bf16.xpose.msra.mxu0 0
        %3209 = vmatprep.subr.bf16.mxu0 0
        %3210 = vmatpush1.bf16.xpose.msra.mxu0 0
        %3211 = vmatprep.subr.bf16.mxu0 0
        %3212 = vmatpush1.bf16.xpose.msra.mxu0 0
        %3213 = vmatprep.subr.bf16.mxu0 0
        %3214 = vmatpush1.bf16.xpose.msra.mxu0 0
        %3215 = vmatprep.subr.bf16.mxu0 0
        %3216 = vmatpush1.bf16.xpose.msra.mxu0 0
        %3217 = vmatprep.subr.bf16.mxu0 0
        %3218 = vmatpush1.bf16.xpose.msra.mxu0 0
        %3219 = vmatprep.mubr.bf16.mxu0 0
        %3220 = vmatmul.mubr.bf16.gmra.mrb[0].mxu0 %v3182
        %v3221 = vpop.f32.mrb[0].mxu0
        %v3222 = vadd.f32 0.0, %v3221
        %v3223 = vpop.f32.mrb[0].mxu0
        %v3224 = vpop.f32.mrb[0].mxu0
        %v3225 = vpop.f32.mrb[0].mxu0
        %3226 = vdwg.mxu0
        %v3227 = vrot.slane %v2660, 4
        %v3229 = vsel %vm1304, %v3227, 0
        %v3232 = vsel %vm1304, %v3120, 0
        %3234 = vmatprep.subr.bf16.mxu0 0
        %3235 = vmatpush1.bf16.xpose.msra.mxu0 %v3232
        %3236 = vmatprep.subr.bf16.mxu0 0
        %3237 = vmatpush1.bf16.xpose.msra.mxu0 0
        %3238 = vmatprep.subr.bf16.mxu0 0
        %3239 = vmatpush1.bf16.xpose.msra.mxu0 0
        %3240 = vmatprep.subr.bf16.mxu0 0
        %3241 = vmatpush1.bf16.xpose.msra.mxu0 0
        %3242 = vmatprep.subr.bf16.mxu0 0
        %3243 = vmatpush1.bf16.xpose.msra.mxu0 0
        %3244 = vmatprep.subr.bf16.mxu0 0
        %3245 = vmatpush1.bf16.xpose.msra.mxu0 0
        %3246 = vmatprep.subr.bf16.mxu0 0
        %3247 = vmatpush1.bf16.xpose.msra.mxu0 0
        %3248 = vmatprep.subr.bf16.mxu0 0
        %3249 = vmatpush1.bf16.xpose.msra.mxu0 0
        %3250 = vmatprep.subr.bf16.mxu0 0
        %3251 = vmatpush1.bf16.xpose.msra.mxu0 0
        %3252 = vmatprep.subr.bf16.mxu0 0
        %3253 = vmatpush1.bf16.xpose.msra.mxu0 0
        %3254 = vmatprep.subr.bf16.mxu0 0
        %3255 = vmatpush1.bf16.xpose.msra.mxu0 0
        %3256 = vmatprep.subr.bf16.mxu0 0
        %3257 = vmatpush1.bf16.xpose.msra.mxu0 0
        %3258 = vmatprep.subr.bf16.mxu0 0
        %3259 = vmatpush1.bf16.xpose.msra.mxu0 0
        %3260 = vmatprep.subr.bf16.mxu0 0
        %3261 = vmatpush1.bf16.xpose.msra.mxu0 0
        %3262 = vmatprep.subr.bf16.mxu0 0
        %3263 = vmatpush1.bf16.xpose.msra.mxu0 0
        %3264 = vmatprep.subr.bf16.mxu0 0
        %3265 = vmatpush1.bf16.xpose.msra.mxu0 0
        %3266 = vmatprep.mubr.bf16.mxu0 0
        %3267 = vmatmul.mubr.bf16.gmra.mrb[0].mxu0 %v3229
        %v3268 = vpop.f32.mrb[0].mxu0
        %v3269 = vadd.f32 0.0, %v3268
        %v3270 = vpop.f32.mrb[0].mxu0
        %v3271 = vpop.f32.mrb[0].mxu0
        %v3272 = vpop.f32.mrb[0].mxu0
        %3273 = vdwg.mxu0
        %v3274 = vrot.slane %v2662, 4
        %v3276 = vsel %vm1304, %v3274, 0
        %v3279 = vsel %vm1304, %v3122, 0
        %3281 = vmatprep.subr.bf16.mxu0 0
        %3282 = vmatpush1.bf16.xpose.msra.mxu0 %v3279
        %3283 = vmatprep.subr.bf16.mxu0 0
        %3284 = vmatpush1.bf16.xpose.msra.mxu0 0
        %3285 = vmatprep.subr.bf16.mxu0 0
        %3286 = vmatpush1.bf16.xpose.msra.mxu0 0
        %3287 = vmatprep.subr.bf16.mxu0 0
        %3288 = vmatpush1.bf16.xpose.msra.mxu0 0
        %3289 = vmatprep.subr.bf16.mxu0 0
        %3290 = vmatpush1.bf16.xpose.msra.mxu0 0
        %3291 = vmatprep.subr.bf16.mxu0 0
        %3292 = vmatpush1.bf16.xpose.msra.mxu0 0
        %3293 = vmatprep.subr.bf16.mxu0 0
        %3294 = vmatpush1.bf16.xpose.msra.mxu0 0
        %3295 = vmatprep.subr.bf16.mxu0 0
        %3296 = vmatpush1.bf16.xpose.msra.mxu0 0
        %3297 = vmatprep.subr.bf16.mxu0 0
        %3298 = vmatpush1.bf16.xpose.msra.mxu0 0
        %3299 = vmatprep.subr.bf16.mxu0 0
        %3300 = vmatpush1.bf16.xpose.msra.mxu0 0
        %3301 = vmatprep.subr.bf16.mxu0 0
        %3302 = vmatpush1.bf16.xpose.msra.mxu0 0
        %3303 = vmatprep.subr.bf16.mxu0 0
        %3304 = vmatpush1.bf16.xpose.msra.mxu0 0
        %3305 = vmatprep.subr.bf16.mxu0 0
        %3306 = vmatpush1.bf16.xpose.msra.mxu0 0
        %3307 = vmatprep.subr.bf16.mxu0 0
        %3308 = vmatpush1.bf16.xpose.msra.mxu0 0
        %3309 = vmatprep.subr.bf16.mxu0 0
        %3310 = vmatpush1.bf16.xpose.msra.mxu0 0
        %3311 = vmatprep.subr.bf16.mxu0 0
        %3312 = vmatpush1.bf16.xpose.msra.mxu0 0
        %3313 = vmatprep.mubr.bf16.mxu0 0
        %3314 = vmatmul.mubr.bf16.gmra.mrb[0].mxu0 %v3276
        %v3315 = vpop.f32.mrb[0].mxu0
        %v3316 = vadd.f32 0.0, %v3315
        %v3317 = vpop.f32.mrb[0].mxu0
        %v3318 = vpop.f32.mrb[0].mxu0
        %v3319 = vpop.f32.mrb[0].mxu0
        %3320 = vdwg.mxu0
        %v3321 = vmul.f32 %v3175, 0.17677669
        %v3322 = vmul.f32 %v3222, 0.17677669
        %v3323 = vmul.f32 %v3269, 0.17677669
        %v3324 = vmul.f32 %v3316, 0.17677669
        %v3326 = vlaneseq
        %v3327 = vshrl.u32 %v3326, 7
        %v3328 = vsub.s32 0, %v3327
        %v3329 = vrot.slane %v3115, %v3328
        %v3331 = vadd.f32 %v3321, %v3329
        %v3332 = vadd.f32 %v3322, %v3329
        %v3333 = vadd.f32 %v3323, %v3329
        %v3334 = vadd.f32 %v3324, %v3329
        %v3335 = vsel %vm2878, %v3331, -inf
        %3336 = vmax.xlane.f32.xlu0 %v3335
        %v3337 = vpop.xlane.xlu0 %3336
        %v3338 = vsel %vm2878, %v3332, -inf
        %3339 = vmax.xlane.f32.xlu0 %v3338
        %v3340 = vpop.xlane.xlu0 %3339
        %v3341 = vsel %vm2878, %v3333, -inf
        %3342 = vmax.xlane.f32.xlu0 %v3341
        %v3343 = vpop.xlane.xlu0 %3342
        %v3344 = vsel %vm2878, %v3334, -inf
        %3345 = vmax.xlane.f32.xlu0 %v3344
        %v3346 = vpop.xlane.xlu0 %3345
        %v3347 = vsub.f32 %v3331, %v3337
        %v3348 = vsub.f32 %v3332, %v3340
        %v3349 = vsub.f32 %v3333, %v3343
        %v3350 = vsub.f32 %v3334, %v3346
        %v3351 = vmul.f32 %v3347, 1.442695
        %v3352 = vpow.pop %v3351
        %v3353 = vmul.f32 %v3348, 1.442695
        %v3354 = vpow.pop %v3353
        %v3355 = vmul.f32 %v3349, 1.442695
        %v3356 = vpow.pop %v3355
        %v3357 = vmul.f32 %v3350, 1.442695
        %v3358 = vpow.pop %v3357
        %v3359 = vsel %vm2878, %v3352, 0.0
        %3360 = vadd.xlane.f32.xlu0 %v3359
        %v3361 = vpop.xlane.xlu0 %3360
        %v3362 = vsel %vm2878, %v3354, 0.0
        %3363 = vadd.xlane.f32.xlu0 %v3362
        %v3364 = vpop.xlane.xlu0 %3363
        %v3365 = vsel %vm2878, %v3356, 0.0
        %3366 = vadd.xlane.f32.xlu0 %v3365
        %v3367 = vpop.xlane.xlu0 %3366
        %v3368 = vsel %vm2878, %v3358, 0.0
        %3369 = vadd.xlane.f32.xlu0 %v3368
        %v3370 = vpop.xlane.xlu0 %3369
        %v3371 = vrcp.pop %v3361
        %v3372 = vrcp.pop %v3364
        %v3373 = vrcp.pop %v3367
        %v3374 = vrcp.pop %v3370
        %v3375 = vmul.f32 %v3352, %v3371
        %v3376 = vmul.f32 %v3354, %v3372
        %v3377 = vmul.f32 %v3356, %v3373
        %v3378 = vmul.f32 %v3358, %v3374
        %v3379 = vpack.c.bf16 %v3375, %v3375
        %v3380 = vpack.c.bf16 %v3376, %v3376
        %v3381 = vpack.c.bf16 %v3377, %v3377
        %v3382 = vpack.c.bf16 %v3378, %v3378
        %v3384 = vsel %vm2878, %v3379, 0
        %3386 = vmatprep.subr.bf16.mxu0 0
        %3387 = vmatpush1.bf16.msra.mxu0 %v2654
        %3388 = vmatprep.subr.bf16.mxu0 0
        %3389 = vmatpush1.bf16.msra.mxu0 0
        %3390 = vmatprep.subr.bf16.mxu0 0
        %3391 = vmatpush1.bf16.msra.mxu0 0
        %3392 = vmatprep.subr.bf16.mxu0 0
        %3393 = vmatpush1.bf16.msra.mxu0 0
        %3394 = vmatprep.subr.bf16.mxu0 0
        %3395 = vmatpush1.bf16.msra.mxu0 0
        %3396 = vmatprep.subr.bf16.mxu0 0
        %3397 = vmatpush1.bf16.msra.mxu0 0
        %3398 = vmatprep.subr.bf16.mxu0 0
        %3399 = vmatpush1.bf16.msra.mxu0 0
        %3400 = vmatprep.subr.bf16.mxu0 0
        %3401 = vmatpush1.bf16.msra.mxu0 0
        %3402 = vmatprep.subr.bf16.mxu0 0
        %3403 = vmatpush1.bf16.msra.mxu0 0
        %3404 = vmatprep.subr.bf16.mxu0 0
        %3405 = vmatpush1.bf16.msra.mxu0 0
        %3406 = vmatprep.subr.bf16.mxu0 0
        %3407 = vmatpush1.bf16.msra.mxu0 0
        %3408 = vmatprep.subr.bf16.mxu0 0
        %3409 = vmatpush1.bf16.msra.mxu0 0
        %3410 = vmatprep.subr.bf16.mxu0 0
        %3411 = vmatpush1.bf16.msra.mxu0 0
        %3412 = vmatprep.subr.bf16.mxu0 0
        %3413 = vmatpush1.bf16.msra.mxu0 0
        %3414 = vmatprep.subr.bf16.mxu0 0
        %3415 = vmatpush1.bf16.msra.mxu0 0
        %3416 = vmatprep.subr.bf16.mxu0 0
        %3417 = vmatpush1.bf16.msra.mxu0 0
        %3418 = vmatprep.mubr.bf16.mxu0 0
        %3419 = vmatmul.mubr.bf16.gmra.mrb[0].mxu0 %v3384
        %v3420 = vpop.f32.mrb[0].mxu0
        %v3421 = vadd.f32 0.0, %v3420
        %v3422 = vpop.f32.mrb[0].mxu0
        %v3423 = vpop.f32.mrb[0].mxu0
        %v3424 = vpop.f32.mrb[0].mxu0
        %3425 = vdwg.mxu0
        %v3427 = vsel %vm2878, %v3380, 0
        %3429 = vmatprep.subr.bf16.mxu0 0
        %3430 = vmatpush1.bf16.msra.mxu0 %v3125
        %3431 = vmatprep.subr.bf16.mxu0 0
        %3432 = vmatpush1.bf16.msra.mxu0 0
        %3433 = vmatprep.subr.bf16.mxu0 0
        %3434 = vmatpush1.bf16.msra.mxu0 0
        %3435 = vmatprep.subr.bf16.mxu0 0
        %3436 = vmatpush1.bf16.msra.mxu0 0
        %3437 = vmatprep.subr.bf16.mxu0 0
        %3438 = vmatpush1.bf16.msra.mxu0 0
        %3439 = vmatprep.subr.bf16.mxu0 0
        %3440 = vmatpush1.bf16.msra.mxu0 0
        %3441 = vmatprep.subr.bf16.mxu0 0
        %3442 = vmatpush1.bf16.msra.mxu0 0
        %3443 = vmatprep.subr.bf16.mxu0 0
        %3444 = vmatpush1.bf16.msra.mxu0 0
        %3445 = vmatprep.subr.bf16.mxu0 0
        %3446 = vmatpush1.bf16.msra.mxu0 0
        %3447 = vmatprep.subr.bf16.mxu0 0
        %3448 = vmatpush1.bf16.msra.mxu0 0
        %3449 = vmatprep.subr.bf16.mxu0 0
        %3450 = vmatpush1.bf16.msra.mxu0 0
        %3451 = vmatprep.subr.bf16.mxu0 0
        %3452 = vmatpush1.bf16.msra.mxu0 0
        %3453 = vmatprep.subr.bf16.mxu0 0
        %3454 = vmatpush1.bf16.msra.mxu0 0
        %3455 = vmatprep.subr.bf16.mxu0 0
        %3456 = vmatpush1.bf16.msra.mxu0 0
        %3457 = vmatprep.subr.bf16.mxu0 0
        %3458 = vmatpush1.bf16.msra.mxu0 0
        %3459 = vmatprep.subr.bf16.mxu0 0
        %3460 = vmatpush1.bf16.msra.mxu0 0
        %3461 = vmatprep.mubr.bf16.mxu0 0
        %3462 = vmatmul.mubr.bf16.gmra.mrb[0].mxu0 %v3427
        %v3463 = vpop.f32.mrb[0].mxu0
        %v3464 = vadd.f32 0.0, %v3463
        %v3465 = vpop.f32.mrb[0].mxu0
        %v3466 = vpop.f32.mrb[0].mxu0
        %v3467 = vpop.f32.mrb[0].mxu0
        %3468 = vdwg.mxu0
        %v3470 = vsel %vm2878, %v3381, 0
        %3472 = vmatprep.subr.bf16.mxu0 0
        %3473 = vmatpush1.bf16.msra.mxu0 %v3128
        %3474 = vmatprep.subr.bf16.mxu0 0
        %3475 = vmatpush1.bf16.msra.mxu0 0
        %3476 = vmatprep.subr.bf16.mxu0 0
        %3477 = vmatpush1.bf16.msra.mxu0 0
        %3478 = vmatprep.subr.bf16.mxu0 0
        %3479 = vmatpush1.bf16.msra.mxu0 0
        %3480 = vmatprep.subr.bf16.mxu0 0
        %3481 = vmatpush1.bf16.msra.mxu0 0
        %3482 = vmatprep.subr.bf16.mxu0 0
        %3483 = vmatpush1.bf16.msra.mxu0 0
        %3484 = vmatprep.subr.bf16.mxu0 0
        %3485 = vmatpush1.bf16.msra.mxu0 0
        %3486 = vmatprep.subr.bf16.mxu0 0
        %3487 = vmatpush1.bf16.msra.mxu0 0
        %3488 = vmatprep.subr.bf16.mxu0 0
        %3489 = vmatpush1.bf16.msra.mxu0 0
        %3490 = vmatprep.subr.bf16.mxu0 0
        %3491 = vmatpush1.bf16.msra.mxu0 0
        %3492 = vmatprep.subr.bf16.mxu0 0
        %3493 = vmatpush1.bf16.msra.mxu0 0
        %3494 = vmatprep.subr.bf16.mxu0 0
        %3495 = vmatpush1.bf16.msra.mxu0 0
        %3496 = vmatprep.subr.bf16.mxu0 0
        %3497 = vmatpush1.bf16.msra.mxu0 0
        %3498 = vmatprep.subr.bf16.mxu0 0
        %3499 = vmatpush1.bf16.msra.mxu0 0
        %3500 = vmatprep.subr.bf16.mxu0 0
        %3501 = vmatpush1.bf16.msra.mxu0 0
        %3502 = vmatprep.subr.bf16.mxu0 0
        %3503 = vmatpush1.bf16.msra.mxu0 0
        %3504 = vmatprep.mubr.bf16.mxu0 0
        %3505 = vmatmul.mubr.bf16.gmra.mrb[0].mxu0 %v3470
        %v3506 = vpop.f32.mrb[0].mxu0
        %v3507 = vadd.f32 0.0, %v3506
        %v3508 = vpop.f32.mrb[0].mxu0
        %v3509 = vpop.f32.mrb[0].mxu0
        %v3510 = vpop.f32.mrb[0].mxu0
        %3511 = vdwg.mxu0
        %v3513 = vsel %vm2878, %v3382, 0
        %3515 = vmatprep.subr.bf16.mxu0 0
        %3516 = vmatpush1.bf16.msra.mxu0 %v3131
        %3517 = vmatprep.subr.bf16.mxu0 0
        %3518 = vmatpush1.bf16.msra.mxu0 0
        %3519 = vmatprep.subr.bf16.mxu0 0
        %3520 = vmatpush1.bf16.msra.mxu0 0
        %3521 = vmatprep.subr.bf16.mxu0 0
        %3522 = vmatpush1.bf16.msra.mxu0 0
        %3523 = vmatprep.subr.bf16.mxu0 0
        %3524 = vmatpush1.bf16.msra.mxu0 0
        %3525 = vmatprep.subr.bf16.mxu0 0
        %3526 = vmatpush1.bf16.msra.mxu0 0
        %3527 = vmatprep.subr.bf16.mxu0 0
        %3528 = vmatpush1.bf16.msra.mxu0 0
        %3529 = vmatprep.subr.bf16.mxu0 0
        %3530 = vmatpush1.bf16.msra.mxu0 0
        %3531 = vmatprep.subr.bf16.mxu0 0
        %3532 = vmatpush1.bf16.msra.mxu0 0
        %3533 = vmatprep.subr.bf16.mxu0 0
        %3534 = vmatpush1.bf16.msra.mxu0 0
        %3535 = vmatprep.subr.bf16.mxu0 0
        %3536 = vmatpush1.bf16.msra.mxu0 0
        %3537 = vmatprep.subr.bf16.mxu0 0
        %3538 = vmatpush1.bf16.msra.mxu0 0
        %3539 = vmatprep.subr.bf16.mxu0 0
        %3540 = vmatpush1.bf16.msra.mxu0 0
        %3541 = vmatprep.subr.bf16.mxu0 0
        %3542 = vmatpush1.bf16.msra.mxu0 0
        %3543 = vmatprep.subr.bf16.mxu0 0
        %3544 = vmatpush1.bf16.msra.mxu0 0
        %3545 = vmatprep.subr.bf16.mxu0 0
        %3546 = vmatpush1.bf16.msra.mxu0 0
        %3547 = vmatprep.mubr.bf16.mxu0 0
        %3548 = vmatmul.mubr.bf16.gmra.mrb[0].mxu0 %v3513
        %v3549 = vpop.f32.mrb[0].mxu0
        %v3550 = vadd.f32 0.0, %v3549
        %v3551 = vpop.f32.mrb[0].mxu0
        %v3552 = vpop.f32.mrb[0].mxu0
        %v3553 = vpop.f32.mrb[0].mxu0
        %3554 = vdwg.mxu0
        %3556 = vrot.lane.b32.xlu0 %v3464, 32
        %v3557 = vpop.permute.xlu0 %3556
        %3560 = vrot.lane.b32.xlu0 %v3507, 64
        %v3561 = vpop.permute.xlu0 %3560
        %3564 = vrot.lane.b32.xlu0 %v3550, 96
        %v3565 = vpop.permute.xlu0 %3564
        %v3567 = vsel %vm1304, %v3421, %v3557
        %v3568 = vsel %vm1744, %v3567, %v3561
        %v3569 = vsel %vm1746, %v3568, %v3565
        %v3570 = vpack.c.bf16 %v3569, %v3113
        %v3571 = vld [vmem:[#allocation14] sm:$0xf]
        %v3572 = vld [vmem:[#allocation14 + $0x4] sm:$0xf]
        %v3573 = vld [vmem:[#allocation14 + $0x8] sm:$0xf]
        %v3574 = vld [vmem:[#allocation14 + $0xc] sm:$0xf]
        %v3575 = vld [vmem:[#allocation14 + $0x10] sm:$0xf]
        %v3576 = vld [vmem:[#allocation14 + $0x14] sm:$0xf]
        %v3577 = vld [vmem:[#allocation14 + $0x18] sm:$0xf]
        %v3578 = vld [vmem:[#allocation14 + $0x1c] sm:$0xf]
        %v3579 = vld [vmem:[#allocation14 + $0x20] sm:$0xf]
        %v3580 = vld [vmem:[#allocation14 + $0x24] sm:$0xf]
        %v3581 = vld [vmem:[#allocation14 + $0x28] sm:$0xf]
        %v3582 = vld [vmem:[#allocation14 + $0x2c] sm:$0xf]
        %v3583 = vld [vmem:[#allocation14 + $0x30] sm:$0xf]
        %v3584 = vld [vmem:[#allocation14 + $0x34] sm:$0xf]
        %v3585 = vld [vmem:[#allocation14 + $0x38] sm:$0xf]
        %v3586 = vld [vmem:[#allocation14 + $0x3c] sm:$0xf]
        %v3587 = vld [vmem:[%s17] sm:$0x1]
        %v3589 = vlaneseq
        %v3590 = vshrl.u32 %v3589, 7
        %v3591 = vsub.s32 0, %v3590
        %v3592 = vrot.slane %v3587, %v3591
        %v3610 = vunpack.c.l.b16 %v3571
        %v3611 = vunpack.c.l.b16 %v3572
        %v3612 = vunpack.c.l.b16 %v3573
        %v3613 = vunpack.c.l.b16 %v3574
        %v3614 = vunpack.c.l.b16 %v3575
        %v3615 = vunpack.c.l.b16 %v3576
        %v3616 = vunpack.c.l.b16 %v3577
        %v3617 = vunpack.c.l.b16 %v3578
        %v3618 = vunpack.c.l.b16 %v3579
        %v3619 = vunpack.c.l.b16 %v3580
        %v3620 = vunpack.c.l.b16 %v3581
        %v3621 = vunpack.c.l.b16 %v3582
        %v3622 = vunpack.c.l.b16 %v3583
        %v3623 = vunpack.c.l.b16 %v3584
        %v3624 = vunpack.c.l.b16 %v3585
        %v3625 = vunpack.c.l.b16 %v3586
        %v3626 = vpack.c.b16 %v3611, %v3610
        %v3627 = vpack.c.b16 %v3613, %v3612
        %v3628 = vpack.c.b16 %v3615, %v3614
        %v3629 = vpack.c.b16 %v3617, %v3616
        %v3630 = vpack.c.b16 %v3619, %v3618
        %v3631 = vpack.c.b16 %v3621, %v3620
        %v3632 = vpack.c.b16 %v3623, %v3622
        %v3633 = vpack.c.b16 %v3625, %v3624
        %3642 = vmatprep.subr.bf16.mxu0 0
        %3643 = vmatpush1.bf16.msra.mxu0 %v3626
        %3644 = vmatprep.subr.bf16.mxu0 0
        %3645 = vmatpush1.bf16.msra.mxu0 %v3627
        %3646 = vmatprep.subr.bf16.mxu0 0
        %3647 = vmatpush1.bf16.msra.mxu0 %v3628
        %3648 = vmatprep.subr.bf16.mxu0 0
        %3649 = vmatpush1.bf16.msra.mxu0 %v3629
        %3650 = vmatprep.subr.bf16.mxu0 0
        %3651 = vmatpush1.bf16.msra.mxu0 %v3630
        %3652 = vmatprep.subr.bf16.mxu0 0
        %3653 = vmatpush1.bf16.msra.mxu0 %v3631
        %3654 = vmatprep.subr.bf16.mxu0 0
        %3655 = vmatpush1.bf16.msra.mxu0 %v3632
        %3656 = vmatprep.subr.bf16.mxu0 0
        %3657 = vmatpush1.bf16.msra.mxu0 %v3633
        %3658 = vmatprep.subr.bf16.mxu0 0
        %3659 = vmatpush1.bf16.msra.mxu0 0
        %3660 = vmatprep.subr.bf16.mxu0 0
        %3661 = vmatpush1.bf16.msra.mxu0 0
        %3662 = vmatprep.subr.bf16.mxu0 0
        %3663 = vmatpush1.bf16.msra.mxu0 0
        %3664 = vmatprep.subr.bf16.mxu0 0
        %3665 = vmatpush1.bf16.msra.mxu0 0
        %3666 = vmatprep.subr.bf16.mxu0 0
        %3667 = vmatpush1.bf16.msra.mxu0 0
        %3668 = vmatprep.subr.bf16.mxu0 0
        %3669 = vmatpush1.bf16.msra.mxu0 0
        %3670 = vmatprep.subr.bf16.mxu0 0
        %3671 = vmatpush1.bf16.msra.mxu0 0
        %3672 = vmatprep.subr.bf16.mxu0 0
        %3673 = vmatpush1.bf16.msra.mxu0 0
        %3674 = vmatprep.mubr.bf16.mxu0 0
        %3675 = vmatmul.mubr.bf16.gmra.mrb[0].mxu0 %v3570
        %v3676 = vpop.f32.mrb[0].mxu0
        %v3677 = vadd.f32 %v3592, %v3676
        %v3678 = vpop.f32.mrb[0].mxu0
        %v3679 = vpop.f32.mrb[0].mxu0
        %v3680 = vadd.f32 %v3592, %v3679
        %v3681 = vpop.f32.mrb[0].mxu0
        %3682 = vdwg.mxu0
        %v3683 = vadd.f32 %v2314, %v3677
        %v3684 = vadd.f32 %v2315, %v3680
        %v3685 = vld [vmem:[%s18] sm:$0x1]
        %v3686 = vld [vmem:[%s19] sm:$0x1]
        %3687 = vadd.xlane.f32.xlu0 %v3683
        %v3688 = vpop.xlane.xlu0 %3687
        %3689 = vadd.xlane.f32.xlu0 %v3684
        %v3690 = vpop.xlane.xlu0 %3689
        %v3691 = vmul.f32 %v3688, %v967
        %v3692 = vmul.f32 %v3690, %v967
        %v3693 = vsub.f32 %v3683, %v3691
        %v3694 = vsub.f32 %v3684, %v3692
        %v3695 = vmul.f32 %v3693, %v3693
        %v3696 = vmul.f32 %v3694, %v3694
        %3697 = vadd.xlane.f32.xlu0 %v3695
        %v3698 = vpop.xlane.xlu0 %3697
        %3699 = vadd.xlane.f32.xlu0 %v3696
        %v3700 = vpop.xlane.xlu0 %3699
        %v3701 = vmul.f32 %v3698, %v978
        %v3702 = vmul.f32 %v3700, %v978
        %v3703 = vrsqrt.pop %v3701
        %v3704 = vmul.f32 %v3701, %v3703
        %vm3705 = vcmp.eq.f32.partialorder %v3701, inf
        %v3706 = vsel %vm3705, %v3701, %v3704
        %vm3707 = vcmp.eq.f32.partialorder %v3701, 0.0
        %v3708 = vand.u32 %v3701, 2147483648
        %v3709 = vsel %vm3707, %v3708, %v3706
        %v3710 = vrsqrt.pop %v3702
        %v3711 = vmul.f32 %v3702, %v3710
        %vm3712 = vcmp.eq.f32.partialorder %v3702, inf
        %v3713 = vsel %vm3712, %v3702, %v3711
        %vm3714 = vcmp.eq.f32.partialorder %v3702, 0.0
        %v3715 = vand.u32 %v3702, 2147483648
        %v3716 = vsel %vm3714, %v3715, %v3713
        %v3718 = vlaneseq
        %v3719 = vshrl.u32 %v3718, 7
        %v3720 = vsub.s32 0, %v3719
        %v3721 = vrot.slane %v3685, %v3720
        %v3723 = vmul.f32 %v3721, %v3693
        %v3724 = vmul.f32 %v3721, %v3694
        %v3725 = vadd.f32 %v3709, 1e-06
        %v3726 = vadd.f32 %v3716, 1e-06
        %v3727 = vrcp.pop %v3725
        %v3728 = vmul.f32 %v3723, %v3727
        %v3729 = vrcp.pop %v3726
        %v3730 = vmul.f32 %v3724, %v3729
        %v3732 = vlaneseq
        %v3733 = vshrl.u32 %v3732, 7
        %v3734 = vsub.s32 0, %v3733
        %v3735 = vrot.slane %v3686, %v3734
        %v3737 = vadd.f32 %v3728, %v3735
        %v3738 = vadd.f32 %v3730, %v3735
        %v3739 = vpack.c.bf16 %v3738, %v3737
        %v3740 = vld [vmem:[#allocation16] sm:$0xff]
        %v3741 = vld [vmem:[#allocation16 + $0x8] sm:$0xff]
        %v3742 = vld [vmem:[#allocation16 + $0x10] sm:$0xff]
        %v3743 = vld [vmem:[#allocation16 + $0x18] sm:$0xff]
        %v3744 = vld [vmem:[#allocation16 + $0x20] sm:$0xff]
        %v3745 = vld [vmem:[#allocation16 + $0x28] sm:$0xff]
        %v3746 = vld [vmem:[#allocation16 + $0x30] sm:$0xff]
        %v3747 = vld [vmem:[#allocation16 + $0x38] sm:$0xff]
        %v3748 = vld [vmem:[#allocation16 + $0x40] sm:$0xff]
        %v3749 = vld [vmem:[#allocation16 + $0x48] sm:$0xff]
        %v3750 = vld [vmem:[#allocation16 + $0x50] sm:$0xff]
        %v3751 = vld [vmem:[#allocation16 + $0x58] sm:$0xff]
        %v3752 = vld [vmem:[#allocation16 + $0x60] sm:$0xff]
        %v3753 = vld [vmem:[#allocation16 + $0x68] sm:$0xff]
        %v3754 = vld [vmem:[#allocation16 + $0x70] sm:$0xff]
        %v3755 = vld [vmem:[#allocation16 + $0x78] sm:$0xff]
        %v3756 = vld [vmem:[%s21] sm:$0x3]
        %v3758 = vlaneseq
        %v3759 = vshrl.u32 %v3758, 7
        %v3760 = vsub.s32 0, %v3759
        %v3761 = vrot.slane %v3756, %v3760
        %v3762 = vlaneseq
        %v3763 = vshrl.u32 %v3762, 7
        %v3764 = vsub.s32 1, %v3763
        %v3765 = vrot.slane %v3756, %v3764
        %v3784 = vunpack.c.l.b16 %v3740
        %v3785 = vunpack.c.h.b16 %v3740
        %v3786 = vunpack.c.l.b16 %v3741
        %v3787 = vunpack.c.h.b16 %v3741
        %v3788 = vunpack.c.l.b16 %v3742
        %v3789 = vunpack.c.h.b16 %v3742
        %v3790 = vunpack.c.l.b16 %v3743
        %v3791 = vunpack.c.h.b16 %v3743
        %v3792 = vunpack.c.l.b16 %v3744
        %v3793 = vunpack.c.h.b16 %v3744
        %v3794 = vunpack.c.l.b16 %v3745
        %v3795 = vunpack.c.h.b16 %v3745
        %v3796 = vunpack.c.l.b16 %v3746
        %v3797 = vunpack.c.h.b16 %v3746
        %v3798 = vunpack.c.l.b16 %v3747
        %v3799 = vunpack.c.h.b16 %v3747
        %v3800 = vunpack.c.l.b16 %v3748
        %v3801 = vunpack.c.h.b16 %v3748
        %v3802 = vunpack.c.l.b16 %v3749
        %v3803 = vunpack.c.h.b16 %v3749
        %v3804 = vunpack.c.l.b16 %v3750
        %v3805 = vunpack.c.h.b16 %v3750
        %v3806 = vunpack.c.l.b16 %v3751
        %v3807 = vunpack.c.h.b16 %v3751
        %v3808 = vunpack.c.l.b16 %v3752
        %v3809 = vunpack.c.h.b16 %v3752
        %v3810 = vunpack.c.l.b16 %v3753
        %v3811 = vunpack.c.h.b16 %v3753
        %v3812 = vunpack.c.l.b16 %v3754
        %v3813 = vunpack.c.h.b16 %v3754
        %v3814 = vunpack.c.l.b16 %v3755
        %v3815 = vunpack.c.h.b16 %v3755
        %v3816 = vpack.c.b16 %v3786, %v3784
        %v3817 = vpack.c.b16 %v3787, %v3785
        %v3818 = vpack.c.b16 %v3790, %v3788
        %v3819 = vpack.c.b16 %v3791, %v3789
        %v3820 = vpack.c.b16 %v3794, %v3792
        %v3821 = vpack.c.b16 %v3795, %v3793
        %v3822 = vpack.c.b16 %v3798, %v3796
        %v3823 = vpack.c.b16 %v3799, %v3797
        %v3824 = vpack.c.b16 %v3802, %v3800
        %v3825 = vpack.c.b16 %v3803, %v3801
        %v3826 = vpack.c.b16 %v3806, %v3804
        %v3827 = vpack.c.b16 %v3807, %v3805
        %v3828 = vpack.c.b16 %v3810, %v3808
        %v3829 = vpack.c.b16 %v3811, %v3809
        %v3830 = vpack.c.b16 %v3814, %v3812
        %v3831 = vpack.c.b16 %v3815, %v3813
        %3848 = vmatprep.subr.bf16.mxu0 %v3817
        %3849 = vmatpush1.bf16.msra.mxu0 %v3816
        %3850 = vmatprep.subr.bf16.mxu0 %v3819
        %3851 = vmatpush1.bf16.msra.mxu0 %v3818
        %3852 = vmatprep.subr.bf16.mxu0 %v3821
        %3853 = vmatpush1.bf16.msra.mxu0 %v3820
        %3854 = vmatprep.subr.bf16.mxu0 %v3823
        %3855 = vmatpush1.bf16.msra.mxu0 %v3822
        %3856 = vmatprep.subr.bf16.mxu0 %v3825
        %3857 = vmatpush1.bf16.msra.mxu0 %v3824
        %3858 = vmatprep.subr.bf16.mxu0 %v3827
        %3859 = vmatpush1.bf16.msra.mxu0 %v3826
        %3860 = vmatprep.subr.bf16.mxu0 %v3829
        %3861 = vmatpush1.bf16.msra.mxu0 %v3828
        %3862 = vmatprep.subr.bf16.mxu0 %v3831
        %3863 = vmatpush1.bf16.msra.mxu0 %v3830
        %3864 = vmatprep.subr.bf16.mxu0 0
        %3865 = vmatpush1.bf16.msra.mxu0 0
        %3866 = vmatprep.subr.bf16.mxu0 0
        %3867 = vmatpush1.bf16.msra.mxu0 0
        %3868 = vmatprep.subr.bf16.mxu0 0
        %3869 = vmatpush1.bf16.msra.mxu0 0
        %3870 = vmatprep.subr.bf16.mxu0 0
        %3871 = vmatpush1.bf16.msra.mxu0 0
        %3872 = vmatprep.subr.bf16.mxu0 0
        %3873 = vmatpush1.bf16.msra.mxu0 0
        %3874 = vmatprep.subr.bf16.mxu0 0
        %3875 = vmatpush1.bf16.msra.mxu0 0
        %3876 = vmatprep.subr.bf16.mxu0 0
        %3877 = vmatpush1.bf16.msra.mxu0 0
        %3878 = vmatprep.subr.bf16.mxu0 0
        %3879 = vmatpush1.bf16.msra.mxu0 0
        %3880 = vmatprep.mubr.bf16.mxu0 0
        %3881 = vmatmul.mubr.bf16.gmra.mrb[0].mxu0 %v3739
        %v3882 = vpop.f32.mrb[0].mxu0
        %v3883 = vadd.f32 %v3761, %v3882
        %v3884 = vpop.f32.mrb[0].mxu0
        %v3885 = vadd.f32 %v3765, %v3884
        %v3886 = vpop.f32.mrb[0].mxu0
        %v3887 = vadd.f32 %v3761, %v3886
        %v3888 = vpop.f32.mrb[0].mxu0
        %v3889 = vadd.f32 %v3765, %v3888
        %3890 = vdwg.mxu0
        %v3891 = vmax.f32 %v3883, 0.0
        %v3892 = vmax.f32 %v3885, 0.0
        %v3893 = vmax.f32 %v3887, 0.0
        %v3894 = vmax.f32 %v3889, 0.0
        %v3895 = vpack.c.bf16 %v3893, %v3891
        %v3896 = vpack.c.bf16 %v3894, %v3892
        %v3897 = vld [vmem:[#allocation17] sm:$0xf]
        %v3898 = vld [vmem:[#allocation17 + $0x4] sm:$0xf]
        %v3899 = vld [vmem:[#allocation17 + $0x8] sm:$0xf]
        %v3900 = vld [vmem:[#allocation17 + $0xc] sm:$0xf]
        %v3901 = vld [vmem:[#allocation17 + $0x10] sm:$0xf]
        %v3902 = vld [vmem:[#allocation17 + $0x14] sm:$0xf]
        %v3903 = vld [vmem:[#allocation17 + $0x18] sm:$0xf]
        %v3904 = vld [vmem:[#allocation17 + $0x1c] sm:$0xf]
        %v3905 = vld [vmem:[#allocation17 + $0x20] sm:$0xf]
        %v3906 = vld [vmem:[#allocation17 + $0x24] sm:$0xf]
        %v3907 = vld [vmem:[#allocation17 + $0x28] sm:$0xf]
        %v3908 = vld [vmem:[#allocation17 + $0x2c] sm:$0xf]
        %v3909 = vld [vmem:[#allocation17 + $0x30] sm:$0xf]
        %v3910 = vld [vmem:[#allocation17 + $0x34] sm:$0xf]
        %v3911 = vld [vmem:[#allocation17 + $0x38] sm:$0xf]
        %v3912 = vld [vmem:[#allocation17 + $0x3c] sm:$0xf]
        %v3913 = vld [vmem:[#allocation17 + $0x40] sm:$0xf]
        %v3914 = vld [vmem:[#allocation17 + $0x44] sm:$0xf]
        %v3915 = vld [vmem:[#allocation17 + $0x48] sm:$0xf]
        %v3916 = vld [vmem:[#allocation17 + $0x4c] sm:$0xf]
        %v3917 = vld [vmem:[#allocation17 + $0x50] sm:$0xf]
        %v3918 = vld [vmem:[#allocation17 + $0x54] sm:$0xf]
        %v3919 = vld [vmem:[#allocation17 + $0x58] sm:$0xf]
        %v3920 = vld [vmem:[#allocation17 + $0x5c] sm:$0xf]
        %v3921 = vld [vmem:[#allocation17 + $0x60] sm:$0xf]
        %v3922 = vld [vmem:[#allocation17 + $0x64] sm:$0xf]
        %v3923 = vld [vmem:[#allocation17 + $0x68] sm:$0xf]
        %v3924 = vld [vmem:[#allocation17 + $0x6c] sm:$0xf]
        %v3925 = vld [vmem:[#allocation17 + $0x70] sm:$0xf]
        %v3926 = vld [vmem:[#allocation17 + $0x74] sm:$0xf]
        %v3927 = vld [vmem:[#allocation17 + $0x78] sm:$0xf]
        %v3928 = vld [vmem:[#allocation17 + $0x7c] sm:$0xf]
        %v3929 = vld [vmem:[%s23] sm:$0x1]
        %v3931 = vlaneseq
        %v3932 = vshrl.u32 %v3931, 7
        %v3933 = vsub.s32 0, %v3932
        %v3934 = vrot.slane %v3929, %v3933
        %v3968 = vunpack.c.l.b16 %v3897
        %v3969 = vunpack.c.l.b16 %v3898
        %v3970 = vunpack.c.l.b16 %v3899
        %v3971 = vunpack.c.l.b16 %v3900
        %v3972 = vunpack.c.l.b16 %v3901
        %v3973 = vunpack.c.l.b16 %v3902
        %v3974 = vunpack.c.l.b16 %v3903
        %v3975 = vunpack.c.l.b16 %v3904
        %v3976 = vunpack.c.l.b16 %v3905
        %v3977 = vunpack.c.l.b16 %v3906
        %v3978 = vunpack.c.l.b16 %v3907
        %v3979 = vunpack.c.l.b16 %v3908
        %v3980 = vunpack.c.l.b16 %v3909
        %v3981 = vunpack.c.l.b16 %v3910
        %v3982 = vunpack.c.l.b16 %v3911
        %v3983 = vunpack.c.l.b16 %v3912
        %v3984 = vunpack.c.l.b16 %v3913
        %v3985 = vunpack.c.l.b16 %v3914
        %v3986 = vunpack.c.l.b16 %v3915
        %v3987 = vunpack.c.l.b16 %v3916
        %v3988 = vunpack.c.l.b16 %v3917
        %v3989 = vunpack.c.l.b16 %v3918
        %v3990 = vunpack.c.l.b16 %v3919
        %v3991 = vunpack.c.l.b16 %v3920
        %v3992 = vunpack.c.l.b16 %v3921
        %v3993 = vunpack.c.l.b16 %v3922
        %v3994 = vunpack.c.l.b16 %v3923
        %v3995 = vunpack.c.l.b16 %v3924
        %v3996 = vunpack.c.l.b16 %v3925
        %v3997 = vunpack.c.l.b16 %v3926
        %v3998 = vunpack.c.l.b16 %v3927
        %v3999 = vunpack.c.l.b16 %v3928
        %v4000 = vpack.c.b16 %v3969, %v3968
        %v4001 = vpack.c.b16 %v3971, %v3970
        %v4002 = vpack.c.b16 %v3973, %v3972
        %v4003 = vpack.c.b16 %v3975, %v3974
        %v4004 = vpack.c.b16 %v3977, %v3976
        %v4005 = vpack.c.b16 %v3979, %v3978
        %v4006 = vpack.c.b16 %v3981, %v3980
        %v4007 = vpack.c.b16 %v3983, %v3982
        %v4008 = vpack.c.b16 %v3985, %v3984
        %v4009 = vpack.c.b16 %v3987, %v3986
        %v4010 = vpack.c.b16 %v3989, %v3988
        %v4011 = vpack.c.b16 %v3991, %v3990
        %v4012 = vpack.c.b16 %v3993, %v3992
        %v4013 = vpack.c.b16 %v3995, %v3994
        %v4014 = vpack.c.b16 %v3997, %v3996
        %v4015 = vpack.c.b16 %v3999, %v3998
        %4032 = vmatprep.subr.bf16.mxu0 0
        %4033 = vmatpush1.bf16.msra.mxu0 %v4000
        %4034 = vmatprep.subr.bf16.mxu0 0
        %4035 = vmatpush1.bf16.msra.mxu0 %v4001
        %4036 = vmatprep.subr.bf16.mxu0 0
        %4037 = vmatpush1.bf16.msra.mxu0 %v4002
        %4038 = vmatprep.subr.bf16.mxu0 0
        %4039 = vmatpush1.bf16.msra.mxu0 %v4003
        %4040 = vmatprep.subr.bf16.mxu0 0
        %4041 = vmatpush1.bf16.msra.mxu0 %v4004
        %4042 = vmatprep.subr.bf16.mxu0 0
        %4043 = vmatpush1.bf16.msra.mxu0 %v4005
        %4044 = vmatprep.subr.bf16.mxu0 0
        %4045 = vmatpush1.bf16.msra.mxu0 %v4006
        %4046 = vmatprep.subr.bf16.mxu0 0
        %4047 = vmatpush1.bf16.msra.mxu0 %v4007
        %4048 = vmatprep.subr.bf16.mxu0 0
        %4049 = vmatpush1.bf16.msra.mxu0 %v4008
        %4050 = vmatprep.subr.bf16.mxu0 0
        %4051 = vmatpush1.bf16.msra.mxu0 %v4009
        %4052 = vmatprep.subr.bf16.mxu0 0
        %4053 = vmatpush1.bf16.msra.mxu0 %v4010
        %4054 = vmatprep.subr.bf16.mxu0 0
        %4055 = vmatpush1.bf16.msra.mxu0 %v4011
        %4056 = vmatprep.subr.bf16.mxu0 0
        %4057 = vmatpush1.bf16.msra.mxu0 %v4012
        %4058 = vmatprep.subr.bf16.mxu0 0
        %4059 = vmatpush1.bf16.msra.mxu0 %v4013
        %4060 = vmatprep.subr.bf16.mxu0 0
        %4061 = vmatpush1.bf16.msra.mxu0 %v4014
        %4062 = vmatprep.subr.bf16.mxu0 0
        %4063 = vmatpush1.bf16.msra.mxu0 %v4015
        %4064 = vmatprep.mubr.bf16.mxu0 %v3896
        %4065 = vmatmul.mubr.bf16.gmra.mrb[0].mxu0 %v3895
        %v4066 = vpop.f32.mrb[0].mxu0
        %v4067 = vadd.f32 %v3934, %v4066
        %v4068 = vpop.f32.mrb[0].mxu0
        %v4069 = vpop.f32.mrb[0].mxu0
        %v4070 = vadd.f32 %v3934, %v4069
        %v4071 = vpop.f32.mrb[0].mxu0
        %4072 = vdwg.mxu0
        %v4073 = vadd.f32 %v3683, %v4067
        %v4074 = vadd.f32 %v3684, %v4070
        %4075 = vst [vmem:[%s948] sm:$0xff] %v4073
        %4076 = vst [vmem:[%s948 + $0x8] sm:$0xff] %v4074
        %s4077 = sand.u32 %s580, 1
        %s4078 = scalar_lea.sflag [#allocation4], %s4077
        %s4079 = sand.u32 %s580, 1
        %s4080 = smul.addr %s4079, 16
        %s4081 = scalar_lea.vmem [#allocation19], %s4080
        // Predicated region
        $region157: #{tpu_custom_call.1} parent=115 // pred_check
          %p4082 = pneg %p590
        $region158: #{tpu_custom_call.1} parent=115 // pred_check_branch
          %4084 = sbr.rel (%p4082) target = $region160
        $region159: #{tpu_custom_call.1} parent=115 // pred_region
          %s4085 = smul.u32 2, %s48
          %s4087 = ssub.s32 256, 256
          %4088 = vsyncadd %s4078, %s4087
          %s4089 = smul.addr %s4085, 128
          %s4090 = scalar_lea.hbm %s24, %s4089
          %s4091 = sshll.u32 %s4081, 4
          %s4092 = int_to_ptr.vmem [resolvable:$true] %s4091
          %4097 = dma.vmem_to_hbm [thread:$0]  %s4092, 256, %s4090, %s4078, 128, 128, 8
        $region160: #{tpu_custom_call.1} parent=115 // pred_fallthru
          _
      $region116: #{tpu_custom_call.1} parent=5 // pred_fallthru
        _
      %p4098 = scmp.le.s32.totalorder 2, %s43
      // Predicated region
      $region161: #{tpu_custom_call.1} parent=5 // pred_check
        %p4099 = pneg %p4098
      $region162: #{tpu_custom_call.1} parent=5 // pred_check_branch
        %4101 = sbr.rel (%p4099) target = $region164
      $region163: #{tpu_custom_call.1} parent=5 // pred_region
        %s4102 = ssub.s32 %s43, 2
        // Predicated region
        $region165: #{tpu_custom_call.1} parent=163 // pred_check
          %p4103 = pneg %p596
        $region166: #{tpu_custom_call.1} parent=163 // pred_check_branch
          %4105 = sbr.rel (%p4103) target = $region168
        $region167: #{tpu_custom_call.1} parent=163 // pred_region
          %s4106 = sand.u32 %s581, 1
          %s4107 = scalar_lea.sflag [#allocation4], %s4106
          %s4108 = sand.u32 %s581, 1
          %s4109 = smul.addr %s4108, 16
          %s4110 = scalar_lea.vmem [#allocation19], %s4109
          %4111 = dma.done %s4107, 256
        $region168: #{tpu_custom_call.1} parent=163 // pred_fallthru
          _
      $region164: #{tpu_custom_call.1} parent=5 // pred_fallthru
        _
    $region6: #{tpu_custom_call.1} parent=1 // loop_footer
      %s47 = sadd.s32 1, %s43
    $region7: #{tpu_custom_call.1} parent=1 // loop_footer_branch
      %42 = sbr.rel target = $region3
    $region8: #{tpu_custom_call.1} parent=1 // loop_exit
      _
    %4112 = vsyncpa [#allocation3], 1
    %s4113 = scalar_lea.sflag [#allocation3], 1
    %4114 = vsyncpa %s4113, 1
    %4115 = vsyncpa [#allocation6], 1
    %s4116 = scalar_lea.sflag [#allocation6], 1
    %4117 = vsyncpa %s4116, 1
    %4118 = vsyncpa [#allocation9], 1
    %4119 = vsyncpa [#allocation12], 1
    %4120 = vsyncpa [#allocation15], 1
    %4121 = vsyncpa [#allocation18], 1
    %4122 = vsyncpa [#allocation4], 1
    %s4123 = scalar_lea.sflag [#allocation4], 1
    %4124 = vsyncpa %s4123, 1

</llo_original>
